<compile_context>
chip_gen: v7x
topology: tpu7x:2x2x1
jax: 0.10.0
libtpu: 0.0.40
codegen_flags: <defaults>
</compile_context>

<pallas_src>
import functools

import jax
import jax.numpy as jnp
import numpy as np
from jax.experimental import pallas as pl
from jax.experimental.pallas import tpu as pltpu


def _mla_kernel(H, d_h, half, dim_c, dim_c_kv, dim_kqv, dim_r, mm_dtype,
                x_ref, cos_ref, sin_ref,
                wx_ref, bx_ref, wcq_ref, bcq_ref, wkv_ref, bkv_ref,
                wo_ref, bo_ref, o_ref):
    """One grid step = one (batch, seq-tile) in feature-major layout."""
    rhalf = H * half
    xT = x_ref[0]                        # (E, tS)
    tS = xT.shape[-1]

    def lin(w_ref, b_ref, a):            # y^T = W @ a^T + b   (lane dim = tS)
        return (jnp.dot(w_ref[...], a.astype(mm_dtype),
                        preferred_element_type=jnp.float32) + b_ref[...])

    # Fused projections of x:   rows = [W_c | W_ckv | w_kr(perm)]
    xp = lin(wx_ref, bx_ref, xT)
    c = xp[:dim_c]
    ckv = xp[dim_c:dim_c + dim_c_kv]
    krp = xp[dim_c + dim_c_kv:dim_c + dim_c_kv + dim_r]

    # Fused projections of c:   rows = [W_cq | W_qr(perm)], scaler pre-folded.
    cp = lin(wcq_ref, bcq_ref, c)
    q2 = cp[:dim_kqv]
    qrp = cp[dim_kqv:dim_kqv + dim_r]

    # Fused projections of ckv: rows = [W_ck | W_v]
    kvp = lin(wkv_ref, bkv_ref, ckv)
    k2 = kvp[:dim_kqv]
    v2 = kvp[dim_kqv:2 * dim_kqv]

    # Lane-dense RoPE.  qrp/krp rows were permuted host-side into
    # [all heads' first halves | all heads' second halves]; cos/sin arrive as
    # (half, tS) and broadcast across heads.
    cos3 = cos_ref[...][None]            # (1, half, tS)
    sin3 = sin_ref[...][None]

    def rope(zp):
        z1 = zp[:rhalf].reshape(H, half, tS)
        z2 = zp[rhalf:].reshape(H, half, tS)
        return z1 * cos3 - z2 * sin3, z2 * cos3 + z1 * sin3

    qr1, qr2 = rope(qrp)
    kr1, kr2 = rope(krp)

    q3 = q2.reshape(H, d_h, tS)
    k3 = k2.reshape(H, d_h, tS)
    v3 = v2.reshape(H, d_h, tS)

    # Per-position head-mixing attention: scores[h, t, s] = <q[s,h,:], k[s,t,:]>.
    # One score column per key head t: full-lane-width VPU multiplies + short
    # sublane reductions (no tiny per-position MXU matmuls).
    s_cols = []
    for t in range(H):
        st = jnp.sum(q3 * k3[t][None], axis=1)           # (H, tS)
        st = st + jnp.sum(qr1 * kr1[t][None], axis=1)
        st = st + jnp.sum(qr2 * kr2[t][None], axis=1)
        s_cols.append(st)

    m = s_cols[0]
    for t in range(1, H):
        m = jnp.maximum(m, s_cols[t])
    e_cols = [jnp.exp(st - m) for st in s_cols]
    denom = e_cols[0]
    for t in range(1, H):
        denom = denom + e_cols[t]
    inv = 1.0 / denom                                     # exact softmax, f32

    ctx = jnp.zeros((H, d_h, tS), jnp.float32)
    for t in range(H):
        p_t = e_cols[t] * inv                             # (H, tS), f32
        ctx = ctx + p_t[:, None, :] * v3[t][None, :, :]   # sublane broadcast

    # Output projection: one full-K MXU matmul, lane dim = tS.
    out = (jnp.dot(wo_ref[...], ctx.reshape(H * d_h, tS).astype(mm_dtype),
                   preferred_element_type=jnp.float32) + bo_ref[...])
    o_ref[0] = out.astype(o_ref.dtype)


def _resident_spec(shape):
    """Grid-invariant (weight/bias) block: single-buffered when supported."""
    idx = lambda b, si: (0, 0)
    if hasattr(pl, "Buffered"):
        try:
            return pl.BlockSpec(shape, idx, pipeline_mode=pl.Buffered(1))
        except TypeError:
            pass
    return pl.BlockSpec(shape, idx)


def _pick_vmem_limit(resident_bytes):
    """Per-generation VMEM cap: v7x has 64 MiB physical, v5e/v6e have 128."""
    try:
        kind = jax.devices()[0].device_kind.lower()
    except Exception:
        kind = ""
    cap = (48 << 20) if "v7" in kind else (100 << 20)
    return int(min(cap, max(resident_bytes + (24 << 20), 32 << 20)))


def mla_forward(h_t, params, num_heads, *, seq_tile=512,
                matmul_dtype=jnp.float32):
    """params use nn.Linear native layout: weight (out, in), bias (out,)."""
    B, S, E = h_t.shape
    wc, wcq, wqr = params["wc"], params["wcq"], params["wqr"]
    wckv, wck, wkr = params["wckv"], params["wck"], params["wkr"]
    wv, wo = params["wv"], params["wo"]

    dim_c, dim_c_kv = wc.shape[0], wckv.shape[0]
    dim_kqv, dim_r, dim_out = wcq.shape[0], wqr.shape[0], wo.shape[0]
    H = num_heads
    assert dim_kqv % H == 0 and dim_r % H == 0
    d_h, d_r_h = dim_kqv // H, dim_r // H
    assert d_r_h % 2 == 0, "rope dim per head must be even"
    half = d_r_h // 2
    scaler = 1.0 / float(d_h + d_r_h) ** 0.5

    # Row permutation so per-head RoPE halves form two contiguous blocks:
    # [all heads' first halves | all heads' second halves].
    idx_first = np.concatenate(
        [np.arange(h * d_r_h, h * d_r_h + half) for h in range(H)])
    perm = np.concatenate([idx_first, idx_first + half])

    # Fused native-layout weights (one-time host-side cost); scaler folded
    # into the q-side weights/bias.
    w_x = jnp.concatenate([wc, wckv, wkr[perm]], axis=0)
    b_x = jnp.concatenate([params["bc"], params["bckv"],
                           params["bkr"][perm]])[:, None]
    w_cq = jnp.concatenate([wcq, wqr[perm]], axis=0) * scaler
    b_cq = (jnp.concatenate([params["bcq"], params["bqr"][perm]]) * scaler)[:, None]
    w_kv = jnp.concatenate([wck, wv], axis=0)
    b_kv = jnp.concatenate([params["bck"], params["bv"]])[:, None]
    w_o = wo
    b_o = params["bo"][:, None]

    if matmul_dtype != jnp.float32:
        # Cast weights host-side; biases and all VPU math stay f32.
        w_x, w_cq, w_kv, w_o = (w.astype(matmul_dtype)
                                for w in (w_x, w_cq, w_kv, w_o))

    # RoPE tables (half, S): broadcast across heads inside the kernel.
    t = jnp.arange(S, dtype=jnp.float32)
    inv_freq = 1.0 / (10000.0 ** (jnp.arange(0, d_r_h, 2, dtype=jnp.float32)
                                  / d_r_h))
    freqs = inv_freq[:, None] * t[None, :]
    cos_t, sin_t = jnp.cos(freqs), jnp.sin(freqs)

    # Feature-major input/output (wrapper-side layout plumbing).
    x_t = jnp.swapaxes(h_t, 1, 2)                         # (B, E, S)

    if S <= seq_tile:
        tS = S
    else:
        tS = max(128, (seq_tile // 128) * 128)            # lane-aligned tiles
    grid = (B, pl.cdiv(S, tS))

    weights = (w_x, b_x, w_cq, b_cq, w_kv, b_kv, w_o, b_o)
    in_specs = ([pl.BlockSpec((1, E, tS), lambda b, si: (b, 0, si)),
                 pl.BlockSpec((half, tS), lambda b, si: (0, si)),
                 pl.BlockSpec((half, tS), lambda b, si: (0, si))]
                + [_resident_spec(w.shape) for w in weights])

    kernel = functools.partial(
        _mla_kernel, H, d_h, half, dim_c, dim_c_kv, dim_kqv, dim_r,
        matmul_dtype)

    bytes_w = sum(int(np.prod(a.shape)) * a.dtype.itemsize for a in weights)
    bytes_tile = (E * tS * h_t.dtype.itemsize
                  + 2 * half * tS * 4 + dim_out * tS * 4)
    vmem_limit = _pick_vmem_limit(bytes_w + 2 * bytes_tile)

    out_t = pl.pallas_call(
        kernel,
        out_shape=jax.ShapeDtypeStruct((B, dim_out, S), jnp.float32),
        grid_spec=pltpu.PrefetchScalarGridSpec(
            num_scalar_prefetch=0,
            grid=grid,
            in_specs=in_specs,
            out_specs=pl.BlockSpec((1, dim_out, tS), lambda b, si: (b, 0, si)),
        ),
        compiler_params=pltpu.CompilerParams(
            dimension_semantics=("parallel", "parallel"),
            vmem_limit_bytes=vmem_limit),
    )(x_t, cos_t, sin_t, *weights)

    return jnp.swapaxes(out_t, 1, 2)                      # (B, S, dim_out)


def mla_reference(h_t, params, num_heads):
    """Pure-JAX transcription of the PyTorch forward (for verification)."""
    B, S, E = h_t.shape
    dim_kqv, dim_r = params["wcq"].shape[0], params["wqr"].shape[0]
    H = num_heads
    d_h, d_r = dim_kqv // H, dim_r // H
    scaler = 1.0 / float(d_h + d_r) ** 0.5

    t = jnp.arange(S, dtype=jnp.float32)
    inv_freq = 1.0 / (10000.0 ** (jnp.arange(0, d_r, 2, dtype=jnp.float32) / d_r))
    freqs = t[:, None] * inv_freq[None, :]
    emb = jnp.concatenate([freqs, freqs], axis=-1)
    cos = jnp.cos(emb)[None, :, None, :]
    sin = jnp.sin(emb)[None, :, None, :]

    def rope(z):
        d = z.shape[-1]
        z1, z2 = z[..., :d // 2], z[..., d // 2:]
        return z * cos + jnp.concatenate([-z2, z1], axis=-1) * sin

    def lin(x, w, b):
        return x @ w.T + b

    c = lin(h_t, params["wc"], params["bc"])
    q = lin(c, params["wcq"], params["bcq"]).reshape(B, S, H, -1)
    qr = rope(lin(c, params["wqr"], params["bqr"]).reshape(B, S, H, -1))
    q = jnp.concatenate([q, qr], axis=-1)
    ckv = lin(h_t, params["wckv"], params["bckv"])
    k = lin(ckv, params["wck"], params["bck"]).reshape(B, S, H, -1)
    kr = rope(lin(h_t, params["wkr"], params["bkr"]).reshape(B, S, H, -1))
    k = jnp.concatenate([k, kr], axis=-1)
    v = lin(ckv, params["wv"], params["bv"])
    scores = jnp.einsum("bshd,bstd->bsht", q, k) * scaler
    p = jax.nn.softmax(scores, axis=-1)
    out = jnp.einsum("bsht,bstd->bshd", p,
                     v.reshape(B, S, H, -1)).reshape(B, S, -1)
    return lin(out, params["wo"], params["bo"])


if __name__ == "__main__":
    # Compare kernel vs. reference under matched, full-precision matmuls so the
    # check is not dominated by backend-default bf16 MXU input rounding.
    jax.config.update("jax_default_matmul_precision", "highest")

    B, S = 2, 8
    dim_emd, num_heads, dim_out = 32, 4, 32
    dim_c, dim_kqv, dim_r, dim_c_kv = 16, 32, 16, 16

    key = jax.random.PRNGKey(0)
    keys = jax.random.split(key, 20)

    def w_init(k, dout, din):
        return jax.random.normal(k, (dout, din), jnp.float32) / jnp.sqrt(float(din))

    def b_init(k, d):
        return 0.01 * jax.random.normal(k, (d,), jnp.float32)

    params = {
        "wc":   w_init(keys[0], dim_c, dim_emd),    "bc":   b_init(keys[1], dim_c),
        "wcq":  w_init(keys[2], dim_kqv, dim_c),    "bcq":  b_init(keys[3], dim_kqv),
        "wqr":  w_init(keys[4], dim_r, dim_c),      "bqr":  b_init(keys[5], dim_r),
        "wckv": w_init(keys[6], dim_c_kv, dim_emd), "bckv": b_init(keys[7], dim_c_kv),
        "wck":  w_init(keys[8], dim_kqv, dim_c_kv), "bck":  b_init(keys[9], dim_kqv),
        "wkr":  w_init(keys[10], dim_r, dim_emd),   "bkr":  b_init(keys[11], dim_r),
        "wv":   w_init(keys[12], dim_kqv, dim_c_kv),"bv":   b_init(keys[13], dim_kqv),
        "wo":   w_init(keys[14], dim_out, dim_kqv), "bo":   b_init(keys[15], dim_out),
    }
    h_t = jax.random.normal(keys[16], (B, S, dim_emd), jnp.float32)

    out = jax.block_until_ready(mla_forward(h_t, params, num_heads))
    ref = mla_reference(h_t, params, num_heads)

    # Tolerance is intentionally generous: if a backend ignores the "highest"
    # matmul-precision hint on one side (bf16-input MXU rounding), per-position
    # softmax sharpening can amplify ~1e-3 relative score differences to a few
    # 1e-3 in the outputs.  With matched precision the observed error is ~1e-6.
    np.testing.assert_allclose(np.asarray(out), np.asarray(ref),
                               rtol=1e-2, atol=1e-2)

    print("KERNEL_OK")
</pallas_src>

<mosaic_0001>
module attributes {stable_mosaic.version = 11 : i64} {
  func.func @_mla_kernel(%arg0: i32, %arg1: i32, %arg2: memref<1x32x8xf32, #tpu.memory_space<vmem>>, %arg3: memref<2x8xf32, #tpu.memory_space<vmem>>, %arg4: memref<2x8xf32, #tpu.memory_space<vmem>>, %arg5: memref<48x32xf32, #tpu.memory_space<vmem>>, %arg6: memref<48x1xf32, #tpu.memory_space<vmem>>, %arg7: memref<48x16xf32, #tpu.memory_space<vmem>>, %arg8: memref<48x1xf32, #tpu.memory_space<vmem>>, %arg9: memref<64x16xf32, #tpu.memory_space<vmem>>, %arg10: memref<64x1xf32, #tpu.memory_space<vmem>>, %arg11: memref<32x32xf32, #tpu.memory_space<vmem>>, %arg12: memref<32x1xf32, #tpu.memory_space<vmem>>, %arg13: memref<1x32x8xf32, #tpu.memory_space<vmem>>) attributes {dimension_semantics = [#tpu.dimension_semantics<parallel>, #tpu.dimension_semantics<parallel>], iteration_bounds = array<i64: 2, 1>, scalar_prefetch = 0 : i64, scratch_operands = 0 : i64, tpu.core_type = #tpu.core_type<tc>, window_params = [{transform_indices = @transform_0, window_bounds = array<i64: 1, 32, 8>}, {transform_indices = @transform_1, window_bounds = array<i64: 2, 8>}, {transform_indices = @transform_2, window_bounds = array<i64: 2, 8>}, {pipeline_mode = #tpu.pipeline_mode<synchronous>, transform_indices = @transform_3, window_bounds = array<i64: 48, 32>}, {pipeline_mode = #tpu.pipeline_mode<synchronous>, transform_indices = @transform_4, window_bounds = array<i64: 48, 1>}, {pipeline_mode = #tpu.pipeline_mode<synchronous>, transform_indices = @transform_5, window_bounds = array<i64: 48, 16>}, {pipeline_mode = #tpu.pipeline_mode<synchronous>, transform_indices = @transform_6, window_bounds = array<i64: 48, 1>}, {pipeline_mode = #tpu.pipeline_mode<synchronous>, transform_indices = @transform_7, window_bounds = array<i64: 64, 16>}, {pipeline_mode = #tpu.pipeline_mode<synchronous>, transform_indices = @transform_8, window_bounds = array<i64: 64, 1>}, {pipeline_mode = #tpu.pipeline_mode<synchronous>, transform_indices = @transform_9, window_bounds = array<i64: 32, 32>}, {pipeline_mode = #tpu.pipeline_mode<synchronous>, transform_indices = @transform_10, window_bounds = array<i64: 32, 1>}, {transform_indices = @transform_11, window_bounds = array<i64: 1, 32, 8>}]} {
    %c0 = arith.constant 0 : index
    %c0_0 = arith.constant 0 : index
    %c0_1 = arith.constant 0 : index
    %0 = vector.load %arg2[%c0, %c0_0, %c0_1] : memref<1x32x8xf32, #tpu.memory_space<vmem>>, vector<1x32x8xf32>
    %1 = vector.shape_cast %0 : vector<1x32x8xf32> to vector<32x8xf32>
    %c0_2 = arith.constant 0 : index
    %c0_3 = arith.constant 0 : index
    %2 = vector.load %arg5[%c0_2, %c0_3] : memref<48x32xf32, #tpu.memory_space<vmem>>, vector<48x32xf32>
    %cst = arith.constant dense<0.000000e+00> : vector<48x8xf32>
    %3 = tpu.matmul %2, %1, %cst {dimension_numbers = #tpu.dot_dimension_numbers<[1], [0], [0], [1], [0, 0, 1, 1], [], []>, precision = #tpu.contract_precision<fp32>} : vector<48x32xf32>, vector<32x8xf32>, vector<48x8xf32> -> vector<48x8xf32>
    %c0_4 = arith.constant 0 : index
    %c0_5 = arith.constant 0 : index
    %4 = vector.load %arg6[%c0_4, %c0_5] : memref<48x1xf32, #tpu.memory_space<vmem>>, vector<48x1xf32>
    %5 = vector.broadcast %4 : vector<48x1xf32> to vector<48x8xf32>
    %6 = arith.addf %3, %5 : vector<48x8xf32>
    %7 = vector.extract_strided_slice %6 {offsets = [0, 0], sizes = [16, 8], strides = [1, 1]} : vector<48x8xf32> to vector<16x8xf32>
    %8 = vector.extract_strided_slice %6 {offsets = [16, 0], sizes = [16, 8], strides = [1, 1]} : vector<48x8xf32> to vector<16x8xf32>
    %9 = vector.extract_strided_slice %6 {offsets = [32, 0], sizes = [16, 8], strides = [1, 1]} : vector<48x8xf32> to vector<16x8xf32>
    %c0_6 = arith.constant 0 : index
    %c0_7 = arith.constant 0 : index
    %10 = vector.load %arg7[%c0_6, %c0_7] : memref<48x16xf32, #tpu.memory_space<vmem>>, vector<48x16xf32>
    %cst_8 = arith.constant dense<0.000000e+00> : vector<48x8xf32>
    %11 = tpu.matmul %10, %7, %cst_8 {dimension_numbers = #tpu.dot_dimension_numbers<[1], [0], [0], [1], [0, 0, 1, 1], [], []>, precision = #tpu.contract_precision<fp32>} : vector<48x16xf32>, vector<16x8xf32>, vector<48x8xf32> -> vector<48x8xf32>
    %c0_9 = arith.constant 0 : index
    %c0_10 = arith.constant 0 : index
    %12 = vector.load %arg8[%c0_9, %c0_10] : memref<48x1xf32, #tpu.memory_space<vmem>>, vector<48x1xf32>
    %13 = vector.broadcast %12 : vector<48x1xf32> to vector<48x8xf32>
    %14 = arith.addf %11, %13 : vector<48x8xf32>
    %15 = vector.extract_strided_slice %14 {offsets = [0, 0], sizes = [32, 8], strides = [1, 1]} : vector<48x8xf32> to vector<32x8xf32>
    %16 = vector.extract_strided_slice %14 {offsets = [32, 0], sizes = [16, 8], strides = [1, 1]} : vector<48x8xf32> to vector<16x8xf32>
    %c0_11 = arith.constant 0 : index
    %c0_12 = arith.constant 0 : index
    %17 = vector.load %arg9[%c0_11, %c0_12] : memref<64x16xf32, #tpu.memory_space<vmem>>, vector<64x16xf32>
    %cst_13 = arith.constant dense<0.000000e+00> : vector<64x8xf32>
    %18 = tpu.matmul %17, %8, %cst_13 {dimension_numbers = #tpu.dot_dimension_numbers<[1], [0], [0], [1], [0, 0, 1, 1], [], []>, precision = #tpu.contract_precision<fp32>} : vector<64x16xf32>, vector<16x8xf32>, vector<64x8xf32> -> vector<64x8xf32>
    %c0_14 = arith.constant 0 : index
    %c0_15 = arith.constant 0 : index
    %19 = vector.load %arg10[%c0_14, %c0_15] : memref<64x1xf32, #tpu.memory_space<vmem>>, vector<64x1xf32>
    %20 = vector.broadcast %19 : vector<64x1xf32> to vector<64x8xf32>
    %21 = arith.addf %18, %20 : vector<64x8xf32>
    %22 = vector.extract_strided_slice %21 {offsets = [0, 0], sizes = [32, 8], strides = [1, 1]} : vector<64x8xf32> to vector<32x8xf32>
    %23 = vector.extract_strided_slice %21 {offsets = [32, 0], sizes = [32, 8], strides = [1, 1]} : vector<64x8xf32> to vector<32x8xf32>
    %c0_16 = arith.constant 0 : index
    %c0_17 = arith.constant 0 : index
    %24 = vector.load %arg3[%c0_16, %c0_17] : memref<2x8xf32, #tpu.memory_space<vmem>>, vector<2x8xf32>
    %25 = vector.shape_cast %24 : vector<2x8xf32> to vector<1x2x8xf32>
    %c0_18 = arith.constant 0 : index
    %c0_19 = arith.constant 0 : index
    %26 = vector.load %arg4[%c0_18, %c0_19] : memref<2x8xf32, #tpu.memory_space<vmem>>, vector<2x8xf32>
    %27 = vector.shape_cast %26 : vector<2x8xf32> to vector<1x2x8xf32>
    %28 = vector.extract_strided_slice %16 {offsets = [0, 0], sizes = [8, 8], strides = [1, 1]} : vector<16x8xf32> to vector<8x8xf32>
    %29 = vector.shape_cast %28 : vector<8x8xf32> to vector<4x2x8xf32>
    %30 = vector.extract_strided_slice %16 {offsets = [8, 0], sizes = [8, 8], strides = [1, 1]} : vector<16x8xf32> to vector<8x8xf32>
    %31 = vector.shape_cast %30 : vector<8x8xf32> to vector<4x2x8xf32>
    %32 = vector.broadcast %25 : vector<1x2x8xf32> to vector<4x2x8xf32>
    %33 = arith.mulf %29, %32 : vector<4x2x8xf32>
    %34 = vector.broadcast %27 : vector<1x2x8xf32> to vector<4x2x8xf32>
    %35 = arith.mulf %31, %34 : vector<4x2x8xf32>
    %36 = arith.subf %33, %35 : vector<4x2x8xf32>
    %37 = vector.broadcast %25 : vector<1x2x8xf32> to vector<4x2x8xf32>
    %38 = arith.mulf %31, %37 : vector<4x2x8xf32>
    %39 = vector.broadcast %27 : vector<1x2x8xf32> to vector<4x2x8xf32>
    %40 = arith.mulf %29, %39 : vector<4x2x8xf32>
    %41 = arith.addf %38, %40 : vector<4x2x8xf32>
    %42 = vector.extract_strided_slice %9 {offsets = [0, 0], sizes = [8, 8], strides = [1, 1]} : vector<16x8xf32> to vector<8x8xf32>
    %43 = vector.shape_cast %42 : vector<8x8xf32> to vector<4x2x8xf32>
    %44 = vector.extract_strided_slice %9 {offsets = [8, 0], sizes = [8, 8], strides = [1, 1]} : vector<16x8xf32> to vector<8x8xf32>
    %45 = vector.shape_cast %44 : vector<8x8xf32> to vector<4x2x8xf32>
    %46 = vector.broadcast %25 : vector<1x2x8xf32> to vector<4x2x8xf32>
    %47 = arith.mulf %43, %46 : vector<4x2x8xf32>
    %48 = vector.broadcast %27 : vector<1x2x8xf32> to vector<4x2x8xf32>
    %49 = arith.mulf %45, %48 : vector<4x2x8xf32>
    %50 = arith.subf %47, %49 : vector<4x2x8xf32>
    %51 = vector.broadcast %25 : vector<1x2x8xf32> to vector<4x2x8xf32>
    %52 = arith.mulf %45, %51 : vector<4x2x8xf32>
    %53 = vector.broadcast %27 : vector<1x2x8xf32> to vector<4x2x8xf32>
    %54 = arith.mulf %43, %53 : vector<4x2x8xf32>
    %55 = arith.addf %52, %54 : vector<4x2x8xf32>
    %56 = vector.shape_cast %15 : vector<32x8xf32> to vector<4x8x8xf32>
    %57 = vector.shape_cast %22 : vector<32x8xf32> to vector<4x8x8xf32>
    %58 = vector.shape_cast %23 : vector<32x8xf32> to vector<4x8x8xf32>
    %59 = vector.extract_strided_slice %57 {offsets = [0, 0, 0], sizes = [1, 8, 8], strides = [1, 1, 1]} : vector<4x8x8xf32> to vector<1x8x8xf32>
    %60 = vector.shape_cast %59 : vector<1x8x8xf32> to vector<8x8xf32>
    %61 = vector.shape_cast %60 : vector<8x8xf32> to vector<1x8x8xf32>
    %62 = vector.broadcast %61 : vector<1x8x8xf32> to vector<4x8x8xf32>
    %63 = arith.mulf %56, %62 : vector<4x8x8xf32>
    %cst_20 = arith.constant dense<0.000000e+00> : vector<4x8xf32>
    %64 = vector.multi_reduction <add>, %63, %cst_20 [1] : vector<4x8x8xf32> to vector<4x8xf32>
    %65 = vector.extract_strided_slice %50 {offsets = [0, 0, 0], sizes = [1, 2, 8], strides = [1, 1, 1]} : vector<4x2x8xf32> to vector<1x2x8xf32>
    %66 = vector.shape_cast %65 : vector<1x2x8xf32> to vector<2x8xf32>
    %67 = vector.shape_cast %66 : vector<2x8xf32> to vector<1x2x8xf32>
    %68 = vector.broadcast %67 : vector<1x2x8xf32> to vector<4x2x8xf32>
    %69 = arith.mulf %36, %68 : vector<4x2x8xf32>
    %cst_21 = arith.constant dense<0.000000e+00> : vector<4x8xf32>
    %70 = vector.multi_reduction <add>, %69, %cst_21 [1] : vector<4x2x8xf32> to vector<4x8xf32>
    %71 = arith.addf %64, %70 : vector<4x8xf32>
    %72 = vector.extract_strided_slice %55 {offsets = [0, 0, 0], sizes = [1, 2, 8], strides = [1, 1, 1]} : vector<4x2x8xf32> to vector<1x2x8xf32>
    %73 = vector.shape_cast %72 : vector<1x2x8xf32> to vector<2x8xf32>
    %74 = vector.shape_cast %73 : vector<2x8xf32> to vector<1x2x8xf32>
    %75 = vector.broadcast %74 : vector<1x2x8xf32> to vector<4x2x8xf32>
    %76 = arith.mulf %41, %75 : vector<4x2x8xf32>
    %cst_22 = arith.constant dense<0.000000e+00> : vector<4x8xf32>
    %77 = vector.multi_reduction <add>, %76, %cst_22 [1] : vector<4x2x8xf32> to vector<4x8xf32>
    %78 = arith.addf %71, %77 : vector<4x8xf32>
    %79 = vector.extract_strided_slice %57 {offsets = [1, 0, 0], sizes = [1, 8, 8], strides = [1, 1, 1]} : vector<4x8x8xf32> to vector<1x8x8xf32>
    %80 = vector.shape_cast %79 : vector<1x8x8xf32> to vector<8x8xf32>
    %81 = vector.shape_cast %80 : vector<8x8xf32> to vector<1x8x8xf32>
    %82 = vector.broadcast %81 : vector<1x8x8xf32> to vector<4x8x8xf32>
    %83 = arith.mulf %56, %82 : vector<4x8x8xf32>
    %cst_23 = arith.constant dense<0.000000e+00> : vector<4x8xf32>
    %84 = vector.multi_reduction <add>, %83, %cst_23 [1] : vector<4x8x8xf32> to vector<4x8xf32>
    %85 = vector.extract_strided_slice %50 {offsets = [1, 0, 0], sizes = [1, 2, 8], strides = [1, 1, 1]} : vector<4x2x8xf32> to vector<1x2x8xf32>
    %86 = vector.shape_cast %85 : vector<1x2x8xf32> to vector<2x8xf32>
    %87 = vector.shape_cast %86 : vector<2x8xf32> to vector<1x2x8xf32>
    %88 = vector.broadcast %87 : vector<1x2x8xf32> to vector<4x2x8xf32>
    %89 = arith.mulf %36, %88 : vector<4x2x8xf32>
    %cst_24 = arith.constant dense<0.000000e+00> : vector<4x8xf32>
    %90 = vector.multi_reduction <add>, %89, %cst_24 [1] : vector<4x2x8xf32> to vector<4x8xf32>
    %91 = arith.addf %84, %90 : vector<4x8xf32>
    %92 = vector.extract_strided_slice %55 {offsets = [1, 0, 0], sizes = [1, 2, 8], strides = [1, 1, 1]} : vector<4x2x8xf32> to vector<1x2x8xf32>
    %93 = vector.shape_cast %92 : vector<1x2x8xf32> to vector<2x8xf32>
    %94 = vector.shape_cast %93 : vector<2x8xf32> to vector<1x2x8xf32>
    %95 = vector.broadcast %94 : vector<1x2x8xf32> to vector<4x2x8xf32>
    %96 = arith.mulf %41, %95 : vector<4x2x8xf32>
    %cst_25 = arith.constant dense<0.000000e+00> : vector<4x8xf32>
    %97 = vector.multi_reduction <add>, %96, %cst_25 [1] : vector<4x2x8xf32> to vector<4x8xf32>
    %98 = arith.addf %91, %97 : vector<4x8xf32>
    %99 = vector.extract_strided_slice %57 {offsets = [2, 0, 0], sizes = [1, 8, 8], strides = [1, 1, 1]} : vector<4x8x8xf32> to vector<1x8x8xf32>
    %100 = vector.shape_cast %99 : vector<1x8x8xf32> to vector<8x8xf32>
    %101 = vector.shape_cast %100 : vector<8x8xf32> to vector<1x8x8xf32>
    %102 = vector.broadcast %101 : vector<1x8x8xf32> to vector<4x8x8xf32>
    %103 = arith.mulf %56, %102 : vector<4x8x8xf32>
    %cst_26 = arith.constant dense<0.000000e+00> : vector<4x8xf32>
    %104 = vector.multi_reduction <add>, %103, %cst_26 [1] : vector<4x8x8xf32> to vector<4x8xf32>
    %105 = vector.extract_strided_slice %50 {offsets = [2, 0, 0], sizes = [1, 2, 8], strides = [1, 1, 1]} : vector<4x2x8xf32> to vector<1x2x8xf32>
    %106 = vector.shape_cast %105 : vector<1x2x8xf32> to vector<2x8xf32>
    %107 = vector.shape_cast %106 : vector<2x8xf32> to vector<1x2x8xf32>
    %108 = vector.broadcast %107 : vector<1x2x8xf32> to vector<4x2x8xf32>
    %109 = arith.mulf %36, %108 : vector<4x2x8xf32>
    %cst_27 = arith.constant dense<0.000000e+00> : vector<4x8xf32>
    %110 = vector.multi_reduction <add>, %109, %cst_27 [1] : vector<4x2x8xf32> to vector<4x8xf32>
    %111 = arith.addf %104, %110 : vector<4x8xf32>
    %112 = vector.extract_strided_slice %55 {offsets = [2, 0, 0], sizes = [1, 2, 8], strides = [1, 1, 1]} : vector<4x2x8xf32> to vector<1x2x8xf32>
    %113 = vector.shape_cast %112 : vector<1x2x8xf32> to vector<2x8xf32>
    %114 = vector.shape_cast %113 : vector<2x8xf32> to vector<1x2x8xf32>
    %115 = vector.broadcast %114 : vector<1x2x8xf32> to vector<4x2x8xf32>
    %116 = arith.mulf %41, %115 : vector<4x2x8xf32>
    %cst_28 = arith.constant dense<0.000000e+00> : vector<4x8xf32>
    %117 = vector.multi_reduction <add>, %116, %cst_28 [1] : vector<4x2x8xf32> to vector<4x8xf32>
    %118 = arith.addf %111, %117 : vector<4x8xf32>
    %119 = vector.extract_strided_slice %57 {offsets = [3, 0, 0], sizes = [1, 8, 8], strides = [1, 1, 1]} : vector<4x8x8xf32> to vector<1x8x8xf32>
    %120 = vector.shape_cast %119 : vector<1x8x8xf32> to vector<8x8xf32>
    %121 = vector.shape_cast %120 : vector<8x8xf32> to vector<1x8x8xf32>
    %122 = vector.broadcast %121 : vector<1x8x8xf32> to vector<4x8x8xf32>
    %123 = arith.mulf %56, %122 : vector<4x8x8xf32>
    %cst_29 = arith.constant dense<0.000000e+00> : vector<4x8xf32>
    %124 = vector.multi_reduction <add>, %123, %cst_29 [1] : vector<4x8x8xf32> to vector<4x8xf32>
    %125 = vector.extract_strided_slice %50 {offsets = [3, 0, 0], sizes = [1, 2, 8], strides = [1, 1, 1]} : vector<4x2x8xf32> to vector<1x2x8xf32>
    %126 = vector.shape_cast %125 : vector<1x2x8xf32> to vector<2x8xf32>
    %127 = vector.shape_cast %126 : vector<2x8xf32> to vector<1x2x8xf32>
    %128 = vector.broadcast %127 : vector<1x2x8xf32> to vector<4x2x8xf32>
    %129 = arith.mulf %36, %128 : vector<4x2x8xf32>
    %cst_30 = arith.constant dense<0.000000e+00> : vector<4x8xf32>
    %130 = vector.multi_reduction <add>, %129, %cst_30 [1] : vector<4x2x8xf32> to vector<4x8xf32>
    %131 = arith.addf %124, %130 : vector<4x8xf32>
    %132 = vector.extract_strided_slice %55 {offsets = [3, 0, 0], sizes = [1, 2, 8], strides = [1, 1, 1]} : vector<4x2x8xf32> to vector<1x2x8xf32>
    %133 = vector.shape_cast %132 : vector<1x2x8xf32> to vector<2x8xf32>
    %134 = vector.shape_cast %133 : vector<2x8xf32> to vector<1x2x8xf32>
    %135 = vector.broadcast %134 : vector<1x2x8xf32> to vector<4x2x8xf32>
    %136 = arith.mulf %41, %135 : vector<4x2x8xf32>
    %cst_31 = arith.constant dense<0.000000e+00> : vector<4x8xf32>
    %137 = vector.multi_reduction <add>, %136, %cst_31 [1] : vector<4x2x8xf32> to vector<4x8xf32>
    %138 = arith.addf %131, %137 : vector<4x8xf32>
    %139 = arith.maximumf %78, %98 : vector<4x8xf32>
    %140 = arith.maximumf %139, %118 : vector<4x8xf32>
    %141 = arith.maximumf %140, %138 : vector<4x8xf32>
    %142 = arith.subf %78, %141 : vector<4x8xf32>
    %143 = math.exp %142 : vector<4x8xf32>
    %144 = arith.subf %98, %141 : vector<4x8xf32>
    %145 = math.exp %144 : vector<4x8xf32>
    %146 = arith.subf %118, %141 : vector<4x8xf32>
    %147 = math.exp %146 : vector<4x8xf32>
    %148 = arith.subf %138, %141 : vector<4x8xf32>
    %149 = math.exp %148 : vector<4x8xf32>
    %150 = arith.addf %143, %145 : vector<4x8xf32>
    %151 = arith.addf %150, %147 : vector<4x8xf32>
    %152 = arith.addf %151, %149 : vector<4x8xf32>
    %cst_32 = arith.constant 1.000000e+00 : f32
    %153 = vector.broadcast %cst_32 : f32 to vector<4x8xf32>
    %154 = arith.divf %153, %152 : vector<4x8xf32>
    %cst_33 = arith.constant 0.000000e+00 : f32
    %155 = vector.broadcast %cst_33 : f32 to vector<4x8x8xf32>
    %156 = arith.mulf %143, %154 : vector<4x8xf32>
    %157 = vector.shape_cast %156 : vector<4x8xf32> to vector<4x1x8xf32>
    %158 = vector.extract_strided_slice %58 {offsets = [0, 0, 0], sizes = [1, 8, 8], strides = [1, 1, 1]} : vector<4x8x8xf32> to vector<1x8x8xf32>
    %159 = vector.shape_cast %158 : vector<1x8x8xf32> to vector<8x8xf32>
    %160 = vector.shape_cast %159 : vector<8x8xf32> to vector<1x8x8xf32>
    %161 = vector.broadcast %157 : vector<4x1x8xf32> to vector<4x8x8xf32>
    %162 = vector.broadcast %160 : vector<1x8x8xf32> to vector<4x8x8xf32>
    %163 = arith.mulf %161, %162 : vector<4x8x8xf32>
    %164 = arith.addf %155, %163 : vector<4x8x8xf32>
    %165 = arith.mulf %145, %154 : vector<4x8xf32>
    %166 = vector.shape_cast %165 : vector<4x8xf32> to vector<4x1x8xf32>
    %167 = vector.extract_strided_slice %58 {offsets = [1, 0, 0], sizes = [1, 8, 8], strides = [1, 1, 1]} : vector<4x8x8xf32> to vector<1x8x8xf32>
    %168 = vector.shape_cast %167 : vector<1x8x8xf32> to vector<8x8xf32>
    %169 = vector.shape_cast %168 : vector<8x8xf32> to vector<1x8x8xf32>
    %170 = vector.broadcast %166 : vector<4x1x8xf32> to vector<4x8x8xf32>
    %171 = vector.broadcast %169 : vector<1x8x8xf32> to vector<4x8x8xf32>
    %172 = arith.mulf %170, %171 : vector<4x8x8xf32>
    %173 = arith.addf %164, %172 : vector<4x8x8xf32>
    %174 = arith.mulf %147, %154 : vector<4x8xf32>
    %175 = vector.shape_cast %174 : vector<4x8xf32> to vector<4x1x8xf32>
    %176 = vector.extract_strided_slice %58 {offsets = [2, 0, 0], sizes = [1, 8, 8], strides = [1, 1, 1]} : vector<4x8x8xf32> to vector<1x8x8xf32>
    %177 = vector.shape_cast %176 : vector<1x8x8xf32> to vector<8x8xf32>
    %178 = vector.shape_cast %177 : vector<8x8xf32> to vector<1x8x8xf32>
    %179 = vector.broadcast %175 : vector<4x1x8xf32> to vector<4x8x8xf32>
    %180 = vector.broadcast %178 : vector<1x8x8xf32> to vector<4x8x8xf32>
    %181 = arith.mulf %179, %180 : vector<4x8x8xf32>
    %182 = arith.addf %173, %181 : vector<4x8x8xf32>
    %183 = arith.mulf %149, %154 : vector<4x8xf32>
    %184 = vector.shape_cast %183 : vector<4x8xf32> to vector<4x1x8xf32>
    %185 = vector.extract_strided_slice %58 {offsets = [3, 0, 0], sizes = [1, 8, 8], strides = [1, 1, 1]} : vector<4x8x8xf32> to vector<1x8x8xf32>
    %186 = vector.shape_cast %185 : vector<1x8x8xf32> to vector<8x8xf32>
    %187 = vector.shape_cast %186 : vector<8x8xf32> to vector<1x8x8xf32>
    %188 = vector.broadcast %184 : vector<4x1x8xf32> to vector<4x8x8xf32>
    %189 = vector.broadcast %187 : vector<1x8x8xf32> to vector<4x8x8xf32>
    %190 = arith.mulf %188, %189 : vector<4x8x8xf32>
    %191 = arith.addf %182, %190 : vector<4x8x8xf32>
    %c0_34 = arith.constant 0 : index
    %c0_35 = arith.constant 0 : index
    %192 = vector.load %arg11[%c0_34, %c0_35] : memref<32x32xf32, #tpu.memory_space<vmem>>, vector<32x32xf32>
    %193 = vector.shape_cast %191 : vector<4x8x8xf32> to vector<32x8xf32>
    %cst_36 = arith.constant dense<0.000000e+00> : vector<32x8xf32>
    %194 = tpu.matmul %192, %193, %cst_36 {dimension_numbers = #tpu.dot_dimension_numbers<[1], [0], [0], [1], [0, 0, 1, 1], [], []>, precision = #tpu.contract_precision<fp32>} : vector<32x32xf32>, vector<32x8xf32>, vector<32x8xf32> -> vector<32x8xf32>
    %c0_37 = arith.constant 0 : index
    %c0_38 = arith.constant 0 : index
    %195 = vector.load %arg12[%c0_37, %c0_38] : memref<32x1xf32, #tpu.memory_space<vmem>>, vector<32x1xf32>
    %196 = vector.broadcast %195 : vector<32x1xf32> to vector<32x8xf32>
    %197 = arith.addf %194, %196 : vector<32x8xf32>
    %c0_39 = arith.constant 0 : index
    %c0_40 = arith.constant 0 : index
    %c0_41 = arith.constant 0 : index
    %198 = vector.load %arg13[%c0_39, %c0_40, %c0_41] : memref<1x32x8xf32, #tpu.memory_space<vmem>>, vector<1x32x8xf32>
    %199 = vector.shape_cast %198 : vector<1x32x8xf32> to vector<32x8xf32>
    %200 = vector.shape_cast %197 : vector<32x8xf32> to vector<1x32x8xf32>
    tpu.vector_store %arg13[%c0_39, %c0_40, %c0_41], %200 {strides = array<i32>} : memref<1x32x8xf32, #tpu.memory_space<vmem>>, vector<1x32x8xf32>,
    return
  }
  func.func @transform_0(%arg0: i32, %arg1: i32) -> (i32, i32, i32) {
    %c0_i32 = arith.constant 0 : i32
    %c0_i32_0 = arith.constant 0 : i32
    return %arg0, %c0_i32, %arg1 : i32, i32, i32
  }
  func.func @transform_1(%arg0: i32, %arg1: i32) -> (i32, i32) {
    %c0_i32 = arith.constant 0 : i32
    %c0_i32_0 = arith.constant 0 : i32
    return %c0_i32, %arg1 : i32, i32
  }
  func.func @transform_2(%arg0: i32, %arg1: i32) -> (i32, i32) {
    %c0_i32 = arith.constant 0 : i32
    %c0_i32_0 = arith.constant 0 : i32
    return %c0_i32, %arg1 : i32, i32
  }
  func.func @transform_3(%arg0: i32, %arg1: i32) -> (i32, i32) {
    %c0_i32 = arith.constant 0 : i32
    %c0_i32_0 = arith.constant 0 : i32
    %c0_i32_1 = arith.constant 0 : i32
    return %c0_i32, %c0_i32_0 : i32, i32
  }
  func.func @transform_4(%arg0: i32, %arg1: i32) -> (i32, i32) {
    %c0_i32 = arith.constant 0 : i32
    %c0_i32_0 = arith.constant 0 : i32
    %c0_i32_1 = arith.constant 0 : i32
    return %c0_i32, %c0_i32_0 : i32, i32
  }
  func.func @transform_5(%arg0: i32, %arg1: i32) -> (i32, i32) {
    %c0_i32 = arith.constant 0 : i32
    %c0_i32_0 = arith.constant 0 : i32
    %c0_i32_1 = arith.constant 0 : i32
    return %c0_i32, %c0_i32_0 : i32, i32
  }
  func.func @transform_6(%arg0: i32, %arg1: i32) -> (i32, i32) {
    %c0_i32 = arith.constant 0 : i32
    %c0_i32_0 = arith.constant 0 : i32
    %c0_i32_1 = arith.constant 0 : i32
    return %c0_i32, %c0_i32_0 : i32, i32
  }
  func.func @transform_7(%arg0: i32, %arg1: i32) -> (i32, i32) {
    %c0_i32 = arith.constant 0 : i32
    %c0_i32_0 = arith.constant 0 : i32
    %c0_i32_1 = arith.constant 0 : i32
    return %c0_i32, %c0_i32_0 : i32, i32
  }
  func.func @transform_8(%arg0: i32, %arg1: i32) -> (i32, i32) {
    %c0_i32 = arith.constant 0 : i32
    %c0_i32_0 = arith.constant 0 : i32
    %c0_i32_1 = arith.constant 0 : i32
    return %c0_i32, %c0_i32_0 : i32, i32
  }
  func.func @transform_9(%arg0: i32, %arg1: i32) -> (i32, i32) {
    %c0_i32 = arith.constant 0 : i32
    %c0_i32_0 = arith.constant 0 : i32
    %c0_i32_1 = arith.constant 0 : i32
    return %c0_i32, %c0_i32_0 : i32, i32
  }
  func.func @transform_10(%arg0: i32, %arg1: i32) -> (i32, i32) {
    %c0_i32 = arith.constant 0 : i32
    %c0_i32_0 = arith.constant 0 : i32
    %c0_i32_1 = arith.constant 0 : i32
    return %c0_i32, %c0_i32_0 : i32, i32
  }
  func.func @transform_11(%arg0: i32, %arg1: i32) -> (i32, i32, i32) {
    %c0_i32 = arith.constant 0 : i32
    %c0_i32_0 = arith.constant 0 : i32
    return %arg0, %c0_i32, %arg1 : i32, i32, i32
  }
}

</mosaic_0001>

<llo_original>
// kernel: tpu_custom_call.1
$region0: #{tpu_custom_call.1}
  #allocation0 [shape = 'u32[]', space=smem, size = 0x4, offset = 0x4, fixed_abs, tag = 'smem constant byte address 0x4 - core index']
  #allocation1 [shape = 'u32[144,128]{1,0:T(1,128)}', space=vmem, size = 0x12000, scoped, tag = 'internal scratch']
  %s0 = inlined_call_operand.vmem [shape: f32[2,32,8], index: 0, kind: input, shape index: {}]
  %s1 = inlined_call_operand.vmem [shape: f32[2,8], index: 1, kind: input, shape index: {}]
  %s2 = inlined_call_operand.vmem [shape: f32[2,8], index: 2, kind: input, shape index: {}]
  %s3 = inlined_call_operand.vmem [shape: f32[48,32], index: 3, kind: input, shape index: {}]
  %s4 = inlined_call_operand.vmem [shape: f32[48,1], index: 4, kind: input, shape index: {}]
  %s5 = inlined_call_operand.vmem [shape: f32[48,16], index: 5, kind: input, shape index: {}]
  %s6 = inlined_call_operand.vmem [shape: f32[48,1], index: 6, kind: input, shape index: {}]
  %s7 = inlined_call_operand.vmem [shape: f32[64,16], index: 7, kind: input, shape index: {}]
  %s8 = inlined_call_operand.vmem [shape: f32[64,1], index: 8, kind: input, shape index: {}]
  %s9 = inlined_call_operand.vmem [shape: f32[32,32], index: 9, kind: input, shape index: {}]
  %s10 = inlined_call_operand.vmem [shape: f32[32,1], index: 10, kind: input, shape index: {}]
  %s11 = inlined_call_operand.vmem [shape: f32[2,32,8], index: 11, kind: output, shape index: {}]
  %s12 = sld [smem:[#allocation0]]
  $region77: #{tpu_custom_call.1} parent=0
    _
  %s14 = ssub.s32 1, %s12
  %s15 = scalar_select 0, %s14, %s12
  loop: start=0, step=1, limit=4
  $region2: #{tpu_custom_call.1} parent=0 // loop_pre_header
    _
  $region3: #{tpu_custom_call.1} parent=0 // loop_header
    %s17 = sphi 0, %s21
    %p18 = scmp.ge.s32.totalorder %s17, 4
    %s24 = sphi 0, %s36
    %s25 = sphi 0, %s32
    %s26 = sphi 0, %s24
    %s27 = sphi 0, %s25
    %s28 = sphi 0, %s26
    %s29 = sphi 0, %s27
    %s41 = sphi 0, %s43
    %s44 = sphi 0, %s41
    %s45 = sphi 0, %s44
    %s61 = sphi 0, %s45
    %s67 = sphi 0, %s69
    %s70 = sphi 0, %s67
    %s71 = sphi 0, %s70
    %s87 = sphi 0, %s71
    %s93 = sphi 0, %s95
    %s96 = sphi 0, %s93
    %s97 = sphi 0, %s96
    %s113 = sphi 0, %s97
    %s117 = sphi 0, %s117
    %s119 = sphi 0, %s117
    %s120 = sphi 0, %s119
    %s134 = sphi 0, %s120
    %s138 = sphi 0, %s138
    %s140 = sphi 0, %s138
    %s141 = sphi 0, %s140
    %s155 = sphi 0, %s141
    %s159 = sphi 0, %s159
    %s161 = sphi 0, %s159
    %s162 = sphi 0, %s161
    %s176 = sphi 0, %s162
    %s180 = sphi 0, %s180
    %s182 = sphi 0, %s180
    %s183 = sphi 0, %s182
    %s197 = sphi 0, %s183
    %s201 = sphi 0, %s201
    %s203 = sphi 0, %s201
    %s204 = sphi 0, %s203
    %s218 = sphi 0, %s204
    %s222 = sphi 0, %s222
    %s224 = sphi 0, %s222
    %s225 = sphi 0, %s224
    %s239 = sphi 0, %s225
    %s243 = sphi 0, %s243
    %s245 = sphi 0, %s243
    %s246 = sphi 0, %s245
    %s260 = sphi 0, %s246
    %s264 = sphi 0, %s264
    %s266 = sphi 0, %s264
    %s267 = sphi 0, %s266
    %s281 = sphi 0, %s267
    %s289 = sphi 0, %s291
    %s292 = sphi 0, %s289
    %s293 = sphi 0, %s292
    %s309 = sphi 0, %s293
  $region4: #{tpu_custom_call.1} parent=0 // loop_header_branch
    %20 = sbr.rel (%p18) target = $region8
  $region5: #{tpu_custom_call.1} parent=0 // loop_body
    %s22 = ssub.s32 %s17, 1
    %s23 = ssub.s32 %s17, 2
    %s30 = sadd.s32 1, %s25
    %p31 = scmp.ge.s32.totalorder %s30, 1
    %s32 = scalar_select %p31, 0, %s30
    %s33 = sadd.s32 1, %s24
    %s34 = scalar_select %p31, %s33, %s24
    %p35 = scmp.ge.s32.totalorder %s34, 2
    %s36 = scalar_select %p35, 0, %s34
    %s37 = ssub.s32 %s24, %s36
    %s38 = ssub.s32 %s25, %s32
    %s39 = sor.u32 %s37, %s38
    %p40 = scmp.eq.s32.totalorder %s39, 0
    %s42 = sadd.s32 %s41, 1
    %s43 = scalar_select %p40, %s41, %s42
    %p46 = pneg %p40
    %p47 = scmp.eq.s32.totalorder %s17, 1
    %p48 = por %p46, %p47
    %p49 = scmp.ne.s32.totalorder %s41, %s44
    %p50 = scmp.eq.s32.totalorder %s17, 0
    %p51 = por %p49, %p50
    %p52 = scmp.ne.s32.totalorder %s41, %s44
    %p53 = scmp.eq.s32.totalorder %s22, 1
    %p54 = por %p52, %p53
    %p55 = scmp.ne.s32.totalorder %s44, %s45
    %p56 = scmp.eq.s32.totalorder %s22, 0
    %p57 = por %p55, %p56
    %p58 = scmp.ne.s32.totalorder %s44, %s45
    %p59 = scmp.eq.s32.totalorder %s23, 1
    %p60 = por %p58, %p59
    %p62 = scmp.ne.s32.totalorder %s45, %s61
    %p63 = scmp.eq.s32.totalorder %s23, 0
    %p64 = por %p62, %p63
    %s65 = ssub.s32 %s25, %s32
    %p66 = scmp.eq.s32.totalorder %s65, 0
    %s68 = sadd.s32 %s67, 1
    %s69 = scalar_select %p66, %s67, %s68
    %p72 = pneg %p66
    %p73 = scmp.eq.s32.totalorder %s17, 1
    %p74 = por %p72, %p73
    %p75 = scmp.ne.s32.totalorder %s67, %s70
    %p76 = scmp.eq.s32.totalorder %s17, 0
    %p77 = por %p75, %p76
    %p78 = scmp.ne.s32.totalorder %s67, %s70
    %p79 = scmp.eq.s32.totalorder %s22, 1
    %p80 = por %p78, %p79
    %p81 = scmp.ne.s32.totalorder %s70, %s71
    %p82 = scmp.eq.s32.totalorder %s22, 0
    %p83 = por %p81, %p82
    %p84 = scmp.ne.s32.totalorder %s70, %s71
    %p85 = scmp.eq.s32.totalorder %s23, 1
    %p86 = por %p84, %p85
    %p88 = scmp.ne.s32.totalorder %s71, %s87
    %p89 = scmp.eq.s32.totalorder %s23, 0
    %p90 = por %p88, %p89
    %s91 = ssub.s32 %s25, %s32
    %p92 = scmp.eq.s32.totalorder %s91, 0
    %s94 = sadd.s32 %s93, 1
    %s95 = scalar_select %p92, %s93, %s94
    %p98 = pneg %p92
    %p99 = scmp.eq.s32.totalorder %s17, 1
    %p100 = por %p98, %p99
    %p101 = scmp.ne.s32.totalorder %s93, %s96
    %p102 = scmp.eq.s32.totalorder %s17, 0
    %p103 = por %p101, %p102
    %p104 = scmp.ne.s32.totalorder %s93, %s96
    %p105 = scmp.eq.s32.totalorder %s22, 1
    %p106 = por %p104, %p105
    %p107 = scmp.ne.s32.totalorder %s96, %s97
    %p108 = scmp.eq.s32.totalorder %s22, 0
    %p109 = por %p107, %p108
    %p110 = scmp.ne.s32.totalorder %s96, %s97
    %p111 = scmp.eq.s32.totalorder %s23, 1
    %p112 = por %p110, %p111
    %p114 = scmp.ne.s32.totalorder %s97, %s113
    %p115 = scmp.eq.s32.totalorder %s23, 0
    %p116 = por %p114, %p115
    %s118 = sadd.s32 %s117, 1
    %p121 = scmp.eq.s32.totalorder %s17, 1
    %p122 = scmp.ne.s32.totalorder %s117, %s119
    %p123 = scmp.eq.s32.totalorder %s17, 0
    %p124 = por %p122, %p123
    %p125 = scmp.ne.s32.totalorder %s117, %s119
    %p126 = scmp.eq.s32.totalorder %s22, 1
    %p127 = por %p125, %p126
    %p128 = scmp.ne.s32.totalorder %s119, %s120
    %p129 = scmp.eq.s32.totalorder %s22, 0
    %p130 = por %p128, %p129
    %p131 = scmp.ne.s32.totalorder %s119, %s120
    %p132 = scmp.eq.s32.totalorder %s23, 1
    %p133 = por %p131, %p132
    %p135 = scmp.ne.s32.totalorder %s120, %s134
    %p136 = scmp.eq.s32.totalorder %s23, 0
    %p137 = por %p135, %p136
    %s139 = sadd.s32 %s138, 1
    %p142 = scmp.eq.s32.totalorder %s17, 1
    %p143 = scmp.ne.s32.totalorder %s138, %s140
    %p144 = scmp.eq.s32.totalorder %s17, 0
    %p145 = por %p143, %p144
    %p146 = scmp.ne.s32.totalorder %s138, %s140
    %p147 = scmp.eq.s32.totalorder %s22, 1
    %p148 = por %p146, %p147
    %p149 = scmp.ne.s32.totalorder %s140, %s141
    %p150 = scmp.eq.s32.totalorder %s22, 0
    %p151 = por %p149, %p150
    %p152 = scmp.ne.s32.totalorder %s140, %s141
    %p153 = scmp.eq.s32.totalorder %s23, 1
    %p154 = por %p152, %p153
    %p156 = scmp.ne.s32.totalorder %s141, %s155
    %p157 = scmp.eq.s32.totalorder %s23, 0
    %p158 = por %p156, %p157
    %s160 = sadd.s32 %s159, 1
    %p163 = scmp.eq.s32.totalorder %s17, 1
    %p164 = scmp.ne.s32.totalorder %s159, %s161
    %p165 = scmp.eq.s32.totalorder %s17, 0
    %p166 = por %p164, %p165
    %p167 = scmp.ne.s32.totalorder %s159, %s161
    %p168 = scmp.eq.s32.totalorder %s22, 1
    %p169 = por %p167, %p168
    %p170 = scmp.ne.s32.totalorder %s161, %s162
    %p171 = scmp.eq.s32.totalorder %s22, 0
    %p172 = por %p170, %p171
    %p173 = scmp.ne.s32.totalorder %s161, %s162
    %p174 = scmp.eq.s32.totalorder %s23, 1
    %p175 = por %p173, %p174
    %p177 = scmp.ne.s32.totalorder %s162, %s176
    %p178 = scmp.eq.s32.totalorder %s23, 0
    %p179 = por %p177, %p178
    %s181 = sadd.s32 %s180, 1
    %p184 = scmp.eq.s32.totalorder %s17, 1
    %p185 = scmp.ne.s32.totalorder %s180, %s182
    %p186 = scmp.eq.s32.totalorder %s17, 0
    %p187 = por %p185, %p186
    %p188 = scmp.ne.s32.totalorder %s180, %s182
    %p189 = scmp.eq.s32.totalorder %s22, 1
    %p190 = por %p188, %p189
    %p191 = scmp.ne.s32.totalorder %s182, %s183
    %p192 = scmp.eq.s32.totalorder %s22, 0
    %p193 = por %p191, %p192
    %p194 = scmp.ne.s32.totalorder %s182, %s183
    %p195 = scmp.eq.s32.totalorder %s23, 1
    %p196 = por %p194, %p195
    %p198 = scmp.ne.s32.totalorder %s183, %s197
    %p199 = scmp.eq.s32.totalorder %s23, 0
    %p200 = por %p198, %p199
    %s202 = sadd.s32 %s201, 1
    %p205 = scmp.eq.s32.totalorder %s17, 1
    %p206 = scmp.ne.s32.totalorder %s201, %s203
    %p207 = scmp.eq.s32.totalorder %s17, 0
    %p208 = por %p206, %p207
    %p209 = scmp.ne.s32.totalorder %s201, %s203
    %p210 = scmp.eq.s32.totalorder %s22, 1
    %p211 = por %p209, %p210
    %p212 = scmp.ne.s32.totalorder %s203, %s204
    %p213 = scmp.eq.s32.totalorder %s22, 0
    %p214 = por %p212, %p213
    %p215 = scmp.ne.s32.totalorder %s203, %s204
    %p216 = scmp.eq.s32.totalorder %s23, 1
    %p217 = por %p215, %p216
    %p219 = scmp.ne.s32.totalorder %s204, %s218
    %p220 = scmp.eq.s32.totalorder %s23, 0
    %p221 = por %p219, %p220
    %s223 = sadd.s32 %s222, 1
    %p226 = scmp.eq.s32.totalorder %s17, 1
    %p227 = scmp.ne.s32.totalorder %s222, %s224
    %p228 = scmp.eq.s32.totalorder %s17, 0
    %p229 = por %p227, %p228
    %p230 = scmp.ne.s32.totalorder %s222, %s224
    %p231 = scmp.eq.s32.totalorder %s22, 1
    %p232 = por %p230, %p231
    %p233 = scmp.ne.s32.totalorder %s224, %s225
    %p234 = scmp.eq.s32.totalorder %s22, 0
    %p235 = por %p233, %p234
    %p236 = scmp.ne.s32.totalorder %s224, %s225
    %p237 = scmp.eq.s32.totalorder %s23, 1
    %p238 = por %p236, %p237
    %p240 = scmp.ne.s32.totalorder %s225, %s239
    %p241 = scmp.eq.s32.totalorder %s23, 0
    %p242 = por %p240, %p241
    %s244 = sadd.s32 %s243, 1
    %p247 = scmp.eq.s32.totalorder %s17, 1
    %p248 = scmp.ne.s32.totalorder %s243, %s245
    %p249 = scmp.eq.s32.totalorder %s17, 0
    %p250 = por %p248, %p249
    %p251 = scmp.ne.s32.totalorder %s243, %s245
    %p252 = scmp.eq.s32.totalorder %s22, 1
    %p253 = por %p251, %p252
    %p254 = scmp.ne.s32.totalorder %s245, %s246
    %p255 = scmp.eq.s32.totalorder %s22, 0
    %p256 = por %p254, %p255
    %p257 = scmp.ne.s32.totalorder %s245, %s246
    %p258 = scmp.eq.s32.totalorder %s23, 1
    %p259 = por %p257, %p258
    %p261 = scmp.ne.s32.totalorder %s246, %s260
    %p262 = scmp.eq.s32.totalorder %s23, 0
    %p263 = por %p261, %p262
    %s265 = sadd.s32 %s264, 1
    %p268 = scmp.eq.s32.totalorder %s17, 1
    %p269 = scmp.ne.s32.totalorder %s264, %s266
    %p270 = scmp.eq.s32.totalorder %s17, 0
    %p271 = por %p269, %p270
    %p272 = scmp.ne.s32.totalorder %s264, %s266
    %p273 = scmp.eq.s32.totalorder %s22, 1
    %p274 = por %p272, %p273
    %p275 = scmp.ne.s32.totalorder %s266, %s267
    %p276 = scmp.eq.s32.totalorder %s22, 0
    %p277 = por %p275, %p276
    %p278 = scmp.ne.s32.totalorder %s266, %s267
    %p279 = scmp.eq.s32.totalorder %s23, 1
    %p280 = por %p278, %p279
    %p282 = scmp.ne.s32.totalorder %s267, %s281
    %p283 = scmp.eq.s32.totalorder %s23, 0
    %p284 = por %p282, %p283
    %s285 = ssub.s32 %s24, %s36
    %s286 = ssub.s32 %s25, %s32
    %s287 = sor.u32 %s285, %s286
    %p288 = scmp.eq.s32.totalorder %s287, 0
    %s290 = sadd.s32 %s289, 1
    %s291 = scalar_select %p288, %s289, %s290
    %p294 = pneg %p288
    %p295 = scmp.eq.s32.totalorder %s17, 1
    %p296 = por %p294, %p295
    %p297 = scmp.ne.s32.totalorder %s289, %s292
    %p298 = scmp.eq.s32.totalorder %s17, 0
    %p299 = por %p297, %p298
    %p300 = scmp.ne.s32.totalorder %s289, %s292
    %p301 = scmp.eq.s32.totalorder %s22, 1
    %p302 = por %p300, %p301
    %p303 = scmp.ne.s32.totalorder %s292, %s293
    %p304 = scmp.eq.s32.totalorder %s22, 0
    %p305 = por %p303, %p304
    %p306 = scmp.ne.s32.totalorder %s292, %s293
    %p307 = scmp.eq.s32.totalorder %s23, 1
    %p308 = por %p306, %p307
    %p310 = scmp.ne.s32.totalorder %s293, %s309
    %p311 = scmp.eq.s32.totalorder %s23, 0
    %p312 = por %p310, %p311
    %p313 = scmp.le.s32.totalorder 1, %s17
    %p314 = scmp.lt.s32.totalorder %s17, 3
    %p315 = pnand %p313, %p314
    %p316 = pneg %p315
    // Predicated region
    $region9: #{tpu_custom_call.1} parent=5 // pred_check
      _
    $region10: #{tpu_custom_call.1} parent=5 // pred_check_branch
      %318 = sbr.rel (%p315) target = $region12
    $region11: #{tpu_custom_call.1} parent=5 // pred_region
      %s319 = ssub.s32 %s17, 1
      // Predicated region
      $region13: #{tpu_custom_call.1} parent=11 // pred_check
        %p320 = pneg %p83
      $region14: #{tpu_custom_call.1} parent=11 // pred_check_branch
        %322 = sbr.rel (%p320) target = $region16
      $region15: #{tpu_custom_call.1} parent=11 // pred_region
        %p323 = scmp.lt.s32.totalorder %s27, 0
        %s324 = scalar_select %p323, %s27, 0
        %s325 = smul.addr %s324, 2
        %s326 = scalar_lea.vmem %s1, %s325
      $region16: #{tpu_custom_call.1} parent=11 // pred_fallthru
        _
      // Predicated region
      $region17: #{tpu_custom_call.1} parent=11 // pred_check
        %p327 = pneg %p109
      $region18: #{tpu_custom_call.1} parent=11 // pred_check_branch
        %329 = sbr.rel (%p327) target = $region20
      $region19: #{tpu_custom_call.1} parent=11 // pred_region
        %p330 = scmp.lt.s32.totalorder %s27, 0
        %s331 = scalar_select %p330, %s27, 0
        %s332 = smul.addr %s331, 2
        %s333 = scalar_lea.vmem %s2, %s332
      $region20: #{tpu_custom_call.1} parent=11 // pred_fallthru
        _
      // Predicated region
      $region21: #{tpu_custom_call.1} parent=11 // pred_check
        %p334 = pneg %p130
      $region22: #{tpu_custom_call.1} parent=11 // pred_check_branch
        %336 = sbr.rel (%p334) target = $region24
      $region23: #{tpu_custom_call.1} parent=11 // pred_region
        _
      $region24: #{tpu_custom_call.1} parent=11 // pred_fallthru
        _
      // Predicated region
      $region25: #{tpu_custom_call.1} parent=11 // pred_check
        %p337 = pneg %p151
      $region26: #{tpu_custom_call.1} parent=11 // pred_check_branch
        %339 = sbr.rel (%p337) target = $region28
      $region27: #{tpu_custom_call.1} parent=11 // pred_region
        _
      $region28: #{tpu_custom_call.1} parent=11 // pred_fallthru
        _
      // Predicated region
      $region29: #{tpu_custom_call.1} parent=11 // pred_check
        %p340 = pneg %p172
      $region30: #{tpu_custom_call.1} parent=11 // pred_check_branch
        %342 = sbr.rel (%p340) target = $region32
      $region31: #{tpu_custom_call.1} parent=11 // pred_region
        _
      $region32: #{tpu_custom_call.1} parent=11 // pred_fallthru
        _
      // Predicated region
      $region33: #{tpu_custom_call.1} parent=11 // pred_check
        %p343 = pneg %p193
      $region34: #{tpu_custom_call.1} parent=11 // pred_check_branch
        %345 = sbr.rel (%p343) target = $region36
      $region35: #{tpu_custom_call.1} parent=11 // pred_region
        _
      $region36: #{tpu_custom_call.1} parent=11 // pred_fallthru
        _
      // Predicated region
      $region37: #{tpu_custom_call.1} parent=11 // pred_check
        %p346 = pneg %p214
      $region38: #{tpu_custom_call.1} parent=11 // pred_check_branch
        %348 = sbr.rel (%p346) target = $region40
      $region39: #{tpu_custom_call.1} parent=11 // pred_region
        _
      $region40: #{tpu_custom_call.1} parent=11 // pred_fallthru
        _
      // Predicated region
      $region41: #{tpu_custom_call.1} parent=11 // pred_check
        %p349 = pneg %p235
      $region42: #{tpu_custom_call.1} parent=11 // pred_check_branch
        %351 = sbr.rel (%p349) target = $region44
      $region43: #{tpu_custom_call.1} parent=11 // pred_region
        _
      $region44: #{tpu_custom_call.1} parent=11 // pred_fallthru
        _
      // Predicated region
      $region45: #{tpu_custom_call.1} parent=11 // pred_check
        %p352 = pneg %p256
      $region46: #{tpu_custom_call.1} parent=11 // pred_check_branch
        %354 = sbr.rel (%p352) target = $region48
      $region47: #{tpu_custom_call.1} parent=11 // pred_region
        _
      $region48: #{tpu_custom_call.1} parent=11 // pred_fallthru
        _
      // Predicated region
      $region49: #{tpu_custom_call.1} parent=11 // pred_check
        %p355 = pneg %p277
      $region50: #{tpu_custom_call.1} parent=11 // pred_check_branch
        %357 = sbr.rel (%p355) target = $region52
      $region51: #{tpu_custom_call.1} parent=11 // pred_region
        _
      $region52: #{tpu_custom_call.1} parent=11 // pred_fallthru
        _
    $region12: #{tpu_custom_call.1} parent=5 // pred_fallthru
      _
    %p358 = scmp.lt.s32.totalorder %s17, 2
    // Predicated region
    $region53: #{tpu_custom_call.1} parent=5 // pred_check
      %p359 = pneg %p358
    $region54: #{tpu_custom_call.1} parent=5 // pred_check_branch
      %361 = sbr.rel (%p359) target = $region56
    $region55: #{tpu_custom_call.1} parent=5 // pred_region
      // Predicated region
      $region57: #{tpu_custom_call.1} parent=55 // pred_check
        %p362 = pneg %p51
      $region58: #{tpu_custom_call.1} parent=55 // pred_check_branch
        %364 = sbr.rel (%p362) target = $region60
      $region59: #{tpu_custom_call.1} parent=55 // pred_region
        %p365 = scmp.lt.s32.totalorder %s24, 1
        %s366 = scalar_select %p365, %s24, 1
        %p367 = scmp.lt.s32.totalorder %s25, 0
        %s368 = scalar_select %p367, %s25, 0
        %s369 = smul.addr %s366, 4
        %s370 = sadd.s32 %s368, %s369
        %s371 = smul.addr %s370, 8
        %s372 = scalar_lea.vmem %s0, %s371
      $region60: #{tpu_custom_call.1} parent=55 // pred_fallthru
        _
    $region56: #{tpu_custom_call.1} parent=5 // pred_fallthru
      _
    %p373 = scmp.le.s32.totalorder 1, %s17
    %p374 = scmp.lt.s32.totalorder %s17, 3
    %p375 = pnand %p373, %p374
    %p376 = pneg %p375
    // Predicated region
    $region61: #{tpu_custom_call.1} parent=5 // pred_check
      _
    $region62: #{tpu_custom_call.1} parent=5 // pred_check_branch
      %378 = sbr.rel (%p375) target = $region64
    $region63: #{tpu_custom_call.1} parent=5 // pred_region
      %s379 = ssub.s32 %s17, 1
      %p380 = scmp.lt.s32.totalorder %s26, 1
      %s381 = scalar_select %p380, %s26, 1
      %p382 = scmp.lt.s32.totalorder %s27, 0
      %s383 = scalar_select %p382, %s27, 0
      %s384 = smul.addr %s381, 4
      %s385 = sadd.s32 %s383, %s384
      %s386 = smul.addr %s385, 8
      %s387 = scalar_lea.vmem %s0, %s386
      %p388 = pneg %p57
      %p389 = pneg %p54
      %p390 = scmp.lt.s32.totalorder %s27, 0
      %s391 = scalar_select %p390, %s27, 0
      %s392 = smul.addr %s391, 2
      %s393 = scalar_lea.vmem %s1, %s392
      %p394 = pneg %p83
      %p395 = pneg %p80
      %p396 = scmp.lt.s32.totalorder %s27, 0
      %s397 = scalar_select %p396, %s27, 0
      %s398 = smul.addr %s397, 2
      %s399 = scalar_lea.vmem %s2, %s398
      %p400 = pneg %p109
      %p401 = pneg %p106
      %p402 = pneg %p130
      %p403 = pneg %p127
      %p404 = pneg %p151
      %p405 = pneg %p148
      %p406 = pneg %p172
      %p407 = pneg %p169
      %p408 = pneg %p193
      %p409 = pneg %p190
      %p410 = pneg %p214
      %p411 = pneg %p211
      %p412 = pneg %p235
      %p413 = pneg %p232
      %p414 = pneg %p256
      %p415 = pneg %p253
      %p416 = pneg %p277
      %p417 = pneg %p274
      %p418 = pneg %p305
      %p419 = pneg %p302
      %p420 = scmp.lt.s32.totalorder %s26, 1
      %s421 = scalar_select %p420, %s26, 1
      %p422 = scmp.lt.s32.totalorder %s27, 0
      %s423 = scalar_select %p422, %s27, 0
      %s424 = smul.addr %s421, 4
      %s425 = sadd.s32 %s423, %s424
      %s426 = smul.addr %s425, 8
      %s427 = scalar_lea.vmem %s11, %s426
      %p428 = scmp.lt.s32.totalorder %s26, 1
      %s429 = scalar_select %p428, %s26, 1
      %p430 = scmp.lt.s32.totalorder %s27, 0
      %s431 = scalar_select %p430, %s27, 0
      %s432 = smul.addr %s429, 4
      %s433 = sadd.s32 %s431, %s432
      %s434 = smul.addr %s433, 8
      %s435 = scalar_lea.vmem %s0, %s434
      %p436 = scmp.lt.s32.totalorder %s27, 0
      %s437 = scalar_select %p436, %s27, 0
      %s438 = smul.addr %s437, 2
      %s439 = scalar_lea.vmem %s1, %s438
      %p440 = scmp.lt.s32.totalorder %s27, 0
      %s441 = scalar_select %p440, %s27, 0
      %s442 = smul.addr %s441, 2
      %s443 = scalar_lea.vmem %s2, %s442
      %p444 = scmp.lt.s32.totalorder %s26, 1
      %s445 = scalar_select %p444, %s26, 1
      %p446 = scmp.lt.s32.totalorder %s27, 0
      %s447 = scalar_select %p446, %s27, 0
      %s448 = smul.addr %s445, 4
      %s449 = sadd.s32 %s447, %s448
      %s450 = smul.addr %s449, 8
      %s451 = scalar_lea.vmem %s11, %s450
      %v452 = vld [vmem:[%s435] sm:$0xff]
      %v453 = vld [vmem:[%s435 + $0x8] sm:$0xff]
      %v454 = vld [vmem:[%s435 + $0x10] sm:$0xff]
      %v455 = vld [vmem:[%s435 + $0x18] sm:$0xff]
      %v456 = vld [vmem:[%s3] sm:$0xff]
      %v457 = vld [vmem:[%s3 + $0x8] sm:$0xff]
      %v458 = vld [vmem:[%s3 + $0x10] sm:$0xff]
      %v459 = vld [vmem:[%s3 + $0x18] sm:$0xff]
      %v460 = vld [vmem:[%s3 + $0x20] sm:$0xff]
      %v461 = vld [vmem:[%s3 + $0x28] sm:$0xff]
      %v462 = vld [vmem:[%s4] sm:$0xff]
      %v463 = vld [vmem:[%s4 + $0x8] sm:$0xff]
      %v464 = vld [vmem:[%s4 + $0x10] sm:$0xff]
      %v465 = vld [vmem:[%s4 + $0x18] sm:$0xff]
      %v466 = vld [vmem:[%s4 + $0x20] sm:$0xff]
      %v467 = vld [vmem:[%s4 + $0x28] sm:$0xff]
      %469 = vset.pattern.permute.xlu0 0
      %470 = vperm.xlu0 %469, %v462
      %v471 = vpop.permute.xlu0 %470
      %474 = vset.pattern.permute.xlu0 0
      %475 = vperm.xlu0 %474, %v463
      %v476 = vpop.permute.xlu0 %475
      %479 = vset.pattern.permute.xlu0 0
      %480 = vperm.xlu0 %479, %v464
      %v481 = vpop.permute.xlu0 %480
      %484 = vset.pattern.permute.xlu0 0
      %485 = vperm.xlu0 %484, %v465
      %v486 = vpop.permute.xlu0 %485
      %489 = vset.pattern.permute.xlu0 0
      %490 = vperm.xlu0 %489, %v466
      %v491 = vpop.permute.xlu0 %490
      %494 = vset.pattern.permute.xlu0 0
      %495 = vperm.xlu0 %494, %v467
      %v496 = vpop.permute.xlu0 %495
      %vm498 = vcmask 261120
      %v500 = vsel %vm498, %v456, 0
      %v503 = vsel %vm498, %v457, 0
      %v506 = vsel %vm498, %v458, 0
      %v509 = vsel %vm498, %v459, 0
      %v512 = vsel %vm498, %v460, 0
      %v515 = vsel %vm498, %v461, 0
      %517 = vmatprep.subr.mxu0 0.0
      %v518 = vand.u32 %v452, 4294901760
      %519 = vmatpush1.msra.mxu0 %v518
      %520 = vmatprep.subr.mxu0 0.0
      %v521 = vand.u32 %v453, 4294901760
      %522 = vmatpush1.msra.mxu0 %v521
      %523 = vmatprep.subr.mxu0 0.0
      %v524 = vand.u32 %v454, 4294901760
      %525 = vmatpush1.msra.mxu0 %v524
      %526 = vmatprep.subr.mxu0 0.0
      %v527 = vand.u32 %v455, 4294901760
      %528 = vmatpush1.msra.mxu0 %v527
      %529 = vmatprep.subr.mxu0 0.0
      %530 = vmatpush1.msra.mxu0 0.0
      %531 = vmatprep.subr.mxu0 0.0
      %532 = vmatpush1.msra.mxu0 0.0
      %533 = vmatprep.subr.mxu0 0.0
      %534 = vmatpush1.msra.mxu0 0.0
      %535 = vmatprep.subr.mxu0 0.0
      %536 = vmatpush1.msra.mxu0 0.0
      %537 = vmatprep.subr.mxu0 0.0
      %538 = vmatpush1.msra.mxu0 0.0
      %539 = vmatprep.subr.mxu0 0.0
      %540 = vmatpush1.msra.mxu0 0.0
      %541 = vmatprep.subr.mxu0 0.0
      %542 = vmatpush1.msra.mxu0 0.0
      %543 = vmatprep.subr.mxu0 0.0
      %544 = vmatpush1.msra.mxu0 0.0
      %545 = vmatprep.subr.mxu0 0.0
      %546 = vmatpush1.msra.mxu0 0.0
      %547 = vmatprep.subr.mxu0 0.0
      %548 = vmatpush1.msra.mxu0 0.0
      %549 = vmatprep.subr.mxu0 0.0
      %550 = vmatpush1.msra.mxu0 0.0
      %551 = vmatprep.subr.mxu0 0.0
      %552 = vmatpush1.msra.mxu0 0.0
      %553 = vmatprep.subr.mxu0 0.0
      %554 = vmatpush1.msra.mxu0 0.0
      %555 = vmatprep.subr.mxu0 0.0
      %556 = vmatpush1.msra.mxu0 0.0
      %557 = vmatprep.subr.mxu0 0.0
      %558 = vmatpush1.msra.mxu0 0.0
      %559 = vmatprep.subr.mxu0 0.0
      %560 = vmatpush1.msra.mxu0 0.0
      %561 = vmatprep.subr.mxu0 0.0
      %562 = vmatpush1.msra.mxu0 0.0
      %563 = vmatprep.subr.mxu0 0.0
      %564 = vmatpush1.msra.mxu0 0.0
      %565 = vmatprep.subr.mxu0 0.0
      %566 = vmatpush1.msra.mxu0 0.0
      %567 = vmatprep.subr.mxu0 0.0
      %568 = vmatpush1.msra.mxu0 0.0
      %569 = vmatprep.subr.mxu0 0.0
      %570 = vmatpush1.msra.mxu0 0.0
      %571 = vmatprep.subr.mxu0 0.0
      %572 = vmatpush1.msra.mxu0 0.0
      %573 = vmatprep.subr.mxu0 0.0
      %574 = vmatpush1.msra.mxu0 0.0
      %575 = vmatprep.subr.mxu0 0.0
      %576 = vmatpush1.msra.mxu0 0.0
      %577 = vmatprep.subr.mxu0 0.0
      %578 = vmatpush1.msra.mxu0 0.0
      %579 = vmatprep.subr.mxu0 0.0
      %580 = vmatpush1.msra.mxu0 0.0
      %581 = vmatprep.subr.mxu0 0.0
      %582 = vmatpush1.msra.mxu0 0.0
      %583 = vmatprep.subr.mxu0 0.0
      %584 = vmatpush1.msra.mxu0 0.0
      %585 = vmatprep.mubr.f32.mxu0 0.0
      %v586 = vand.u32 %v500, 4294901760
      %v587 = vsub.f32 %v500, %v586
      %v588 = vand.u32 %v587, 4294901760
      %v589 = vsub.f32 %v587, %v588
      %v590 = vand.u32 %v589, 4294901760
      %591 = vmatmul.mubr.f32.gmra.mrb[0].mxu0 %v590
      %v592 = vpop.f32.mrb[0].mxu0
      %v593 = vadd.f32 %v471, %v592
      %v594 = vpop.f32.mrb[0].mxu0
      %595 = vmatprep.mubr.f32.mxu0 0.0
      %v596 = vand.u32 %v503, 4294901760
      %v597 = vsub.f32 %v503, %v596
      %v598 = vand.u32 %v597, 4294901760
      %v599 = vsub.f32 %v597, %v598
      %v600 = vand.u32 %v599, 4294901760
      %601 = vmatmul.mubr.f32.gmra.mrb[0].mxu0 %v600
      %v602 = vpop.f32.mrb[0].mxu0
      %v603 = vadd.f32 %v476, %v602
      %v604 = vpop.f32.mrb[0].mxu0
      %605 = vmatprep.mubr.f32.mxu0 0.0
      %v606 = vand.u32 %v506, 4294901760
      %v607 = vsub.f32 %v506, %v606
      %v608 = vand.u32 %v607, 4294901760
      %v609 = vsub.f32 %v607, %v608
      %v610 = vand.u32 %v609, 4294901760
      %611 = vmatmul.mubr.f32.gmra.mrb[0].mxu0 %v610
      %v612 = vpop.f32.mrb[0].mxu0
      %v613 = vadd.f32 %v481, %v612
      %v614 = vpop.f32.mrb[0].mxu0
      %615 = vmatprep.mubr.f32.mxu0 0.0
      %v616 = vand.u32 %v509, 4294901760
      %v617 = vsub.f32 %v509, %v616
      %v618 = vand.u32 %v617, 4294901760
      %v619 = vsub.f32 %v617, %v618
      %v620 = vand.u32 %v619, 4294901760
      %621 = vmatmul.mubr.f32.gmra.mrb[0].mxu0 %v620
      %v622 = vpop.f32.mrb[0].mxu0
      %v623 = vadd.f32 %v486, %v622
      %v624 = vpop.f32.mrb[0].mxu0
      %625 = vmatprep.mubr.f32.mxu0 0.0
      %v626 = vand.u32 %v512, 4294901760
      %v627 = vsub.f32 %v512, %v626
      %v628 = vand.u32 %v627, 4294901760
      %v629 = vsub.f32 %v627, %v628
      %v630 = vand.u32 %v629, 4294901760
      %631 = vmatmul.mubr.f32.gmra.mrb[0].mxu0 %v630
      %v632 = vpop.f32.mrb[0].mxu0
      %v633 = vadd.f32 %v491, %v632
      %v634 = vpop.f32.mrb[0].mxu0
      %635 = vmatprep.mubr.f32.mxu0 0.0
      %v636 = vand.u32 %v515, 4294901760
      %v637 = vsub.f32 %v515, %v636
      %v638 = vand.u32 %v637, 4294901760
      %v639 = vsub.f32 %v637, %v638
      %v640 = vand.u32 %v639, 4294901760
      %641 = vmatmul.mubr.f32.gmra.mrb[0].mxu0 %v640
      %v642 = vpop.f32.mrb[0].mxu0
      %v643 = vadd.f32 %v496, %v642
      %v644 = vpop.f32.mrb[0].mxu0
      %645 = vdwg.mxu0
      %646 = vmatprep.subr.mxu0 0.0
      %v647 = vand.u32 %v452, 4294901760
      %v648 = vsub.f32 %v452, %v647
      %v649 = vand.u32 %v648, 4294901760
      %v650 = vsub.f32 %v648, %v649
      %v651 = vand.u32 %v650, 4294901760
      %652 = vmatpush1.msra.mxu0 %v651
      %653 = vmatprep.subr.mxu0 0.0
      %v654 = vand.u32 %v453, 4294901760
      %v655 = vsub.f32 %v453, %v654
      %v656 = vand.u32 %v655, 4294901760
      %v657 = vsub.f32 %v655, %v656
      %v658 = vand.u32 %v657, 4294901760
      %659 = vmatpush1.msra.mxu0 %v658
      %660 = vmatprep.subr.mxu0 0.0
      %v661 = vand.u32 %v454, 4294901760
      %v662 = vsub.f32 %v454, %v661
      %v663 = vand.u32 %v662, 4294901760
      %v664 = vsub.f32 %v662, %v663
      %v665 = vand.u32 %v664, 4294901760
      %666 = vmatpush1.msra.mxu0 %v665
      %667 = vmatprep.subr.mxu0 0.0
      %v668 = vand.u32 %v455, 4294901760
      %v669 = vsub.f32 %v455, %v668
      %v670 = vand.u32 %v669, 4294901760
      %v671 = vsub.f32 %v669, %v670
      %v672 = vand.u32 %v671, 4294901760
      %673 = vmatpush1.msra.mxu0 %v672
      %674 = vmatprep.subr.mxu0 0.0
      %675 = vmatpush1.msra.mxu0 0.0
      %676 = vmatprep.subr.mxu0 0.0
      %677 = vmatpush1.msra.mxu0 0.0
      %678 = vmatprep.subr.mxu0 0.0
      %679 = vmatpush1.msra.mxu0 0.0
      %680 = vmatprep.subr.mxu0 0.0
      %681 = vmatpush1.msra.mxu0 0.0
      %682 = vmatprep.subr.mxu0 0.0
      %683 = vmatpush1.msra.mxu0 0.0
      %684 = vmatprep.subr.mxu0 0.0
      %685 = vmatpush1.msra.mxu0 0.0
      %686 = vmatprep.subr.mxu0 0.0
      %687 = vmatpush1.msra.mxu0 0.0
      %688 = vmatprep.subr.mxu0 0.0
      %689 = vmatpush1.msra.mxu0 0.0
      %690 = vmatprep.subr.mxu0 0.0
      %691 = vmatpush1.msra.mxu0 0.0
      %692 = vmatprep.subr.mxu0 0.0
      %693 = vmatpush1.msra.mxu0 0.0
      %694 = vmatprep.subr.mxu0 0.0
      %695 = vmatpush1.msra.mxu0 0.0
      %696 = vmatprep.subr.mxu0 0.0
      %697 = vmatpush1.msra.mxu0 0.0
      %698 = vmatprep.subr.mxu0 0.0
      %699 = vmatpush1.msra.mxu0 0.0
      %700 = vmatprep.subr.mxu0 0.0
      %701 = vmatpush1.msra.mxu0 0.0
      %702 = vmatprep.subr.mxu0 0.0
      %703 = vmatpush1.msra.mxu0 0.0
      %704 = vmatprep.subr.mxu0 0.0
      %705 = vmatpush1.msra.mxu0 0.0
      %706 = vmatprep.subr.mxu0 0.0
      %707 = vmatpush1.msra.mxu0 0.0
      %708 = vmatprep.subr.mxu0 0.0
      %709 = vmatpush1.msra.mxu0 0.0
      %710 = vmatprep.subr.mxu0 0.0
      %711 = vmatpush1.msra.mxu0 0.0
      %712 = vmatprep.subr.mxu0 0.0
      %713 = vmatpush1.msra.mxu0 0.0
      %714 = vmatprep.subr.mxu0 0.0
      %715 = vmatpush1.msra.mxu0 0.0
      %716 = vmatprep.subr.mxu0 0.0
      %717 = vmatpush1.msra.mxu0 0.0
      %718 = vmatprep.subr.mxu0 0.0
      %719 = vmatpush1.msra.mxu0 0.0
      %720 = vmatprep.subr.mxu0 0.0
      %721 = vmatpush1.msra.mxu0 0.0
      %722 = vmatprep.subr.mxu0 0.0
      %723 = vmatpush1.msra.mxu0 0.0
      %724 = vmatprep.subr.mxu0 0.0
      %725 = vmatpush1.msra.mxu0 0.0
      %726 = vmatprep.subr.mxu0 0.0
      %727 = vmatpush1.msra.mxu0 0.0
      %728 = vmatprep.subr.mxu0 0.0
      %729 = vmatpush1.msra.mxu0 0.0
      %730 = vmatprep.mubr.f32.mxu0 0.0
      %v731 = vand.u32 %v500, 4294901760
      %732 = vmatmul.mubr.f32.gmra.mrb[0].mxu0 %v731
      %v733 = vpop.f32.mrb[0].mxu0
      %v734 = vadd.f32 %v593, %v733
      %v735 = vpop.f32.mrb[0].mxu0
      %736 = vmatprep.mubr.f32.mxu0 0.0
      %v737 = vand.u32 %v503, 4294901760
      %738 = vmatmul.mubr.f32.gmra.mrb[0].mxu0 %v737
      %v739 = vpop.f32.mrb[0].mxu0
      %v740 = vadd.f32 %v603, %v739
      %v741 = vpop.f32.mrb[0].mxu0
      %742 = vmatprep.mubr.f32.mxu0 0.0
      %v743 = vand.u32 %v506, 4294901760
      %744 = vmatmul.mubr.f32.gmra.mrb[0].mxu0 %v743
      %v745 = vpop.f32.mrb[0].mxu0
      %v746 = vadd.f32 %v613, %v745
      %v747 = vpop.f32.mrb[0].mxu0
      %748 = vmatprep.mubr.f32.mxu0 0.0
      %v749 = vand.u32 %v509, 4294901760
      %750 = vmatmul.mubr.f32.gmra.mrb[0].mxu0 %v749
      %v751 = vpop.f32.mrb[0].mxu0
      %v752 = vadd.f32 %v623, %v751
      %v753 = vpop.f32.mrb[0].mxu0
      %754 = vmatprep.mubr.f32.mxu0 0.0
      %v755 = vand.u32 %v512, 4294901760
      %756 = vmatmul.mubr.f32.gmra.mrb[0].mxu0 %v755
      %v757 = vpop.f32.mrb[0].mxu0
      %v758 = vadd.f32 %v633, %v757
      %v759 = vpop.f32.mrb[0].mxu0
      %760 = vmatprep.mubr.f32.mxu0 0.0
      %v761 = vand.u32 %v515, 4294901760
      %762 = vmatmul.mubr.f32.gmra.mrb[0].mxu0 %v761
      %v763 = vpop.f32.mrb[0].mxu0
      %v764 = vadd.f32 %v643, %v763
      %v765 = vpop.f32.mrb[0].mxu0
      %766 = vdwg.mxu0
      %767 = vmatprep.subr.mxu0 0.0
      %v768 = vand.u32 %v452, 4294901760
      %v769 = vsub.f32 %v452, %v768
      %770 = vmatpush1.msra.mxu0 %v769
      %771 = vmatprep.subr.mxu0 0.0
      %v772 = vand.u32 %v453, 4294901760
      %v773 = vsub.f32 %v453, %v772
      %774 = vmatpush1.msra.mxu0 %v773
      %775 = vmatprep.subr.mxu0 0.0
      %v776 = vand.u32 %v454, 4294901760
      %v777 = vsub.f32 %v454, %v776
      %778 = vmatpush1.msra.mxu0 %v777
      %779 = vmatprep.subr.mxu0 0.0
      %v780 = vand.u32 %v455, 4294901760
      %v781 = vsub.f32 %v455, %v780
      %782 = vmatpush1.msra.mxu0 %v781
      %783 = vmatprep.subr.mxu0 0.0
      %784 = vmatpush1.msra.mxu0 0.0
      %785 = vmatprep.subr.mxu0 0.0
      %786 = vmatpush1.msra.mxu0 0.0
      %787 = vmatprep.subr.mxu0 0.0
      %788 = vmatpush1.msra.mxu0 0.0
      %789 = vmatprep.subr.mxu0 0.0
      %790 = vmatpush1.msra.mxu0 0.0
      %791 = vmatprep.subr.mxu0 0.0
      %792 = vmatpush1.msra.mxu0 0.0
      %793 = vmatprep.subr.mxu0 0.0
      %794 = vmatpush1.msra.mxu0 0.0
      %795 = vmatprep.subr.mxu0 0.0
      %796 = vmatpush1.msra.mxu0 0.0
      %797 = vmatprep.subr.mxu0 0.0
      %798 = vmatpush1.msra.mxu0 0.0
      %799 = vmatprep.subr.mxu0 0.0
      %800 = vmatpush1.msra.mxu0 0.0
      %801 = vmatprep.subr.mxu0 0.0
      %802 = vmatpush1.msra.mxu0 0.0
      %803 = vmatprep.subr.mxu0 0.0
      %804 = vmatpush1.msra.mxu0 0.0
      %805 = vmatprep.subr.mxu0 0.0
      %806 = vmatpush1.msra.mxu0 0.0
      %807 = vmatprep.subr.mxu0 0.0
      %808 = vmatpush1.msra.mxu0 0.0
      %809 = vmatprep.subr.mxu0 0.0
      %810 = vmatpush1.msra.mxu0 0.0
      %811 = vmatprep.subr.mxu0 0.0
      %812 = vmatpush1.msra.mxu0 0.0
      %813 = vmatprep.subr.mxu0 0.0
      %814 = vmatpush1.msra.mxu0 0.0
      %815 = vmatprep.subr.mxu0 0.0
      %816 = vmatpush1.msra.mxu0 0.0
      %817 = vmatprep.subr.mxu0 0.0
      %818 = vmatpush1.msra.mxu0 0.0
      %819 = vmatprep.subr.mxu0 0.0
      %820 = vmatpush1.msra.mxu0 0.0
      %821 = vmatprep.subr.mxu0 0.0
      %822 = vmatpush1.msra.mxu0 0.0
      %823 = vmatprep.subr.mxu0 0.0
      %824 = vmatpush1.msra.mxu0 0.0
      %825 = vmatprep.subr.mxu0 0.0
      %826 = vmatpush1.msra.mxu0 0.0
      %827 = vmatprep.subr.mxu0 0.0
      %828 = vmatpush1.msra.mxu0 0.0
      %829 = vmatprep.subr.mxu0 0.0
      %830 = vmatpush1.msra.mxu0 0.0
      %831 = vmatprep.subr.mxu0 0.0
      %832 = vmatpush1.msra.mxu0 0.0
      %833 = vmatprep.subr.mxu0 0.0
      %834 = vmatpush1.msra.mxu0 0.0
      %835 = vmatprep.subr.mxu0 0.0
      %836 = vmatpush1.msra.mxu0 0.0
      %837 = vmatprep.subr.mxu0 0.0
      %838 = vmatpush1.msra.mxu0 0.0
      %839 = vmatprep.mubr.f32.mxu0 0.0
      %v840 = vand.u32 %v500, 4294901760
      %v841 = vsub.f32 %v500, %v840
      %842 = vmatmul.mubr.f32.gmra.mrb[0].mxu0 %v841
      %v843 = vpop.f32.mrb[0].mxu0
      %v844 = vadd.f32 %v734, %v843
      %v845 = vpop.f32.mrb[0].mxu0
      %846 = vmatprep.mubr.f32.mxu0 0.0
      %v847 = vand.u32 %v503, 4294901760
      %v848 = vsub.f32 %v503, %v847
      %849 = vmatmul.mubr.f32.gmra.mrb[0].mxu0 %v848
      %v850 = vpop.f32.mrb[0].mxu0
      %v851 = vadd.f32 %v740, %v850
      %v852 = vpop.f32.mrb[0].mxu0
      %853 = vmatprep.mubr.f32.mxu0 0.0
      %v854 = vand.u32 %v506, 4294901760
      %v855 = vsub.f32 %v506, %v854
      %856 = vmatmul.mubr.f32.gmra.mrb[0].mxu0 %v855
      %v857 = vpop.f32.mrb[0].mxu0
      %v858 = vadd.f32 %v746, %v857
      %v859 = vpop.f32.mrb[0].mxu0
      %860 = vmatprep.mubr.f32.mxu0 0.0
      %v861 = vand.u32 %v509, 4294901760
      %v862 = vsub.f32 %v509, %v861
      %863 = vmatmul.mubr.f32.gmra.mrb[0].mxu0 %v862
      %v864 = vpop.f32.mrb[0].mxu0
      %v865 = vadd.f32 %v752, %v864
      %v866 = vpop.f32.mrb[0].mxu0
      %867 = vmatprep.mubr.f32.mxu0 0.0
      %v868 = vand.u32 %v512, 4294901760
      %v869 = vsub.f32 %v512, %v868
      %870 = vmatmul.mubr.f32.gmra.mrb[0].mxu0 %v869
      %v871 = vpop.f32.mrb[0].mxu0
      %v872 = vadd.f32 %v758, %v871
      %v873 = vpop.f32.mrb[0].mxu0
      %874 = vmatprep.mubr.f32.mxu0 0.0
      %v875 = vand.u32 %v515, 4294901760
      %v876 = vsub.f32 %v515, %v875
      %877 = vmatmul.mubr.f32.gmra.mrb[0].mxu0 %v876
      %v878 = vpop.f32.mrb[0].mxu0
      %v879 = vadd.f32 %v764, %v878
      %v880 = vpop.f32.mrb[0].mxu0
      %881 = vdwg.mxu0
      %882 = vmatprep.subr.mxu0 0.0
      %v883 = vand.u32 %v452, 4294901760
      %884 = vmatpush1.msra.mxu0 %v883
      %885 = vmatprep.subr.mxu0 0.0
      %v886 = vand.u32 %v453, 4294901760
      %887 = vmatpush1.msra.mxu0 %v886
      %888 = vmatprep.subr.mxu0 0.0
      %v889 = vand.u32 %v454, 4294901760
      %890 = vmatpush1.msra.mxu0 %v889
      %891 = vmatprep.subr.mxu0 0.0
      %v892 = vand.u32 %v455, 4294901760
      %893 = vmatpush1.msra.mxu0 %v892
      %894 = vmatprep.subr.mxu0 0.0
      %895 = vmatpush1.msra.mxu0 0.0
      %896 = vmatprep.subr.mxu0 0.0
      %897 = vmatpush1.msra.mxu0 0.0
      %898 = vmatprep.subr.mxu0 0.0
      %899 = vmatpush1.msra.mxu0 0.0
      %900 = vmatprep.subr.mxu0 0.0
      %901 = vmatpush1.msra.mxu0 0.0
      %902 = vmatprep.subr.mxu0 0.0
      %903 = vmatpush1.msra.mxu0 0.0
      %904 = vmatprep.subr.mxu0 0.0
      %905 = vmatpush1.msra.mxu0 0.0
      %906 = vmatprep.subr.mxu0 0.0
      %907 = vmatpush1.msra.mxu0 0.0
      %908 = vmatprep.subr.mxu0 0.0
      %909 = vmatpush1.msra.mxu0 0.0
      %910 = vmatprep.subr.mxu0 0.0
      %911 = vmatpush1.msra.mxu0 0.0
      %912 = vmatprep.subr.mxu0 0.0
      %913 = vmatpush1.msra.mxu0 0.0
      %914 = vmatprep.subr.mxu0 0.0
      %915 = vmatpush1.msra.mxu0 0.0
      %916 = vmatprep.subr.mxu0 0.0
      %917 = vmatpush1.msra.mxu0 0.0
      %918 = vmatprep.subr.mxu0 0.0
      %919 = vmatpush1.msra.mxu0 0.0
      %920 = vmatprep.subr.mxu0 0.0
      %921 = vmatpush1.msra.mxu0 0.0
      %922 = vmatprep.subr.mxu0 0.0
      %923 = vmatpush1.msra.mxu0 0.0
      %924 = vmatprep.subr.mxu0 0.0
      %925 = vmatpush1.msra.mxu0 0.0
      %926 = vmatprep.subr.mxu0 0.0
      %927 = vmatpush1.msra.mxu0 0.0
      %928 = vmatprep.subr.mxu0 0.0
      %929 = vmatpush1.msra.mxu0 0.0
      %930 = vmatprep.subr.mxu0 0.0
      %931 = vmatpush1.msra.mxu0 0.0
      %932 = vmatprep.subr.mxu0 0.0
      %933 = vmatpush1.msra.mxu0 0.0
      %934 = vmatprep.subr.mxu0 0.0
      %935 = vmatpush1.msra.mxu0 0.0
      %936 = vmatprep.subr.mxu0 0.0
      %937 = vmatpush1.msra.mxu0 0.0
      %938 = vmatprep.subr.mxu0 0.0
      %939 = vmatpush1.msra.mxu0 0.0
      %940 = vmatprep.subr.mxu0 0.0
      %941 = vmatpush1.msra.mxu0 0.0
      %942 = vmatprep.subr.mxu0 0.0
      %943 = vmatpush1.msra.mxu0 0.0
      %944 = vmatprep.subr.mxu0 0.0
      %945 = vmatpush1.msra.mxu0 0.0
      %946 = vmatprep.subr.mxu0 0.0
      %947 = vmatpush1.msra.mxu0 0.0
      %948 = vmatprep.subr.mxu0 0.0
      %949 = vmatpush1.msra.mxu0 0.0
      %950 = vmatprep.mubr.f32.mxu0 0.0
      %v951 = vand.u32 %v500, 4294901760
      %v952 = vsub.f32 %v500, %v951
      %v953 = vand.u32 %v952, 4294901760
      %954 = vmatmul.mubr.f32.gmra.mrb[0].mxu0 %v953
      %v955 = vpop.f32.mrb[0].mxu0
      %v956 = vadd.f32 %v844, %v955
      %v957 = vpop.f32.mrb[0].mxu0
      %958 = vmatprep.mubr.f32.mxu0 0.0
      %v959 = vand.u32 %v503, 4294901760
      %v960 = vsub.f32 %v503, %v959
      %v961 = vand.u32 %v960, 4294901760
      %962 = vmatmul.mubr.f32.gmra.mrb[0].mxu0 %v961
      %v963 = vpop.f32.mrb[0].mxu0
      %v964 = vadd.f32 %v851, %v963
      %v965 = vpop.f32.mrb[0].mxu0
      %966 = vmatprep.mubr.f32.mxu0 0.0
      %v967 = vand.u32 %v506, 4294901760
      %v968 = vsub.f32 %v506, %v967
      %v969 = vand.u32 %v968, 4294901760
      %970 = vmatmul.mubr.f32.gmra.mrb[0].mxu0 %v969
      %v971 = vpop.f32.mrb[0].mxu0
      %v972 = vadd.f32 %v858, %v971
      %v973 = vpop.f32.mrb[0].mxu0
      %974 = vmatprep.mubr.f32.mxu0 0.0
      %v975 = vand.u32 %v509, 4294901760
      %v976 = vsub.f32 %v509, %v975
      %v977 = vand.u32 %v976, 4294901760
      %978 = vmatmul.mubr.f32.gmra.mrb[0].mxu0 %v977
      %v979 = vpop.f32.mrb[0].mxu0
      %v980 = vadd.f32 %v865, %v979
      %v981 = vpop.f32.mrb[0].mxu0
      %982 = vmatprep.mubr.f32.mxu0 0.0
      %v983 = vand.u32 %v512, 4294901760
      %v984 = vsub.f32 %v512, %v983
      %v985 = vand.u32 %v984, 4294901760
      %986 = vmatmul.mubr.f32.gmra.mrb[0].mxu0 %v985
      %v987 = vpop.f32.mrb[0].mxu0
      %v988 = vadd.f32 %v872, %v987
      %v989 = vpop.f32.mrb[0].mxu0
      %990 = vmatprep.mubr.f32.mxu0 0.0
      %v991 = vand.u32 %v515, 4294901760
      %v992 = vsub.f32 %v515, %v991
      %v993 = vand.u32 %v992, 4294901760
      %994 = vmatmul.mubr.f32.gmra.mrb[0].mxu0 %v993
      %v995 = vpop.f32.mrb[0].mxu0
      %v996 = vadd.f32 %v879, %v995
      %v997 = vpop.f32.mrb[0].mxu0
      %998 = vdwg.mxu0
      %999 = vmatprep.subr.mxu0 0.0
      %v1000 = vand.u32 %v452, 4294901760
      %v1001 = vsub.f32 %v452, %v1000
      %v1002 = vand.u32 %v1001, 4294901760
      %1003 = vmatpush1.msra.mxu0 %v1002
      %1004 = vmatprep.subr.mxu0 0.0
      %v1005 = vand.u32 %v453, 4294901760
      %v1006 = vsub.f32 %v453, %v1005
      %v1007 = vand.u32 %v1006, 4294901760
      %1008 = vmatpush1.msra.mxu0 %v1007
      %1009 = vmatprep.subr.mxu0 0.0
      %v1010 = vand.u32 %v454, 4294901760
      %v1011 = vsub.f32 %v454, %v1010
      %v1012 = vand.u32 %v1011, 4294901760
      %1013 = vmatpush1.msra.mxu0 %v1012
      %1014 = vmatprep.subr.mxu0 0.0
      %v1015 = vand.u32 %v455, 4294901760
      %v1016 = vsub.f32 %v455, %v1015
      %v1017 = vand.u32 %v1016, 4294901760
      %1018 = vmatpush1.msra.mxu0 %v1017
      %1019 = vmatprep.subr.mxu0 0.0
      %1020 = vmatpush1.msra.mxu0 0.0
      %1021 = vmatprep.subr.mxu0 0.0
      %1022 = vmatpush1.msra.mxu0 0.0
      %1023 = vmatprep.subr.mxu0 0.0
      %1024 = vmatpush1.msra.mxu0 0.0
      %1025 = vmatprep.subr.mxu0 0.0
      %1026 = vmatpush1.msra.mxu0 0.0
      %1027 = vmatprep.subr.mxu0 0.0
      %1028 = vmatpush1.msra.mxu0 0.0
      %1029 = vmatprep.subr.mxu0 0.0
      %1030 = vmatpush1.msra.mxu0 0.0
      %1031 = vmatprep.subr.mxu0 0.0
      %1032 = vmatpush1.msra.mxu0 0.0
      %1033 = vmatprep.subr.mxu0 0.0
      %1034 = vmatpush1.msra.mxu0 0.0
      %1035 = vmatprep.subr.mxu0 0.0
      %1036 = vmatpush1.msra.mxu0 0.0
      %1037 = vmatprep.subr.mxu0 0.0
      %1038 = vmatpush1.msra.mxu0 0.0
      %1039 = vmatprep.subr.mxu0 0.0
      %1040 = vmatpush1.msra.mxu0 0.0
      %1041 = vmatprep.subr.mxu0 0.0
      %1042 = vmatpush1.msra.mxu0 0.0
      %1043 = vmatprep.subr.mxu0 0.0
      %1044 = vmatpush1.msra.mxu0 0.0
      %1045 = vmatprep.subr.mxu0 0.0
      %1046 = vmatpush1.msra.mxu0 0.0
      %1047 = vmatprep.subr.mxu0 0.0
      %1048 = vmatpush1.msra.mxu0 0.0
      %1049 = vmatprep.subr.mxu0 0.0
      %1050 = vmatpush1.msra.mxu0 0.0
      %1051 = vmatprep.subr.mxu0 0.0
      %1052 = vmatpush1.msra.mxu0 0.0
      %1053 = vmatprep.subr.mxu0 0.0
      %1054 = vmatpush1.msra.mxu0 0.0
      %1055 = vmatprep.subr.mxu0 0.0
      %1056 = vmatpush1.msra.mxu0 0.0
      %1057 = vmatprep.subr.mxu0 0.0
      %1058 = vmatpush1.msra.mxu0 0.0
      %1059 = vmatprep.subr.mxu0 0.0
      %1060 = vmatpush1.msra.mxu0 0.0
      %1061 = vmatprep.subr.mxu0 0.0
      %1062 = vmatpush1.msra.mxu0 0.0
      %1063 = vmatprep.subr.mxu0 0.0
      %1064 = vmatpush1.msra.mxu0 0.0
      %1065 = vmatprep.subr.mxu0 0.0
      %1066 = vmatpush1.msra.mxu0 0.0
      %1067 = vmatprep.subr.mxu0 0.0
      %1068 = vmatpush1.msra.mxu0 0.0
      %1069 = vmatprep.subr.mxu0 0.0
      %1070 = vmatpush1.msra.mxu0 0.0
      %1071 = vmatprep.subr.mxu0 0.0
      %1072 = vmatpush1.msra.mxu0 0.0
      %1073 = vmatprep.subr.mxu0 0.0
      %1074 = vmatpush1.msra.mxu0 0.0
      %1075 = vmatprep.mubr.f32.mxu0 0.0
      %v1076 = vand.u32 %v500, 4294901760
      %1077 = vmatmul.mubr.f32.gmra.mrb[0].mxu0 %v1076
      %v1078 = vpop.f32.mrb[0].mxu0
      %v1079 = vadd.f32 %v956, %v1078
      %v1080 = vpop.f32.mrb[0].mxu0
      %1081 = vmatprep.mubr.f32.mxu0 0.0
      %v1082 = vand.u32 %v503, 4294901760
      %1083 = vmatmul.mubr.f32.gmra.mrb[0].mxu0 %v1082
      %v1084 = vpop.f32.mrb[0].mxu0
      %v1085 = vadd.f32 %v964, %v1084
      %v1086 = vpop.f32.mrb[0].mxu0
      %1087 = vmatprep.mubr.f32.mxu0 0.0
      %v1088 = vand.u32 %v506, 4294901760
      %1089 = vmatmul.mubr.f32.gmra.mrb[0].mxu0 %v1088
      %v1090 = vpop.f32.mrb[0].mxu0
      %v1091 = vadd.f32 %v972, %v1090
      %v1092 = vpop.f32.mrb[0].mxu0
      %1093 = vmatprep.mubr.f32.mxu0 0.0
      %v1094 = vand.u32 %v509, 4294901760
      %1095 = vmatmul.mubr.f32.gmra.mrb[0].mxu0 %v1094
      %v1096 = vpop.f32.mrb[0].mxu0
      %v1097 = vadd.f32 %v980, %v1096
      %v1098 = vpop.f32.mrb[0].mxu0
      %1099 = vmatprep.mubr.f32.mxu0 0.0
      %v1100 = vand.u32 %v512, 4294901760
      %1101 = vmatmul.mubr.f32.gmra.mrb[0].mxu0 %v1100
      %v1102 = vpop.f32.mrb[0].mxu0
      %v1103 = vadd.f32 %v988, %v1102
      %v1104 = vpop.f32.mrb[0].mxu0
      %1105 = vmatprep.mubr.f32.mxu0 0.0
      %v1106 = vand.u32 %v515, 4294901760
      %1107 = vmatmul.mubr.f32.gmra.mrb[0].mxu0 %v1106
      %v1108 = vpop.f32.mrb[0].mxu0
      %v1109 = vadd.f32 %v996, %v1108
      %v1110 = vpop.f32.mrb[0].mxu0
      %1111 = vdwg.mxu0
      %1112 = vmatprep.subr.mxu0 0.0
      %v1113 = vand.u32 %v452, 4294901760
      %1114 = vmatpush1.msra.mxu0 %v1113
      %1115 = vmatprep.subr.mxu0 0.0
      %v1116 = vand.u32 %v453, 4294901760
      %1117 = vmatpush1.msra.mxu0 %v1116
      %1118 = vmatprep.subr.mxu0 0.0
      %v1119 = vand.u32 %v454, 4294901760
      %1120 = vmatpush1.msra.mxu0 %v1119
      %1121 = vmatprep.subr.mxu0 0.0
      %v1122 = vand.u32 %v455, 4294901760
      %1123 = vmatpush1.msra.mxu0 %v1122
      %1124 = vmatprep.subr.mxu0 0.0
      %1125 = vmatpush1.msra.mxu0 0.0
      %1126 = vmatprep.subr.mxu0 0.0
      %1127 = vmatpush1.msra.mxu0 0.0
      %1128 = vmatprep.subr.mxu0 0.0
      %1129 = vmatpush1.msra.mxu0 0.0
      %1130 = vmatprep.subr.mxu0 0.0
      %1131 = vmatpush1.msra.mxu0 0.0
      %1132 = vmatprep.subr.mxu0 0.0
      %1133 = vmatpush1.msra.mxu0 0.0
      %1134 = vmatprep.subr.mxu0 0.0
      %1135 = vmatpush1.msra.mxu0 0.0
      %1136 = vmatprep.subr.mxu0 0.0
      %1137 = vmatpush1.msra.mxu0 0.0
      %1138 = vmatprep.subr.mxu0 0.0
      %1139 = vmatpush1.msra.mxu0 0.0
      %1140 = vmatprep.subr.mxu0 0.0
      %1141 = vmatpush1.msra.mxu0 0.0
      %1142 = vmatprep.subr.mxu0 0.0
      %1143 = vmatpush1.msra.mxu0 0.0
      %1144 = vmatprep.subr.mxu0 0.0
      %1145 = vmatpush1.msra.mxu0 0.0
      %1146 = vmatprep.subr.mxu0 0.0
      %1147 = vmatpush1.msra.mxu0 0.0
      %1148 = vmatprep.subr.mxu0 0.0
      %1149 = vmatpush1.msra.mxu0 0.0
      %1150 = vmatprep.subr.mxu0 0.0
      %1151 = vmatpush1.msra.mxu0 0.0
      %1152 = vmatprep.subr.mxu0 0.0
      %1153 = vmatpush1.msra.mxu0 0.0
      %1154 = vmatprep.subr.mxu0 0.0
      %1155 = vmatpush1.msra.mxu0 0.0
      %1156 = vmatprep.subr.mxu0 0.0
      %1157 = vmatpush1.msra.mxu0 0.0
      %1158 = vmatprep.subr.mxu0 0.0
      %1159 = vmatpush1.msra.mxu0 0.0
      %1160 = vmatprep.subr.mxu0 0.0
      %1161 = vmatpush1.msra.mxu0 0.0
      %1162 = vmatprep.subr.mxu0 0.0
      %1163 = vmatpush1.msra.mxu0 0.0
      %1164 = vmatprep.subr.mxu0 0.0
      %1165 = vmatpush1.msra.mxu0 0.0
      %1166 = vmatprep.subr.mxu0 0.0
      %1167 = vmatpush1.msra.mxu0 0.0
      %1168 = vmatprep.subr.mxu0 0.0
      %1169 = vmatpush1.msra.mxu0 0.0
      %1170 = vmatprep.subr.mxu0 0.0
      %1171 = vmatpush1.msra.mxu0 0.0
      %1172 = vmatprep.subr.mxu0 0.0
      %1173 = vmatpush1.msra.mxu0 0.0
      %1174 = vmatprep.subr.mxu0 0.0
      %1175 = vmatpush1.msra.mxu0 0.0
      %1176 = vmatprep.subr.mxu0 0.0
      %1177 = vmatpush1.msra.mxu0 0.0
      %1178 = vmatprep.subr.mxu0 0.0
      %1179 = vmatpush1.msra.mxu0 0.0
      %1180 = vmatprep.mubr.f32.mxu0 0.0
      %v1181 = vand.u32 %v500, 4294901760
      %1182 = vmatmul.mubr.f32.gmra.mrb[0].mxu0 %v1181
      %v1183 = vpop.f32.mrb[0].mxu0
      %v1184 = vadd.f32 %v1079, %v1183
      %v1185 = vpop.f32.mrb[0].mxu0
      %1186 = vmatprep.mubr.f32.mxu0 0.0
      %v1187 = vand.u32 %v503, 4294901760
      %1188 = vmatmul.mubr.f32.gmra.mrb[0].mxu0 %v1187
      %v1189 = vpop.f32.mrb[0].mxu0
      %v1190 = vadd.f32 %v1085, %v1189
      %v1191 = vpop.f32.mrb[0].mxu0
      %1192 = vmatprep.mubr.f32.mxu0 0.0
      %v1193 = vand.u32 %v506, 4294901760
      %1194 = vmatmul.mubr.f32.gmra.mrb[0].mxu0 %v1193
      %v1195 = vpop.f32.mrb[0].mxu0
      %v1196 = vadd.f32 %v1091, %v1195
      %v1197 = vpop.f32.mrb[0].mxu0
      %1198 = vmatprep.mubr.f32.mxu0 0.0
      %v1199 = vand.u32 %v509, 4294901760
      %1200 = vmatmul.mubr.f32.gmra.mrb[0].mxu0 %v1199
      %v1201 = vpop.f32.mrb[0].mxu0
      %v1202 = vadd.f32 %v1097, %v1201
      %v1203 = vpop.f32.mrb[0].mxu0
      %1204 = vmatprep.mubr.f32.mxu0 0.0
      %v1205 = vand.u32 %v512, 4294901760
      %1206 = vmatmul.mubr.f32.gmra.mrb[0].mxu0 %v1205
      %v1207 = vpop.f32.mrb[0].mxu0
      %v1208 = vadd.f32 %v1103, %v1207
      %v1209 = vpop.f32.mrb[0].mxu0
      %1210 = vmatprep.mubr.f32.mxu0 0.0
      %v1211 = vand.u32 %v515, 4294901760
      %1212 = vmatmul.mubr.f32.gmra.mrb[0].mxu0 %v1211
      %v1213 = vpop.f32.mrb[0].mxu0
      %v1214 = vadd.f32 %v1109, %v1213
      %v1215 = vpop.f32.mrb[0].mxu0
      %1216 = vdwg.mxu0
      %v1217 = vld [vmem:[%s5] sm:$0xff]
      %v1218 = vld [vmem:[%s5 + $0x8] sm:$0xff]
      %v1219 = vld [vmem:[%s5 + $0x10] sm:$0xff]
      %v1220 = vld [vmem:[%s5 + $0x18] sm:$0xff]
      %v1221 = vld [vmem:[%s5 + $0x20] sm:$0xff]
      %v1222 = vld [vmem:[%s5 + $0x28] sm:$0xff]
      %v1223 = vld [vmem:[%s6] sm:$0xff]
      %v1224 = vld [vmem:[%s6 + $0x8] sm:$0xff]
      %v1225 = vld [vmem:[%s6 + $0x10] sm:$0xff]
      %v1226 = vld [vmem:[%s6 + $0x18] sm:$0xff]
      %v1227 = vld [vmem:[%s6 + $0x20] sm:$0xff]
      %v1228 = vld [vmem:[%s6 + $0x28] sm:$0xff]
      %1230 = vset.pattern.permute.xlu0 0
      %1231 = vperm.xlu0 %1230, %v1223
      %v1232 = vpop.permute.xlu0 %1231
      %1235 = vset.pattern.permute.xlu0 0
      %1236 = vperm.xlu0 %1235, %v1224
      %v1237 = vpop.permute.xlu0 %1236
      %1240 = vset.pattern.permute.xlu0 0
      %1241 = vperm.xlu0 %1240, %v1225
      %v1242 = vpop.permute.xlu0 %1241
      %1245 = vset.pattern.permute.xlu0 0
      %1246 = vperm.xlu0 %1245, %v1226
      %v1247 = vpop.permute.xlu0 %1246
      %1250 = vset.pattern.permute.xlu0 0
      %1251 = vperm.xlu0 %1250, %v1227
      %v1252 = vpop.permute.xlu0 %1251
      %1255 = vset.pattern.permute.xlu0 0
      %1256 = vperm.xlu0 %1255, %v1228
      %v1257 = vpop.permute.xlu0 %1256
      %vm1259 = vcmask 130048
      %v1261 = vsel %vm1259, %v1217, 0
      %v1264 = vsel %vm1259, %v1218, 0
      %v1267 = vsel %vm1259, %v1219, 0
      %v1270 = vsel %vm1259, %v1220, 0
      %v1273 = vsel %vm1259, %v1221, 0
      %v1276 = vsel %vm1259, %v1222, 0
      %1278 = vmatprep.subr.mxu0 0.0
      %v1279 = vand.u32 %v1184, 4294901760
      %1280 = vmatpush1.msra.mxu0 %v1279
      %1281 = vmatprep.subr.mxu0 0.0
      %v1282 = vand.u32 %v1190, 4294901760
      %1283 = vmatpush1.msra.mxu0 %v1282
      %1284 = vmatprep.subr.mxu0 0.0
      %1285 = vmatpush1.msra.mxu0 0.0
      %1286 = vmatprep.subr.mxu0 0.0
      %1287 = vmatpush1.msra.mxu0 0.0
      %1288 = vmatprep.subr.mxu0 0.0
      %1289 = vmatpush1.msra.mxu0 0.0
      %1290 = vmatprep.subr.mxu0 0.0
      %1291 = vmatpush1.msra.mxu0 0.0
      %1292 = vmatprep.subr.mxu0 0.0
      %1293 = vmatpush1.msra.mxu0 0.0
      %1294 = vmatprep.subr.mxu0 0.0
      %1295 = vmatpush1.msra.mxu0 0.0
      %1296 = vmatprep.subr.mxu0 0.0
      %1297 = vmatpush1.msra.mxu0 0.0
      %1298 = vmatprep.subr.mxu0 0.0
      %1299 = vmatpush1.msra.mxu0 0.0
      %1300 = vmatprep.subr.mxu0 0.0
      %1301 = vmatpush1.msra.mxu0 0.0
      %1302 = vmatprep.subr.mxu0 0.0
      %1303 = vmatpush1.msra.mxu0 0.0
      %1304 = vmatprep.subr.mxu0 0.0
      %1305 = vmatpush1.msra.mxu0 0.0
      %1306 = vmatprep.subr.mxu0 0.0
      %1307 = vmatpush1.msra.mxu0 0.0
      %1308 = vmatprep.subr.mxu0 0.0
      %1309 = vmatpush1.msra.mxu0 0.0
      %1310 = vmatprep.subr.mxu0 0.0
      %1311 = vmatpush1.msra.mxu0 0.0
      %1312 = vmatprep.subr.mxu0 0.0
      %1313 = vmatpush1.msra.mxu0 0.0
      %1314 = vmatprep.subr.mxu0 0.0
      %1315 = vmatpush1.msra.mxu0 0.0
      %1316 = vmatprep.subr.mxu0 0.0
      %1317 = vmatpush1.msra.mxu0 0.0
      %1318 = vmatprep.subr.mxu0 0.0
      %1319 = vmatpush1.msra.mxu0 0.0
      %1320 = vmatprep.subr.mxu0 0.0
      %1321 = vmatpush1.msra.mxu0 0.0
      %1322 = vmatprep.subr.mxu0 0.0
      %1323 = vmatpush1.msra.mxu0 0.0
      %1324 = vmatprep.subr.mxu0 0.0
      %1325 = vmatpush1.msra.mxu0 0.0
      %1326 = vmatprep.subr.mxu0 0.0
      %1327 = vmatpush1.msra.mxu0 0.0
      %1328 = vmatprep.subr.mxu0 0.0
      %1329 = vmatpush1.msra.mxu0 0.0
      %1330 = vmatprep.subr.mxu0 0.0
      %1331 = vmatpush1.msra.mxu0 0.0
      %1332 = vmatprep.subr.mxu0 0.0
      %1333 = vmatpush1.msra.mxu0 0.0
      %1334 = vmatprep.subr.mxu0 0.0
      %1335 = vmatpush1.msra.mxu0 0.0
      %1336 = vmatprep.subr.mxu0 0.0
      %1337 = vmatpush1.msra.mxu0 0.0
      %1338 = vmatprep.subr.mxu0 0.0
      %1339 = vmatpush1.msra.mxu0 0.0
      %1340 = vmatprep.subr.mxu0 0.0
      %1341 = vmatpush1.msra.mxu0 0.0
      %1342 = vmatprep.subr.mxu0 0.0
      %1343 = vmatpush1.msra.mxu0 0.0
      %1344 = vmatprep.mubr.f32.mxu0 0.0
      %v1345 = vand.u32 %v1261, 4294901760
      %v1346 = vsub.f32 %v1261, %v1345
      %v1347 = vand.u32 %v1346, 4294901760
      %v1348 = vsub.f32 %v1346, %v1347
      %v1349 = vand.u32 %v1348, 4294901760
      %1350 = vmatmul.mubr.f32.gmra.mrb[0].mxu0 %v1349
      %v1351 = vpop.f32.mrb[0].mxu0
      %v1352 = vadd.f32 %v1232, %v1351
      %v1353 = vpop.f32.mrb[0].mxu0
      %1354 = vmatprep.mubr.f32.mxu0 0.0
      %v1355 = vand.u32 %v1264, 4294901760
      %v1356 = vsub.f32 %v1264, %v1355
      %v1357 = vand.u32 %v1356, 4294901760
      %v1358 = vsub.f32 %v1356, %v1357
      %v1359 = vand.u32 %v1358, 4294901760
      %1360 = vmatmul.mubr.f32.gmra.mrb[0].mxu0 %v1359
      %v1361 = vpop.f32.mrb[0].mxu0
      %v1362 = vadd.f32 %v1237, %v1361
      %v1363 = vpop.f32.mrb[0].mxu0
      %1364 = vmatprep.mubr.f32.mxu0 0.0
      %v1365 = vand.u32 %v1267, 4294901760
      %v1366 = vsub.f32 %v1267, %v1365
      %v1367 = vand.u32 %v1366, 4294901760
      %v1368 = vsub.f32 %v1366, %v1367
      %v1369 = vand.u32 %v1368, 4294901760
      %1370 = vmatmul.mubr.f32.gmra.mrb[0].mxu0 %v1369
      %v1371 = vpop.f32.mrb[0].mxu0
      %v1372 = vadd.f32 %v1242, %v1371
      %v1373 = vpop.f32.mrb[0].mxu0
      %1374 = vmatprep.mubr.f32.mxu0 0.0
      %v1375 = vand.u32 %v1270, 4294901760
      %v1376 = vsub.f32 %v1270, %v1375
      %v1377 = vand.u32 %v1376, 4294901760
      %v1378 = vsub.f32 %v1376, %v1377
      %v1379 = vand.u32 %v1378, 4294901760
      %1380 = vmatmul.mubr.f32.gmra.mrb[0].mxu0 %v1379
      %v1381 = vpop.f32.mrb[0].mxu0
      %v1382 = vadd.f32 %v1247, %v1381
      %v1383 = vpop.f32.mrb[0].mxu0
      %1384 = vmatprep.mubr.f32.mxu0 0.0
      %v1385 = vand.u32 %v1273, 4294901760
      %v1386 = vsub.f32 %v1273, %v1385
      %v1387 = vand.u32 %v1386, 4294901760
      %v1388 = vsub.f32 %v1386, %v1387
      %v1389 = vand.u32 %v1388, 4294901760
      %1390 = vmatmul.mubr.f32.gmra.mrb[0].mxu0 %v1389
      %v1391 = vpop.f32.mrb[0].mxu0
      %v1392 = vadd.f32 %v1252, %v1391
      %v1393 = vpop.f32.mrb[0].mxu0
      %1394 = vmatprep.mubr.f32.mxu0 0.0
      %v1395 = vand.u32 %v1276, 4294901760
      %v1396 = vsub.f32 %v1276, %v1395
      %v1397 = vand.u32 %v1396, 4294901760
      %v1398 = vsub.f32 %v1396, %v1397
      %v1399 = vand.u32 %v1398, 4294901760
      %1400 = vmatmul.mubr.f32.gmra.mrb[0].mxu0 %v1399
      %v1401 = vpop.f32.mrb[0].mxu0
      %v1402 = vadd.f32 %v1257, %v1401
      %v1403 = vpop.f32.mrb[0].mxu0
      %1404 = vdwg.mxu0
      %1405 = vmatprep.subr.mxu0 0.0
      %v1406 = vand.u32 %v1184, 4294901760
      %v1407 = vsub.f32 %v1184, %v1406
      %v1408 = vand.u32 %v1407, 4294901760
      %v1409 = vsub.f32 %v1407, %v1408
      %v1410 = vand.u32 %v1409, 4294901760
      %1411 = vmatpush1.msra.mxu0 %v1410
      %1412 = vmatprep.subr.mxu0 0.0
      %v1413 = vand.u32 %v1190, 4294901760
      %v1414 = vsub.f32 %v1190, %v1413
      %v1415 = vand.u32 %v1414, 4294901760
      %v1416 = vsub.f32 %v1414, %v1415
      %v1417 = vand.u32 %v1416, 4294901760
      %1418 = vmatpush1.msra.mxu0 %v1417
      %1419 = vmatprep.subr.mxu0 0.0
      %1420 = vmatpush1.msra.mxu0 0.0
      %1421 = vmatprep.subr.mxu0 0.0
      %1422 = vmatpush1.msra.mxu0 0.0
      %1423 = vmatprep.subr.mxu0 0.0
      %1424 = vmatpush1.msra.mxu0 0.0
      %1425 = vmatprep.subr.mxu0 0.0
      %1426 = vmatpush1.msra.mxu0 0.0
      %1427 = vmatprep.subr.mxu0 0.0
      %1428 = vmatpush1.msra.mxu0 0.0
      %1429 = vmatprep.subr.mxu0 0.0
      %1430 = vmatpush1.msra.mxu0 0.0
      %1431 = vmatprep.subr.mxu0 0.0
      %1432 = vmatpush1.msra.mxu0 0.0
      %1433 = vmatprep.subr.mxu0 0.0
      %1434 = vmatpush1.msra.mxu0 0.0
      %1435 = vmatprep.subr.mxu0 0.0
      %1436 = vmatpush1.msra.mxu0 0.0
      %1437 = vmatprep.subr.mxu0 0.0
      %1438 = vmatpush1.msra.mxu0 0.0
      %1439 = vmatprep.subr.mxu0 0.0
      %1440 = vmatpush1.msra.mxu0 0.0
      %1441 = vmatprep.subr.mxu0 0.0
      %1442 = vmatpush1.msra.mxu0 0.0
      %1443 = vmatprep.subr.mxu0 0.0
      %1444 = vmatpush1.msra.mxu0 0.0
      %1445 = vmatprep.subr.mxu0 0.0
      %1446 = vmatpush1.msra.mxu0 0.0
      %1447 = vmatprep.subr.mxu0 0.0
      %1448 = vmatpush1.msra.mxu0 0.0
      %1449 = vmatprep.subr.mxu0 0.0
      %1450 = vmatpush1.msra.mxu0 0.0
      %1451 = vmatprep.subr.mxu0 0.0
      %1452 = vmatpush1.msra.mxu0 0.0
      %1453 = vmatprep.subr.mxu0 0.0
      %1454 = vmatpush1.msra.mxu0 0.0
      %1455 = vmatprep.subr.mxu0 0.0
      %1456 = vmatpush1.msra.mxu0 0.0
      %1457 = vmatprep.subr.mxu0 0.0
      %1458 = vmatpush1.msra.mxu0 0.0
      %1459 = vmatprep.subr.mxu0 0.0
      %1460 = vmatpush1.msra.mxu0 0.0
      %1461 = vmatprep.subr.mxu0 0.0
      %1462 = vmatpush1.msra.mxu0 0.0
      %1463 = vmatprep.subr.mxu0 0.0
      %1464 = vmatpush1.msra.mxu0 0.0
      %1465 = vmatprep.subr.mxu0 0.0
      %1466 = vmatpush1.msra.mxu0 0.0
      %1467 = vmatprep.subr.mxu0 0.0
      %1468 = vmatpush1.msra.mxu0 0.0
      %1469 = vmatprep.subr.mxu0 0.0
      %1470 = vmatpush1.msra.mxu0 0.0
      %1471 = vmatprep.subr.mxu0 0.0
      %1472 = vmatpush1.msra.mxu0 0.0
      %1473 = vmatprep.subr.mxu0 0.0
      %1474 = vmatpush1.msra.mxu0 0.0
      %1475 = vmatprep.subr.mxu0 0.0
      %1476 = vmatpush1.msra.mxu0 0.0
      %1477 = vmatprep.subr.mxu0 0.0
      %1478 = vmatpush1.msra.mxu0 0.0
      %1479 = vmatprep.mubr.f32.mxu0 0.0
      %v1480 = vand.u32 %v1261, 4294901760
      %1481 = vmatmul.mubr.f32.gmra.mrb[0].mxu0 %v1480
      %v1482 = vpop.f32.mrb[0].mxu0
      %v1483 = vadd.f32 %v1352, %v1482
      %v1484 = vpop.f32.mrb[0].mxu0
      %1485 = vmatprep.mubr.f32.mxu0 0.0
      %v1486 = vand.u32 %v1264, 4294901760
      %1487 = vmatmul.mubr.f32.gmra.mrb[0].mxu0 %v1486
      %v1488 = vpop.f32.mrb[0].mxu0
      %v1489 = vadd.f32 %v1362, %v1488
      %v1490 = vpop.f32.mrb[0].mxu0
      %1491 = vmatprep.mubr.f32.mxu0 0.0
      %v1492 = vand.u32 %v1267, 4294901760
      %1493 = vmatmul.mubr.f32.gmra.mrb[0].mxu0 %v1492
      %v1494 = vpop.f32.mrb[0].mxu0
      %v1495 = vadd.f32 %v1372, %v1494
      %v1496 = vpop.f32.mrb[0].mxu0
      %1497 = vmatprep.mubr.f32.mxu0 0.0
      %v1498 = vand.u32 %v1270, 4294901760
      %1499 = vmatmul.mubr.f32.gmra.mrb[0].mxu0 %v1498
      %v1500 = vpop.f32.mrb[0].mxu0
      %v1501 = vadd.f32 %v1382, %v1500
      %v1502 = vpop.f32.mrb[0].mxu0
      %1503 = vmatprep.mubr.f32.mxu0 0.0
      %v1504 = vand.u32 %v1273, 4294901760
      %1505 = vmatmul.mubr.f32.gmra.mrb[0].mxu0 %v1504
      %v1506 = vpop.f32.mrb[0].mxu0
      %v1507 = vadd.f32 %v1392, %v1506
      %v1508 = vpop.f32.mrb[0].mxu0
      %1509 = vmatprep.mubr.f32.mxu0 0.0
      %v1510 = vand.u32 %v1276, 4294901760
      %1511 = vmatmul.mubr.f32.gmra.mrb[0].mxu0 %v1510
      %v1512 = vpop.f32.mrb[0].mxu0
      %v1513 = vadd.f32 %v1402, %v1512
      %v1514 = vpop.f32.mrb[0].mxu0
      %1515 = vdwg.mxu0
      %1516 = vmatprep.subr.mxu0 0.0
      %v1517 = vand.u32 %v1184, 4294901760
      %v1518 = vsub.f32 %v1184, %v1517
      %1519 = vmatpush1.msra.mxu0 %v1518
      %1520 = vmatprep.subr.mxu0 0.0
      %v1521 = vand.u32 %v1190, 4294901760
      %v1522 = vsub.f32 %v1190, %v1521
      %1523 = vmatpush1.msra.mxu0 %v1522
      %1524 = vmatprep.subr.mxu0 0.0
      %1525 = vmatpush1.msra.mxu0 0.0
      %1526 = vmatprep.subr.mxu0 0.0
      %1527 = vmatpush1.msra.mxu0 0.0
      %1528 = vmatprep.subr.mxu0 0.0
      %1529 = vmatpush1.msra.mxu0 0.0
      %1530 = vmatprep.subr.mxu0 0.0
      %1531 = vmatpush1.msra.mxu0 0.0
      %1532 = vmatprep.subr.mxu0 0.0
      %1533 = vmatpush1.msra.mxu0 0.0
      %1534 = vmatprep.subr.mxu0 0.0
      %1535 = vmatpush1.msra.mxu0 0.0
      %1536 = vmatprep.subr.mxu0 0.0
      %1537 = vmatpush1.msra.mxu0 0.0
      %1538 = vmatprep.subr.mxu0 0.0
      %1539 = vmatpush1.msra.mxu0 0.0
      %1540 = vmatprep.subr.mxu0 0.0
      %1541 = vmatpush1.msra.mxu0 0.0
      %1542 = vmatprep.subr.mxu0 0.0
      %1543 = vmatpush1.msra.mxu0 0.0
      %1544 = vmatprep.subr.mxu0 0.0
      %1545 = vmatpush1.msra.mxu0 0.0
      %1546 = vmatprep.subr.mxu0 0.0
      %1547 = vmatpush1.msra.mxu0 0.0
      %1548 = vmatprep.subr.mxu0 0.0
      %1549 = vmatpush1.msra.mxu0 0.0
      %1550 = vmatprep.subr.mxu0 0.0
      %1551 = vmatpush1.msra.mxu0 0.0
      %1552 = vmatprep.subr.mxu0 0.0
      %1553 = vmatpush1.msra.mxu0 0.0
      %1554 = vmatprep.subr.mxu0 0.0
      %1555 = vmatpush1.msra.mxu0 0.0
      %1556 = vmatprep.subr.mxu0 0.0
      %1557 = vmatpush1.msra.mxu0 0.0
      %1558 = vmatprep.subr.mxu0 0.0
      %1559 = vmatpush1.msra.mxu0 0.0
      %1560 = vmatprep.subr.mxu0 0.0
      %1561 = vmatpush1.msra.mxu0 0.0
      %1562 = vmatprep.subr.mxu0 0.0
      %1563 = vmatpush1.msra.mxu0 0.0
      %1564 = vmatprep.subr.mxu0 0.0
      %1565 = vmatpush1.msra.mxu0 0.0
      %1566 = vmatprep.subr.mxu0 0.0
      %1567 = vmatpush1.msra.mxu0 0.0
      %1568 = vmatprep.subr.mxu0 0.0
      %1569 = vmatpush1.msra.mxu0 0.0
      %1570 = vmatprep.subr.mxu0 0.0
      %1571 = vmatpush1.msra.mxu0 0.0
      %1572 = vmatprep.subr.mxu0 0.0
      %1573 = vmatpush1.msra.mxu0 0.0
      %1574 = vmatprep.subr.mxu0 0.0
      %1575 = vmatpush1.msra.mxu0 0.0
      %1576 = vmatprep.subr.mxu0 0.0
      %1577 = vmatpush1.msra.mxu0 0.0
      %1578 = vmatprep.subr.mxu0 0.0
      %1579 = vmatpush1.msra.mxu0 0.0
      %1580 = vmatprep.subr.mxu0 0.0
      %1581 = vmatpush1.msra.mxu0 0.0
      %1582 = vmatprep.subr.mxu0 0.0
      %1583 = vmatpush1.msra.mxu0 0.0
      %1584 = vmatprep.mubr.f32.mxu0 0.0
      %v1585 = vand.u32 %v1261, 4294901760
      %v1586 = vsub.f32 %v1261, %v1585
      %1587 = vmatmul.mubr.f32.gmra.mrb[0].mxu0 %v1586
      %v1588 = vpop.f32.mrb[0].mxu0
      %v1589 = vadd.f32 %v1483, %v1588
      %v1590 = vpop.f32.mrb[0].mxu0
      %1591 = vmatprep.mubr.f32.mxu0 0.0
      %v1592 = vand.u32 %v1264, 4294901760
      %v1593 = vsub.f32 %v1264, %v1592
      %1594 = vmatmul.mubr.f32.gmra.mrb[0].mxu0 %v1593
      %v1595 = vpop.f32.mrb[0].mxu0
      %v1596 = vadd.f32 %v1489, %v1595
      %v1597 = vpop.f32.mrb[0].mxu0
      %1598 = vmatprep.mubr.f32.mxu0 0.0
      %v1599 = vand.u32 %v1267, 4294901760
      %v1600 = vsub.f32 %v1267, %v1599
      %1601 = vmatmul.mubr.f32.gmra.mrb[0].mxu0 %v1600
      %v1602 = vpop.f32.mrb[0].mxu0
      %v1603 = vadd.f32 %v1495, %v1602
      %v1604 = vpop.f32.mrb[0].mxu0
      %1605 = vmatprep.mubr.f32.mxu0 0.0
      %v1606 = vand.u32 %v1270, 4294901760
      %v1607 = vsub.f32 %v1270, %v1606
      %1608 = vmatmul.mubr.f32.gmra.mrb[0].mxu0 %v1607
      %v1609 = vpop.f32.mrb[0].mxu0
      %v1610 = vadd.f32 %v1501, %v1609
      %v1611 = vpop.f32.mrb[0].mxu0
      %1612 = vmatprep.mubr.f32.mxu0 0.0
      %v1613 = vand.u32 %v1273, 4294901760
      %v1614 = vsub.f32 %v1273, %v1613
      %1615 = vmatmul.mubr.f32.gmra.mrb[0].mxu0 %v1614
      %v1616 = vpop.f32.mrb[0].mxu0
      %v1617 = vadd.f32 %v1507, %v1616
      %v1618 = vpop.f32.mrb[0].mxu0
      %1619 = vmatprep.mubr.f32.mxu0 0.0
      %v1620 = vand.u32 %v1276, 4294901760
      %v1621 = vsub.f32 %v1276, %v1620
      %1622 = vmatmul.mubr.f32.gmra.mrb[0].mxu0 %v1621
      %v1623 = vpop.f32.mrb[0].mxu0
      %v1624 = vadd.f32 %v1513, %v1623
      %v1625 = vpop.f32.mrb[0].mxu0
      %1626 = vdwg.mxu0
      %1627 = vmatprep.subr.mxu0 0.0
      %v1628 = vand.u32 %v1184, 4294901760
      %1629 = vmatpush1.msra.mxu0 %v1628
      %1630 = vmatprep.subr.mxu0 0.0
      %v1631 = vand.u32 %v1190, 4294901760
      %1632 = vmatpush1.msra.mxu0 %v1631
      %1633 = vmatprep.subr.mxu0 0.0
      %1634 = vmatpush1.msra.mxu0 0.0
      %1635 = vmatprep.subr.mxu0 0.0
      %1636 = vmatpush1.msra.mxu0 0.0
      %1637 = vmatprep.subr.mxu0 0.0
      %1638 = vmatpush1.msra.mxu0 0.0
      %1639 = vmatprep.subr.mxu0 0.0
      %1640 = vmatpush1.msra.mxu0 0.0
      %1641 = vmatprep.subr.mxu0 0.0
      %1642 = vmatpush1.msra.mxu0 0.0
      %1643 = vmatprep.subr.mxu0 0.0
      %1644 = vmatpush1.msra.mxu0 0.0
      %1645 = vmatprep.subr.mxu0 0.0
      %1646 = vmatpush1.msra.mxu0 0.0
      %1647 = vmatprep.subr.mxu0 0.0
      %1648 = vmatpush1.msra.mxu0 0.0
      %1649 = vmatprep.subr.mxu0 0.0
      %1650 = vmatpush1.msra.mxu0 0.0
      %1651 = vmatprep.subr.mxu0 0.0
      %1652 = vmatpush1.msra.mxu0 0.0
      %1653 = vmatprep.subr.mxu0 0.0
      %1654 = vmatpush1.msra.mxu0 0.0
      %1655 = vmatprep.subr.mxu0 0.0
      %1656 = vmatpush1.msra.mxu0 0.0
      %1657 = vmatprep.subr.mxu0 0.0
      %1658 = vmatpush1.msra.mxu0 0.0
      %1659 = vmatprep.subr.mxu0 0.0
      %1660 = vmatpush1.msra.mxu0 0.0
      %1661 = vmatprep.subr.mxu0 0.0
      %1662 = vmatpush1.msra.mxu0 0.0
      %1663 = vmatprep.subr.mxu0 0.0
      %1664 = vmatpush1.msra.mxu0 0.0
      %1665 = vmatprep.subr.mxu0 0.0
      %1666 = vmatpush1.msra.mxu0 0.0
      %1667 = vmatprep.subr.mxu0 0.0
      %1668 = vmatpush1.msra.mxu0 0.0
      %1669 = vmatprep.subr.mxu0 0.0
      %1670 = vmatpush1.msra.mxu0 0.0
      %1671 = vmatprep.subr.mxu0 0.0
      %1672 = vmatpush1.msra.mxu0 0.0
      %1673 = vmatprep.subr.mxu0 0.0
      %1674 = vmatpush1.msra.mxu0 0.0
      %1675 = vmatprep.subr.mxu0 0.0
      %1676 = vmatpush1.msra.mxu0 0.0
      %1677 = vmatprep.subr.mxu0 0.0
      %1678 = vmatpush1.msra.mxu0 0.0
      %1679 = vmatprep.subr.mxu0 0.0
      %1680 = vmatpush1.msra.mxu0 0.0
      %1681 = vmatprep.subr.mxu0 0.0
      %1682 = vmatpush1.msra.mxu0 0.0
      %1683 = vmatprep.subr.mxu0 0.0
      %1684 = vmatpush1.msra.mxu0 0.0
      %1685 = vmatprep.subr.mxu0 0.0
      %1686 = vmatpush1.msra.mxu0 0.0
      %1687 = vmatprep.subr.mxu0 0.0
      %1688 = vmatpush1.msra.mxu0 0.0
      %1689 = vmatprep.subr.mxu0 0.0
      %1690 = vmatpush1.msra.mxu0 0.0
      %1691 = vmatprep.subr.mxu0 0.0
      %1692 = vmatpush1.msra.mxu0 0.0
      %1693 = vmatprep.mubr.f32.mxu0 0.0
      %v1694 = vand.u32 %v1261, 4294901760
      %v1695 = vsub.f32 %v1261, %v1694
      %v1696 = vand.u32 %v1695, 4294901760
      %1697 = vmatmul.mubr.f32.gmra.mrb[0].mxu0 %v1696
      %v1698 = vpop.f32.mrb[0].mxu0
      %v1699 = vadd.f32 %v1589, %v1698
      %v1700 = vpop.f32.mrb[0].mxu0
      %1701 = vmatprep.mubr.f32.mxu0 0.0
      %v1702 = vand.u32 %v1264, 4294901760
      %v1703 = vsub.f32 %v1264, %v1702
      %v1704 = vand.u32 %v1703, 4294901760
      %1705 = vmatmul.mubr.f32.gmra.mrb[0].mxu0 %v1704
      %v1706 = vpop.f32.mrb[0].mxu0
      %v1707 = vadd.f32 %v1596, %v1706
      %v1708 = vpop.f32.mrb[0].mxu0
      %1709 = vmatprep.mubr.f32.mxu0 0.0
      %v1710 = vand.u32 %v1267, 4294901760
      %v1711 = vsub.f32 %v1267, %v1710
      %v1712 = vand.u32 %v1711, 4294901760
      %1713 = vmatmul.mubr.f32.gmra.mrb[0].mxu0 %v1712
      %v1714 = vpop.f32.mrb[0].mxu0
      %v1715 = vadd.f32 %v1603, %v1714
      %v1716 = vpop.f32.mrb[0].mxu0
      %1717 = vmatprep.mubr.f32.mxu0 0.0
      %v1718 = vand.u32 %v1270, 4294901760
      %v1719 = vsub.f32 %v1270, %v1718
      %v1720 = vand.u32 %v1719, 4294901760
      %1721 = vmatmul.mubr.f32.gmra.mrb[0].mxu0 %v1720
      %v1722 = vpop.f32.mrb[0].mxu0
      %v1723 = vadd.f32 %v1610, %v1722
      %v1724 = vpop.f32.mrb[0].mxu0
      %1725 = vmatprep.mubr.f32.mxu0 0.0
      %v1726 = vand.u32 %v1273, 4294901760
      %v1727 = vsub.f32 %v1273, %v1726
      %v1728 = vand.u32 %v1727, 4294901760
      %1729 = vmatmul.mubr.f32.gmra.mrb[0].mxu0 %v1728
      %v1730 = vpop.f32.mrb[0].mxu0
      %v1731 = vadd.f32 %v1617, %v1730
      %v1732 = vpop.f32.mrb[0].mxu0
      %1733 = vmatprep.mubr.f32.mxu0 0.0
      %v1734 = vand.u32 %v1276, 4294901760
      %v1735 = vsub.f32 %v1276, %v1734
      %v1736 = vand.u32 %v1735, 4294901760
      %1737 = vmatmul.mubr.f32.gmra.mrb[0].mxu0 %v1736
      %v1738 = vpop.f32.mrb[0].mxu0
      %v1739 = vadd.f32 %v1624, %v1738
      %v1740 = vpop.f32.mrb[0].mxu0
      %1741 = vdwg.mxu0
      %1742 = vmatprep.subr.mxu0 0.0
      %v1743 = vand.u32 %v1184, 4294901760
      %v1744 = vsub.f32 %v1184, %v1743
      %v1745 = vand.u32 %v1744, 4294901760
      %1746 = vmatpush1.msra.mxu0 %v1745
      %1747 = vmatprep.subr.mxu0 0.0
      %v1748 = vand.u32 %v1190, 4294901760
      %v1749 = vsub.f32 %v1190, %v1748
      %v1750 = vand.u32 %v1749, 4294901760
      %1751 = vmatpush1.msra.mxu0 %v1750
      %1752 = vmatprep.subr.mxu0 0.0
      %1753 = vmatpush1.msra.mxu0 0.0
      %1754 = vmatprep.subr.mxu0 0.0
      %1755 = vmatpush1.msra.mxu0 0.0
      %1756 = vmatprep.subr.mxu0 0.0
      %1757 = vmatpush1.msra.mxu0 0.0
      %1758 = vmatprep.subr.mxu0 0.0
      %1759 = vmatpush1.msra.mxu0 0.0
      %1760 = vmatprep.subr.mxu0 0.0
      %1761 = vmatpush1.msra.mxu0 0.0
      %1762 = vmatprep.subr.mxu0 0.0
      %1763 = vmatpush1.msra.mxu0 0.0
      %1764 = vmatprep.subr.mxu0 0.0
      %1765 = vmatpush1.msra.mxu0 0.0
      %1766 = vmatprep.subr.mxu0 0.0
      %1767 = vmatpush1.msra.mxu0 0.0
      %1768 = vmatprep.subr.mxu0 0.0
      %1769 = vmatpush1.msra.mxu0 0.0
      %1770 = vmatprep.subr.mxu0 0.0
      %1771 = vmatpush1.msra.mxu0 0.0
      %1772 = vmatprep.subr.mxu0 0.0
      %1773 = vmatpush1.msra.mxu0 0.0
      %1774 = vmatprep.subr.mxu0 0.0
      %1775 = vmatpush1.msra.mxu0 0.0
      %1776 = vmatprep.subr.mxu0 0.0
      %1777 = vmatpush1.msra.mxu0 0.0
      %1778 = vmatprep.subr.mxu0 0.0
      %1779 = vmatpush1.msra.mxu0 0.0
      %1780 = vmatprep.subr.mxu0 0.0
      %1781 = vmatpush1.msra.mxu0 0.0
      %1782 = vmatprep.subr.mxu0 0.0
      %1783 = vmatpush1.msra.mxu0 0.0
      %1784 = vmatprep.subr.mxu0 0.0
      %1785 = vmatpush1.msra.mxu0 0.0
      %1786 = vmatprep.subr.mxu0 0.0
      %1787 = vmatpush1.msra.mxu0 0.0
      %1788 = vmatprep.subr.mxu0 0.0
      %1789 = vmatpush1.msra.mxu0 0.0
      %1790 = vmatprep.subr.mxu0 0.0
      %1791 = vmatpush1.msra.mxu0 0.0
      %1792 = vmatprep.subr.mxu0 0.0
      %1793 = vmatpush1.msra.mxu0 0.0
      %1794 = vmatprep.subr.mxu0 0.0
      %1795 = vmatpush1.msra.mxu0 0.0
      %1796 = vmatprep.subr.mxu0 0.0
      %1797 = vmatpush1.msra.mxu0 0.0
      %1798 = vmatprep.subr.mxu0 0.0
      %1799 = vmatpush1.msra.mxu0 0.0
      %1800 = vmatprep.subr.mxu0 0.0
      %1801 = vmatpush1.msra.mxu0 0.0
      %1802 = vmatprep.subr.mxu0 0.0
      %1803 = vmatpush1.msra.mxu0 0.0
      %1804 = vmatprep.subr.mxu0 0.0
      %1805 = vmatpush1.msra.mxu0 0.0
      %1806 = vmatprep.subr.mxu0 0.0
      %1807 = vmatpush1.msra.mxu0 0.0
      %1808 = vmatprep.subr.mxu0 0.0
      %1809 = vmatpush1.msra.mxu0 0.0
      %1810 = vmatprep.subr.mxu0 0.0
      %1811 = vmatpush1.msra.mxu0 0.0
      %1812 = vmatprep.mubr.f32.mxu0 0.0
      %v1813 = vand.u32 %v1261, 4294901760
      %1814 = vmatmul.mubr.f32.gmra.mrb[0].mxu0 %v1813
      %v1815 = vpop.f32.mrb[0].mxu0
      %v1816 = vadd.f32 %v1699, %v1815
      %v1817 = vpop.f32.mrb[0].mxu0
      %1818 = vmatprep.mubr.f32.mxu0 0.0
      %v1819 = vand.u32 %v1264, 4294901760
      %1820 = vmatmul.mubr.f32.gmra.mrb[0].mxu0 %v1819
      %v1821 = vpop.f32.mrb[0].mxu0
      %v1822 = vadd.f32 %v1707, %v1821
      %v1823 = vpop.f32.mrb[0].mxu0
      %1824 = vmatprep.mubr.f32.mxu0 0.0
      %v1825 = vand.u32 %v1267, 4294901760
      %1826 = vmatmul.mubr.f32.gmra.mrb[0].mxu0 %v1825
      %v1827 = vpop.f32.mrb[0].mxu0
      %v1828 = vadd.f32 %v1715, %v1827
      %v1829 = vpop.f32.mrb[0].mxu0
      %1830 = vmatprep.mubr.f32.mxu0 0.0
      %v1831 = vand.u32 %v1270, 4294901760
      %1832 = vmatmul.mubr.f32.gmra.mrb[0].mxu0 %v1831
      %v1833 = vpop.f32.mrb[0].mxu0
      %v1834 = vadd.f32 %v1723, %v1833
      %v1835 = vpop.f32.mrb[0].mxu0
      %1836 = vmatprep.mubr.f32.mxu0 0.0
      %v1837 = vand.u32 %v1273, 4294901760
      %1838 = vmatmul.mubr.f32.gmra.mrb[0].mxu0 %v1837
      %v1839 = vpop.f32.mrb[0].mxu0
      %v1840 = vadd.f32 %v1731, %v1839
      %v1841 = vpop.f32.mrb[0].mxu0
      %1842 = vmatprep.mubr.f32.mxu0 0.0
      %v1843 = vand.u32 %v1276, 4294901760
      %1844 = vmatmul.mubr.f32.gmra.mrb[0].mxu0 %v1843
      %v1845 = vpop.f32.mrb[0].mxu0
      %v1846 = vadd.f32 %v1739, %v1845
      %v1847 = vpop.f32.mrb[0].mxu0
      %1848 = vdwg.mxu0
      %1849 = vmatprep.subr.mxu0 0.0
      %v1850 = vand.u32 %v1184, 4294901760
      %1851 = vmatpush1.msra.mxu0 %v1850
      %1852 = vmatprep.subr.mxu0 0.0
      %v1853 = vand.u32 %v1190, 4294901760
      %1854 = vmatpush1.msra.mxu0 %v1853
      %1855 = vmatprep.subr.mxu0 0.0
      %1856 = vmatpush1.msra.mxu0 0.0
      %1857 = vmatprep.subr.mxu0 0.0
      %1858 = vmatpush1.msra.mxu0 0.0
      %1859 = vmatprep.subr.mxu0 0.0
      %1860 = vmatpush1.msra.mxu0 0.0
      %1861 = vmatprep.subr.mxu0 0.0
      %1862 = vmatpush1.msra.mxu0 0.0
      %1863 = vmatprep.subr.mxu0 0.0
      %1864 = vmatpush1.msra.mxu0 0.0
      %1865 = vmatprep.subr.mxu0 0.0
      %1866 = vmatpush1.msra.mxu0 0.0
      %1867 = vmatprep.subr.mxu0 0.0
      %1868 = vmatpush1.msra.mxu0 0.0
      %1869 = vmatprep.subr.mxu0 0.0
      %1870 = vmatpush1.msra.mxu0 0.0
      %1871 = vmatprep.subr.mxu0 0.0
      %1872 = vmatpush1.msra.mxu0 0.0
      %1873 = vmatprep.subr.mxu0 0.0
      %1874 = vmatpush1.msra.mxu0 0.0
      %1875 = vmatprep.subr.mxu0 0.0
      %1876 = vmatpush1.msra.mxu0 0.0
      %1877 = vmatprep.subr.mxu0 0.0
      %1878 = vmatpush1.msra.mxu0 0.0
      %1879 = vmatprep.subr.mxu0 0.0
      %1880 = vmatpush1.msra.mxu0 0.0
      %1881 = vmatprep.subr.mxu0 0.0
      %1882 = vmatpush1.msra.mxu0 0.0
      %1883 = vmatprep.subr.mxu0 0.0
      %1884 = vmatpush1.msra.mxu0 0.0
      %1885 = vmatprep.subr.mxu0 0.0
      %1886 = vmatpush1.msra.mxu0 0.0
      %1887 = vmatprep.subr.mxu0 0.0
      %1888 = vmatpush1.msra.mxu0 0.0
      %1889 = vmatprep.subr.mxu0 0.0
      %1890 = vmatpush1.msra.mxu0 0.0
      %1891 = vmatprep.subr.mxu0 0.0
      %1892 = vmatpush1.msra.mxu0 0.0
      %1893 = vmatprep.subr.mxu0 0.0
      %1894 = vmatpush1.msra.mxu0 0.0
      %1895 = vmatprep.subr.mxu0 0.0
      %1896 = vmatpush1.msra.mxu0 0.0
      %1897 = vmatprep.subr.mxu0 0.0
      %1898 = vmatpush1.msra.mxu0 0.0
      %1899 = vmatprep.subr.mxu0 0.0
      %1900 = vmatpush1.msra.mxu0 0.0
      %1901 = vmatprep.subr.mxu0 0.0
      %1902 = vmatpush1.msra.mxu0 0.0
      %1903 = vmatprep.subr.mxu0 0.0
      %1904 = vmatpush1.msra.mxu0 0.0
      %1905 = vmatprep.subr.mxu0 0.0
      %1906 = vmatpush1.msra.mxu0 0.0
      %1907 = vmatprep.subr.mxu0 0.0
      %1908 = vmatpush1.msra.mxu0 0.0
      %1909 = vmatprep.subr.mxu0 0.0
      %1910 = vmatpush1.msra.mxu0 0.0
      %1911 = vmatprep.subr.mxu0 0.0
      %1912 = vmatpush1.msra.mxu0 0.0
      %1913 = vmatprep.subr.mxu0 0.0
      %1914 = vmatpush1.msra.mxu0 0.0
      %1915 = vmatprep.mubr.f32.mxu0 0.0
      %v1916 = vand.u32 %v1261, 4294901760
      %1917 = vmatmul.mubr.f32.gmra.mrb[0].mxu0 %v1916
      %v1918 = vpop.f32.mrb[0].mxu0
      %v1919 = vadd.f32 %v1816, %v1918
      %v1920 = vpop.f32.mrb[0].mxu0
      %1921 = vmatprep.mubr.f32.mxu0 0.0
      %v1922 = vand.u32 %v1264, 4294901760
      %1923 = vmatmul.mubr.f32.gmra.mrb[0].mxu0 %v1922
      %v1924 = vpop.f32.mrb[0].mxu0
      %v1925 = vadd.f32 %v1822, %v1924
      %v1926 = vpop.f32.mrb[0].mxu0
      %1927 = vmatprep.mubr.f32.mxu0 0.0
      %v1928 = vand.u32 %v1267, 4294901760
      %1929 = vmatmul.mubr.f32.gmra.mrb[0].mxu0 %v1928
      %v1930 = vpop.f32.mrb[0].mxu0
      %v1931 = vadd.f32 %v1828, %v1930
      %v1932 = vpop.f32.mrb[0].mxu0
      %1933 = vmatprep.mubr.f32.mxu0 0.0
      %v1934 = vand.u32 %v1270, 4294901760
      %1935 = vmatmul.mubr.f32.gmra.mrb[0].mxu0 %v1934
      %v1936 = vpop.f32.mrb[0].mxu0
      %v1937 = vadd.f32 %v1834, %v1936
      %v1938 = vpop.f32.mrb[0].mxu0
      %1939 = vmatprep.mubr.f32.mxu0 0.0
      %v1940 = vand.u32 %v1273, 4294901760
      %1941 = vmatmul.mubr.f32.gmra.mrb[0].mxu0 %v1940
      %v1942 = vpop.f32.mrb[0].mxu0
      %v1943 = vadd.f32 %v1840, %v1942
      %v1944 = vpop.f32.mrb[0].mxu0
      %1945 = vmatprep.mubr.f32.mxu0 0.0
      %v1946 = vand.u32 %v1276, 4294901760
      %1947 = vmatmul.mubr.f32.gmra.mrb[0].mxu0 %v1946
      %v1948 = vpop.f32.mrb[0].mxu0
      %v1949 = vadd.f32 %v1846, %v1948
      %v1950 = vpop.f32.mrb[0].mxu0
      %1951 = vdwg.mxu0
      %v1952 = vld [vmem:[%s7] sm:$0xff]
      %v1953 = vld [vmem:[%s7 + $0x8] sm:$0xff]
      %v1954 = vld [vmem:[%s7 + $0x10] sm:$0xff]
      %v1955 = vld [vmem:[%s7 + $0x18] sm:$0xff]
      %v1956 = vld [vmem:[%s7 + $0x20] sm:$0xff]
      %v1957 = vld [vmem:[%s7 + $0x28] sm:$0xff]
      %v1958 = vld [vmem:[%s7 + $0x30] sm:$0xff]
      %v1959 = vld [vmem:[%s7 + $0x38] sm:$0xff]
      %v1960 = vld [vmem:[%s8] sm:$0xff]
      %v1961 = vld [vmem:[%s8 + $0x8] sm:$0xff]
      %v1962 = vld [vmem:[%s8 + $0x10] sm:$0xff]
      %v1963 = vld [vmem:[%s8 + $0x18] sm:$0xff]
      %v1964 = vld [vmem:[%s8 + $0x20] sm:$0xff]
      %v1965 = vld [vmem:[%s8 + $0x28] sm:$0xff]
      %v1966 = vld [vmem:[%s8 + $0x30] sm:$0xff]
      %v1967 = vld [vmem:[%s8 + $0x38] sm:$0xff]
      %1969 = vset.pattern.permute.xlu0 0
      %1970 = vperm.xlu0 %1969, %v1960
      %v1971 = vpop.permute.xlu0 %1970
      %1974 = vset.pattern.permute.xlu0 0
      %1975 = vperm.xlu0 %1974, %v1961
      %v1976 = vpop.permute.xlu0 %1975
      %1979 = vset.pattern.permute.xlu0 0
      %1980 = vperm.xlu0 %1979, %v1962
      %v1981 = vpop.permute.xlu0 %1980
      %1984 = vset.pattern.permute.xlu0 0
      %1985 = vperm.xlu0 %1984, %v1963
      %v1986 = vpop.permute.xlu0 %1985
      %1989 = vset.pattern.permute.xlu0 0
      %1990 = vperm.xlu0 %1989, %v1964
      %v1991 = vpop.permute.xlu0 %1990
      %1994 = vset.pattern.permute.xlu0 0
      %1995 = vperm.xlu0 %1994, %v1965
      %v1996 = vpop.permute.xlu0 %1995
      %1999 = vset.pattern.permute.xlu0 0
      %2000 = vperm.xlu0 %1999, %v1966
      %v2001 = vpop.permute.xlu0 %2000
      %2004 = vset.pattern.permute.xlu0 0
      %2005 = vperm.xlu0 %2004, %v1967
      %v2006 = vpop.permute.xlu0 %2005
      %v2009 = vsel %vm1259, %v1952, 0
      %v2012 = vsel %vm1259, %v1953, 0
      %v2015 = vsel %vm1259, %v1954, 0
      %v2018 = vsel %vm1259, %v1955, 0
      %v2021 = vsel %vm1259, %v1956, 0
      %v2024 = vsel %vm1259, %v1957, 0
      %v2027 = vsel %vm1259, %v1958, 0
      %v2030 = vsel %vm1259, %v1959, 0
      %2032 = vmatprep.subr.mxu0 0.0
      %v2033 = vand.u32 %v1196, 4294901760
      %2034 = vmatpush1.msra.mxu0 %v2033
      %2035 = vmatprep.subr.mxu0 0.0
      %v2036 = vand.u32 %v1202, 4294901760
      %2037 = vmatpush1.msra.mxu0 %v2036
      %2038 = vmatprep.subr.mxu0 0.0
      %2039 = vmatpush1.msra.mxu0 0.0
      %2040 = vmatprep.subr.mxu0 0.0
      %2041 = vmatpush1.msra.mxu0 0.0
      %2042 = vmatprep.subr.mxu0 0.0
      %2043 = vmatpush1.msra.mxu0 0.0
      %2044 = vmatprep.subr.mxu0 0.0
      %2045 = vmatpush1.msra.mxu0 0.0
      %2046 = vmatprep.subr.mxu0 0.0
      %2047 = vmatpush1.msra.mxu0 0.0
      %2048 = vmatprep.subr.mxu0 0.0
      %2049 = vmatpush1.msra.mxu0 0.0
      %2050 = vmatprep.subr.mxu0 0.0
      %2051 = vmatpush1.msra.mxu0 0.0
      %2052 = vmatprep.subr.mxu0 0.0
      %2053 = vmatpush1.msra.mxu0 0.0
      %2054 = vmatprep.subr.mxu0 0.0
      %2055 = vmatpush1.msra.mxu0 0.0
      %2056 = vmatprep.subr.mxu0 0.0
      %2057 = vmatpush1.msra.mxu0 0.0
      %2058 = vmatprep.subr.mxu0 0.0
      %2059 = vmatpush1.msra.mxu0 0.0
      %2060 = vmatprep.subr.mxu0 0.0
      %2061 = vmatpush1.msra.mxu0 0.0
      %2062 = vmatprep.subr.mxu0 0.0
      %2063 = vmatpush1.msra.mxu0 0.0
      %2064 = vmatprep.subr.mxu0 0.0
      %2065 = vmatpush1.msra.mxu0 0.0
      %2066 = vmatprep.subr.mxu0 0.0
      %2067 = vmatpush1.msra.mxu0 0.0
      %2068 = vmatprep.subr.mxu0 0.0
      %2069 = vmatpush1.msra.mxu0 0.0
      %2070 = vmatprep.subr.mxu0 0.0
      %2071 = vmatpush1.msra.mxu0 0.0
      %2072 = vmatprep.subr.mxu0 0.0
      %2073 = vmatpush1.msra.mxu0 0.0
      %2074 = vmatprep.subr.mxu0 0.0
      %2075 = vmatpush1.msra.mxu0 0.0
      %2076 = vmatprep.subr.mxu0 0.0
      %2077 = vmatpush1.msra.mxu0 0.0
      %2078 = vmatprep.subr.mxu0 0.0
      %2079 = vmatpush1.msra.mxu0 0.0
      %2080 = vmatprep.subr.mxu0 0.0
      %2081 = vmatpush1.msra.mxu0 0.0
      %2082 = vmatprep.subr.mxu0 0.0
      %2083 = vmatpush1.msra.mxu0 0.0
      %2084 = vmatprep.subr.mxu0 0.0
      %2085 = vmatpush1.msra.mxu0 0.0
      %2086 = vmatprep.subr.mxu0 0.0
      %2087 = vmatpush1.msra.mxu0 0.0
      %2088 = vmatprep.subr.mxu0 0.0
      %2089 = vmatpush1.msra.mxu0 0.0
      %2090 = vmatprep.subr.mxu0 0.0
      %2091 = vmatpush1.msra.mxu0 0.0
      %2092 = vmatprep.subr.mxu0 0.0
      %2093 = vmatpush1.msra.mxu0 0.0
      %2094 = vmatprep.subr.mxu0 0.0
      %2095 = vmatpush1.msra.mxu0 0.0
      %2096 = vmatprep.subr.mxu0 0.0
      %2097 = vmatpush1.msra.mxu0 0.0
      %2098 = vmatprep.mubr.f32.mxu0 0.0
      %v2099 = vand.u32 %v2009, 4294901760
      %v2100 = vsub.f32 %v2009, %v2099
      %v2101 = vand.u32 %v2100, 4294901760
      %v2102 = vsub.f32 %v2100, %v2101
      %v2103 = vand.u32 %v2102, 4294901760
      %2104 = vmatmul.mubr.f32.gmra.mrb[0].mxu0 %v2103
      %v2105 = vpop.f32.mrb[0].mxu0
      %v2106 = vadd.f32 %v1971, %v2105
      %v2107 = vpop.f32.mrb[0].mxu0
      %2108 = vmatprep.mubr.f32.mxu0 0.0
      %v2109 = vand.u32 %v2012, 4294901760
      %v2110 = vsub.f32 %v2012, %v2109
      %v2111 = vand.u32 %v2110, 4294901760
      %v2112 = vsub.f32 %v2110, %v2111
      %v2113 = vand.u32 %v2112, 4294901760
      %2114 = vmatmul.mubr.f32.gmra.mrb[0].mxu0 %v2113
      %v2115 = vpop.f32.mrb[0].mxu0
      %v2116 = vadd.f32 %v1976, %v2115
      %v2117 = vpop.f32.mrb[0].mxu0
      %2118 = vmatprep.mubr.f32.mxu0 0.0
      %v2119 = vand.u32 %v2015, 4294901760
      %v2120 = vsub.f32 %v2015, %v2119
      %v2121 = vand.u32 %v2120, 4294901760
      %v2122 = vsub.f32 %v2120, %v2121
      %v2123 = vand.u32 %v2122, 4294901760
      %2124 = vmatmul.mubr.f32.gmra.mrb[0].mxu0 %v2123
      %v2125 = vpop.f32.mrb[0].mxu0
      %v2126 = vadd.f32 %v1981, %v2125
      %v2127 = vpop.f32.mrb[0].mxu0
      %2128 = vmatprep.mubr.f32.mxu0 0.0
      %v2129 = vand.u32 %v2018, 4294901760
      %v2130 = vsub.f32 %v2018, %v2129
      %v2131 = vand.u32 %v2130, 4294901760
      %v2132 = vsub.f32 %v2130, %v2131
      %v2133 = vand.u32 %v2132, 4294901760
      %2134 = vmatmul.mubr.f32.gmra.mrb[0].mxu0 %v2133
      %v2135 = vpop.f32.mrb[0].mxu0
      %v2136 = vadd.f32 %v1986, %v2135
      %v2137 = vpop.f32.mrb[0].mxu0
      %2138 = vmatprep.mubr.f32.mxu0 0.0
      %v2139 = vand.u32 %v2021, 4294901760
      %v2140 = vsub.f32 %v2021, %v2139
      %v2141 = vand.u32 %v2140, 4294901760
      %v2142 = vsub.f32 %v2140, %v2141
      %v2143 = vand.u32 %v2142, 4294901760
      %2144 = vmatmul.mubr.f32.gmra.mrb[0].mxu0 %v2143
      %v2145 = vpop.f32.mrb[0].mxu0
      %v2146 = vadd.f32 %v1991, %v2145
      %v2147 = vpop.f32.mrb[0].mxu0
      %2148 = vmatprep.mubr.f32.mxu0 0.0
      %v2149 = vand.u32 %v2024, 4294901760
      %v2150 = vsub.f32 %v2024, %v2149
      %v2151 = vand.u32 %v2150, 4294901760
      %v2152 = vsub.f32 %v2150, %v2151
      %v2153 = vand.u32 %v2152, 4294901760
      %2154 = vmatmul.mubr.f32.gmra.mrb[0].mxu0 %v2153
      %v2155 = vpop.f32.mrb[0].mxu0
      %v2156 = vadd.f32 %v1996, %v2155
      %v2157 = vpop.f32.mrb[0].mxu0
      %2158 = vmatprep.mubr.f32.mxu0 0.0
      %v2159 = vand.u32 %v2027, 4294901760
      %v2160 = vsub.f32 %v2027, %v2159
      %v2161 = vand.u32 %v2160, 4294901760
      %v2162 = vsub.f32 %v2160, %v2161
      %v2163 = vand.u32 %v2162, 4294901760
      %2164 = vmatmul.mubr.f32.gmra.mrb[0].mxu0 %v2163
      %v2165 = vpop.f32.mrb[0].mxu0
      %v2166 = vadd.f32 %v2001, %v2165
      %v2167 = vpop.f32.mrb[0].mxu0
      %2168 = vmatprep.mubr.f32.mxu0 0.0
      %v2169 = vand.u32 %v2030, 4294901760
      %v2170 = vsub.f32 %v2030, %v2169
      %v2171 = vand.u32 %v2170, 4294901760
      %v2172 = vsub.f32 %v2170, %v2171
      %v2173 = vand.u32 %v2172, 4294901760
      %2174 = vmatmul.mubr.f32.gmra.mrb[0].mxu0 %v2173
      %v2175 = vpop.f32.mrb[0].mxu0
      %v2176 = vadd.f32 %v2006, %v2175
      %v2177 = vpop.f32.mrb[0].mxu0
      %2178 = vdwg.mxu0
      %2179 = vmatprep.subr.mxu0 0.0
      %v2180 = vand.u32 %v1196, 4294901760
      %v2181 = vsub.f32 %v1196, %v2180
      %v2182 = vand.u32 %v2181, 4294901760
      %v2183 = vsub.f32 %v2181, %v2182
      %v2184 = vand.u32 %v2183, 4294901760
      %2185 = vmatpush1.msra.mxu0 %v2184
      %2186 = vmatprep.subr.mxu0 0.0
      %v2187 = vand.u32 %v1202, 4294901760
      %v2188 = vsub.f32 %v1202, %v2187
      %v2189 = vand.u32 %v2188, 4294901760
      %v2190 = vsub.f32 %v2188, %v2189
      %v2191 = vand.u32 %v2190, 4294901760
      %2192 = vmatpush1.msra.mxu0 %v2191
      %2193 = vmatprep.subr.mxu0 0.0
      %2194 = vmatpush1.msra.mxu0 0.0
      %2195 = vmatprep.subr.mxu0 0.0
      %2196 = vmatpush1.msra.mxu0 0.0
      %2197 = vmatprep.subr.mxu0 0.0
      %2198 = vmatpush1.msra.mxu0 0.0
      %2199 = vmatprep.subr.mxu0 0.0
      %2200 = vmatpush1.msra.mxu0 0.0
      %2201 = vmatprep.subr.mxu0 0.0
      %2202 = vmatpush1.msra.mxu0 0.0
      %2203 = vmatprep.subr.mxu0 0.0
      %2204 = vmatpush1.msra.mxu0 0.0
      %2205 = vmatprep.subr.mxu0 0.0
      %2206 = vmatpush1.msra.mxu0 0.0
      %2207 = vmatprep.subr.mxu0 0.0
      %2208 = vmatpush1.msra.mxu0 0.0
      %2209 = vmatprep.subr.mxu0 0.0
      %2210 = vmatpush1.msra.mxu0 0.0
      %2211 = vmatprep.subr.mxu0 0.0
      %2212 = vmatpush1.msra.mxu0 0.0
      %2213 = vmatprep.subr.mxu0 0.0
      %2214 = vmatpush1.msra.mxu0 0.0
      %2215 = vmatprep.subr.mxu0 0.0
      %2216 = vmatpush1.msra.mxu0 0.0
      %2217 = vmatprep.subr.mxu0 0.0
      %2218 = vmatpush1.msra.mxu0 0.0
      %2219 = vmatprep.subr.mxu0 0.0
      %2220 = vmatpush1.msra.mxu0 0.0
      %2221 = vmatprep.subr.mxu0 0.0
      %2222 = vmatpush1.msra.mxu0 0.0
      %2223 = vmatprep.subr.mxu0 0.0
      %2224 = vmatpush1.msra.mxu0 0.0
      %2225 = vmatprep.subr.mxu0 0.0
      %2226 = vmatpush1.msra.mxu0 0.0
      %2227 = vmatprep.subr.mxu0 0.0
      %2228 = vmatpush1.msra.mxu0 0.0
      %2229 = vmatprep.subr.mxu0 0.0
      %2230 = vmatpush1.msra.mxu0 0.0
      %2231 = vmatprep.subr.mxu0 0.0
      %2232 = vmatpush1.msra.mxu0 0.0
      %2233 = vmatprep.subr.mxu0 0.0
      %2234 = vmatpush1.msra.mxu0 0.0
      %2235 = vmatprep.subr.mxu0 0.0
      %2236 = vmatpush1.msra.mxu0 0.0
      %2237 = vmatprep.subr.mxu0 0.0
      %2238 = vmatpush1.msra.mxu0 0.0
      %2239 = vmatprep.subr.mxu0 0.0
      %2240 = vmatpush1.msra.mxu0 0.0
      %2241 = vmatprep.subr.mxu0 0.0
      %2242 = vmatpush1.msra.mxu0 0.0
      %2243 = vmatprep.subr.mxu0 0.0
      %2244 = vmatpush1.msra.mxu0 0.0
      %2245 = vmatprep.subr.mxu0 0.0
      %2246 = vmatpush1.msra.mxu0 0.0
      %2247 = vmatprep.subr.mxu0 0.0
      %2248 = vmatpush1.msra.mxu0 0.0
      %2249 = vmatprep.subr.mxu0 0.0
      %2250 = vmatpush1.msra.mxu0 0.0
      %2251 = vmatprep.subr.mxu0 0.0
      %2252 = vmatpush1.msra.mxu0 0.0
      %2253 = vmatprep.mubr.f32.mxu0 0.0
      %v2254 = vand.u32 %v2009, 4294901760
      %2255 = vmatmul.mubr.f32.gmra.mrb[0].mxu0 %v2254
      %v2256 = vpop.f32.mrb[0].mxu0
      %v2257 = vadd.f32 %v2106, %v2256
      %v2258 = vpop.f32.mrb[0].mxu0
      %2259 = vmatprep.mubr.f32.mxu0 0.0
      %v2260 = vand.u32 %v2012, 4294901760
      %2261 = vmatmul.mubr.f32.gmra.mrb[0].mxu0 %v2260
      %v2262 = vpop.f32.mrb[0].mxu0
      %v2263 = vadd.f32 %v2116, %v2262
      %v2264 = vpop.f32.mrb[0].mxu0
      %2265 = vmatprep.mubr.f32.mxu0 0.0
      %v2266 = vand.u32 %v2015, 4294901760
      %2267 = vmatmul.mubr.f32.gmra.mrb[0].mxu0 %v2266
      %v2268 = vpop.f32.mrb[0].mxu0
      %v2269 = vadd.f32 %v2126, %v2268
      %v2270 = vpop.f32.mrb[0].mxu0
      %2271 = vmatprep.mubr.f32.mxu0 0.0
      %v2272 = vand.u32 %v2018, 4294901760
      %2273 = vmatmul.mubr.f32.gmra.mrb[0].mxu0 %v2272
      %v2274 = vpop.f32.mrb[0].mxu0
      %v2275 = vadd.f32 %v2136, %v2274
      %v2276 = vpop.f32.mrb[0].mxu0
      %2277 = vmatprep.mubr.f32.mxu0 0.0
      %v2278 = vand.u32 %v2021, 4294901760
      %2279 = vmatmul.mubr.f32.gmra.mrb[0].mxu0 %v2278
      %v2280 = vpop.f32.mrb[0].mxu0
      %v2281 = vadd.f32 %v2146, %v2280
      %v2282 = vpop.f32.mrb[0].mxu0
      %2283 = vmatprep.mubr.f32.mxu0 0.0
      %v2284 = vand.u32 %v2024, 4294901760
      %2285 = vmatmul.mubr.f32.gmra.mrb[0].mxu0 %v2284
      %v2286 = vpop.f32.mrb[0].mxu0
      %v2287 = vadd.f32 %v2156, %v2286
      %v2288 = vpop.f32.mrb[0].mxu0
      %2289 = vmatprep.mubr.f32.mxu0 0.0
      %v2290 = vand.u32 %v2027, 4294901760
      %2291 = vmatmul.mubr.f32.gmra.mrb[0].mxu0 %v2290
      %v2292 = vpop.f32.mrb[0].mxu0
      %v2293 = vadd.f32 %v2166, %v2292
      %v2294 = vpop.f32.mrb[0].mxu0
      %2295 = vmatprep.mubr.f32.mxu0 0.0
      %v2296 = vand.u32 %v2030, 4294901760
      %2297 = vmatmul.mubr.f32.gmra.mrb[0].mxu0 %v2296
      %v2298 = vpop.f32.mrb[0].mxu0
      %v2299 = vadd.f32 %v2176, %v2298
      %v2300 = vpop.f32.mrb[0].mxu0
      %2301 = vdwg.mxu0
      %2302 = vmatprep.subr.mxu0 0.0
      %v2303 = vand.u32 %v1196, 4294901760
      %v2304 = vsub.f32 %v1196, %v2303
      %2305 = vmatpush1.msra.mxu0 %v2304
      %2306 = vmatprep.subr.mxu0 0.0
      %v2307 = vand.u32 %v1202, 4294901760
      %v2308 = vsub.f32 %v1202, %v2307
      %2309 = vmatpush1.msra.mxu0 %v2308
      %2310 = vmatprep.subr.mxu0 0.0
      %2311 = vmatpush1.msra.mxu0 0.0
      %2312 = vmatprep.subr.mxu0 0.0
      %2313 = vmatpush1.msra.mxu0 0.0
      %2314 = vmatprep.subr.mxu0 0.0
      %2315 = vmatpush1.msra.mxu0 0.0
      %2316 = vmatprep.subr.mxu0 0.0
      %2317 = vmatpush1.msra.mxu0 0.0
      %2318 = vmatprep.subr.mxu0 0.0
      %2319 = vmatpush1.msra.mxu0 0.0
      %2320 = vmatprep.subr.mxu0 0.0
      %2321 = vmatpush1.msra.mxu0 0.0
      %2322 = vmatprep.subr.mxu0 0.0
      %2323 = vmatpush1.msra.mxu0 0.0
      %2324 = vmatprep.subr.mxu0 0.0
      %2325 = vmatpush1.msra.mxu0 0.0
      %2326 = vmatprep.subr.mxu0 0.0
      %2327 = vmatpush1.msra.mxu0 0.0
      %2328 = vmatprep.subr.mxu0 0.0
      %2329 = vmatpush1.msra.mxu0 0.0
      %2330 = vmatprep.subr.mxu0 0.0
      %2331 = vmatpush1.msra.mxu0 0.0
      %2332 = vmatprep.subr.mxu0 0.0
      %2333 = vmatpush1.msra.mxu0 0.0
      %2334 = vmatprep.subr.mxu0 0.0
      %2335 = vmatpush1.msra.mxu0 0.0
      %2336 = vmatprep.subr.mxu0 0.0
      %2337 = vmatpush1.msra.mxu0 0.0
      %2338 = vmatprep.subr.mxu0 0.0
      %2339 = vmatpush1.msra.mxu0 0.0
      %2340 = vmatprep.subr.mxu0 0.0
      %2341 = vmatpush1.msra.mxu0 0.0
      %2342 = vmatprep.subr.mxu0 0.0
      %2343 = vmatpush1.msra.mxu0 0.0
      %2344 = vmatprep.subr.mxu0 0.0
      %2345 = vmatpush1.msra.mxu0 0.0
      %2346 = vmatprep.subr.mxu0 0.0
      %2347 = vmatpush1.msra.mxu0 0.0
      %2348 = vmatprep.subr.mxu0 0.0
      %2349 = vmatpush1.msra.mxu0 0.0
      %2350 = vmatprep.subr.mxu0 0.0
      %2351 = vmatpush1.msra.mxu0 0.0
      %2352 = vmatprep.subr.mxu0 0.0
      %2353 = vmatpush1.msra.mxu0 0.0
      %2354 = vmatprep.subr.mxu0 0.0
      %2355 = vmatpush1.msra.mxu0 0.0
      %2356 = vmatprep.subr.mxu0 0.0
      %2357 = vmatpush1.msra.mxu0 0.0
      %2358 = vmatprep.subr.mxu0 0.0
      %2359 = vmatpush1.msra.mxu0 0.0
      %2360 = vmatprep.subr.mxu0 0.0
      %2361 = vmatpush1.msra.mxu0 0.0
      %2362 = vmatprep.subr.mxu0 0.0
      %2363 = vmatpush1.msra.mxu0 0.0
      %2364 = vmatprep.subr.mxu0 0.0
      %2365 = vmatpush1.msra.mxu0 0.0
      %2366 = vmatprep.subr.mxu0 0.0
      %2367 = vmatpush1.msra.mxu0 0.0
      %2368 = vmatprep.subr.mxu0 0.0
      %2369 = vmatpush1.msra.mxu0 0.0
      %2370 = vmatprep.mubr.f32.mxu0 0.0
      %v2371 = vand.u32 %v2009, 4294901760
      %v2372 = vsub.f32 %v2009, %v2371
      %2373 = vmatmul.mubr.f32.gmra.mrb[0].mxu0 %v2372
      %v2374 = vpop.f32.mrb[0].mxu0
      %v2375 = vadd.f32 %v2257, %v2374
      %v2376 = vpop.f32.mrb[0].mxu0
      %2377 = vmatprep.mubr.f32.mxu0 0.0
      %v2378 = vand.u32 %v2012, 4294901760
      %v2379 = vsub.f32 %v2012, %v2378
      %2380 = vmatmul.mubr.f32.gmra.mrb[0].mxu0 %v2379
      %v2381 = vpop.f32.mrb[0].mxu0
      %v2382 = vadd.f32 %v2263, %v2381
      %v2383 = vpop.f32.mrb[0].mxu0
      %2384 = vmatprep.mubr.f32.mxu0 0.0
      %v2385 = vand.u32 %v2015, 4294901760
      %v2386 = vsub.f32 %v2015, %v2385
      %2387 = vmatmul.mubr.f32.gmra.mrb[0].mxu0 %v2386
      %v2388 = vpop.f32.mrb[0].mxu0
      %v2389 = vadd.f32 %v2269, %v2388
      %v2390 = vpop.f32.mrb[0].mxu0
      %2391 = vmatprep.mubr.f32.mxu0 0.0
      %v2392 = vand.u32 %v2018, 4294901760
      %v2393 = vsub.f32 %v2018, %v2392
      %2394 = vmatmul.mubr.f32.gmra.mrb[0].mxu0 %v2393
      %v2395 = vpop.f32.mrb[0].mxu0
      %v2396 = vadd.f32 %v2275, %v2395
      %v2397 = vpop.f32.mrb[0].mxu0
      %2398 = vmatprep.mubr.f32.mxu0 0.0
      %v2399 = vand.u32 %v2021, 4294901760
      %v2400 = vsub.f32 %v2021, %v2399
      %2401 = vmatmul.mubr.f32.gmra.mrb[0].mxu0 %v2400
      %v2402 = vpop.f32.mrb[0].mxu0
      %v2403 = vadd.f32 %v2281, %v2402
      %v2404 = vpop.f32.mrb[0].mxu0
      %2405 = vmatprep.mubr.f32.mxu0 0.0
      %v2406 = vand.u32 %v2024, 4294901760
      %v2407 = vsub.f32 %v2024, %v2406
      %2408 = vmatmul.mubr.f32.gmra.mrb[0].mxu0 %v2407
      %v2409 = vpop.f32.mrb[0].mxu0
      %v2410 = vadd.f32 %v2287, %v2409
      %v2411 = vpop.f32.mrb[0].mxu0
      %2412 = vmatprep.mubr.f32.mxu0 0.0
      %v2413 = vand.u32 %v2027, 4294901760
      %v2414 = vsub.f32 %v2027, %v2413
      %2415 = vmatmul.mubr.f32.gmra.mrb[0].mxu0 %v2414
      %v2416 = vpop.f32.mrb[0].mxu0
      %v2417 = vadd.f32 %v2293, %v2416
      %v2418 = vpop.f32.mrb[0].mxu0
      %2419 = vmatprep.mubr.f32.mxu0 0.0
      %v2420 = vand.u32 %v2030, 4294901760
      %v2421 = vsub.f32 %v2030, %v2420
      %2422 = vmatmul.mubr.f32.gmra.mrb[0].mxu0 %v2421
      %v2423 = vpop.f32.mrb[0].mxu0
      %v2424 = vadd.f32 %v2299, %v2423
      %v2425 = vpop.f32.mrb[0].mxu0
      %2426 = vdwg.mxu0
      %2427 = vmatprep.subr.mxu0 0.0
      %v2428 = vand.u32 %v1196, 4294901760
      %2429 = vmatpush1.msra.mxu0 %v2428
      %2430 = vmatprep.subr.mxu0 0.0
      %v2431 = vand.u32 %v1202, 4294901760
      %2432 = vmatpush1.msra.mxu0 %v2431
      %2433 = vmatprep.subr.mxu0 0.0
      %2434 = vmatpush1.msra.mxu0 0.0
      %2435 = vmatprep.subr.mxu0 0.0
      %2436 = vmatpush1.msra.mxu0 0.0
      %2437 = vmatprep.subr.mxu0 0.0
      %2438 = vmatpush1.msra.mxu0 0.0
      %2439 = vmatprep.subr.mxu0 0.0
      %2440 = vmatpush1.msra.mxu0 0.0
      %2441 = vmatprep.subr.mxu0 0.0
      %2442 = vmatpush1.msra.mxu0 0.0
      %2443 = vmatprep.subr.mxu0 0.0
      %2444 = vmatpush1.msra.mxu0 0.0
      %2445 = vmatprep.subr.mxu0 0.0
      %2446 = vmatpush1.msra.mxu0 0.0
      %2447 = vmatprep.subr.mxu0 0.0
      %2448 = vmatpush1.msra.mxu0 0.0
      %2449 = vmatprep.subr.mxu0 0.0
      %2450 = vmatpush1.msra.mxu0 0.0
      %2451 = vmatprep.subr.mxu0 0.0
      %2452 = vmatpush1.msra.mxu0 0.0
      %2453 = vmatprep.subr.mxu0 0.0
      %2454 = vmatpush1.msra.mxu0 0.0
      %2455 = vmatprep.subr.mxu0 0.0
      %2456 = vmatpush1.msra.mxu0 0.0
      %2457 = vmatprep.subr.mxu0 0.0
      %2458 = vmatpush1.msra.mxu0 0.0
      %2459 = vmatprep.subr.mxu0 0.0
      %2460 = vmatpush1.msra.mxu0 0.0
      %2461 = vmatprep.subr.mxu0 0.0
      %2462 = vmatpush1.msra.mxu0 0.0
      %2463 = vmatprep.subr.mxu0 0.0
      %2464 = vmatpush1.msra.mxu0 0.0
      %2465 = vmatprep.subr.mxu0 0.0
      %2466 = vmatpush1.msra.mxu0 0.0
      %2467 = vmatprep.subr.mxu0 0.0
      %2468 = vmatpush1.msra.mxu0 0.0
      %2469 = vmatprep.subr.mxu0 0.0
      %2470 = vmatpush1.msra.mxu0 0.0
      %2471 = vmatprep.subr.mxu0 0.0
      %2472 = vmatpush1.msra.mxu0 0.0
      %2473 = vmatprep.subr.mxu0 0.0
      %2474 = vmatpush1.msra.mxu0 0.0
      %2475 = vmatprep.subr.mxu0 0.0
      %2476 = vmatpush1.msra.mxu0 0.0
      %2477 = vmatprep.subr.mxu0 0.0
      %2478 = vmatpush1.msra.mxu0 0.0
      %2479 = vmatprep.subr.mxu0 0.0
      %2480 = vmatpush1.msra.mxu0 0.0
      %2481 = vmatprep.subr.mxu0 0.0
      %2482 = vmatpush1.msra.mxu0 0.0
      %2483 = vmatprep.subr.mxu0 0.0
      %2484 = vmatpush1.msra.mxu0 0.0
      %2485 = vmatprep.subr.mxu0 0.0
      %2486 = vmatpush1.msra.mxu0 0.0
      %2487 = vmatprep.subr.mxu0 0.0
      %2488 = vmatpush1.msra.mxu0 0.0
      %2489 = vmatprep.subr.mxu0 0.0
      %2490 = vmatpush1.msra.mxu0 0.0
      %2491 = vmatprep.subr.mxu0 0.0
      %2492 = vmatpush1.msra.mxu0 0.0
      %2493 = vmatprep.mubr.f32.mxu0 0.0
      %v2494 = vand.u32 %v2009, 4294901760
      %v2495 = vsub.f32 %v2009, %v2494
      %v2496 = vand.u32 %v2495, 4294901760
      %2497 = vmatmul.mubr.f32.gmra.mrb[0].mxu0 %v2496
      %v2498 = vpop.f32.mrb[0].mxu0
      %v2499 = vadd.f32 %v2375, %v2498
      %v2500 = vpop.f32.mrb[0].mxu0
      %2501 = vmatprep.mubr.f32.mxu0 0.0
      %v2502 = vand.u32 %v2012, 4294901760
      %v2503 = vsub.f32 %v2012, %v2502
      %v2504 = vand.u32 %v2503, 4294901760
      %2505 = vmatmul.mubr.f32.gmra.mrb[0].mxu0 %v2504
      %v2506 = vpop.f32.mrb[0].mxu0
      %v2507 = vadd.f32 %v2382, %v2506
      %v2508 = vpop.f32.mrb[0].mxu0
      %2509 = vmatprep.mubr.f32.mxu0 0.0
      %v2510 = vand.u32 %v2015, 4294901760
      %v2511 = vsub.f32 %v2015, %v2510
      %v2512 = vand.u32 %v2511, 4294901760
      %2513 = vmatmul.mubr.f32.gmra.mrb[0].mxu0 %v2512
      %v2514 = vpop.f32.mrb[0].mxu0
      %v2515 = vadd.f32 %v2389, %v2514
      %v2516 = vpop.f32.mrb[0].mxu0
      %2517 = vmatprep.mubr.f32.mxu0 0.0
      %v2518 = vand.u32 %v2018, 4294901760
      %v2519 = vsub.f32 %v2018, %v2518
      %v2520 = vand.u32 %v2519, 4294901760
      %2521 = vmatmul.mubr.f32.gmra.mrb[0].mxu0 %v2520
      %v2522 = vpop.f32.mrb[0].mxu0
      %v2523 = vadd.f32 %v2396, %v2522
      %v2524 = vpop.f32.mrb[0].mxu0
      %2525 = vmatprep.mubr.f32.mxu0 0.0
      %v2526 = vand.u32 %v2021, 4294901760
      %v2527 = vsub.f32 %v2021, %v2526
      %v2528 = vand.u32 %v2527, 4294901760
      %2529 = vmatmul.mubr.f32.gmra.mrb[0].mxu0 %v2528
      %v2530 = vpop.f32.mrb[0].mxu0
      %v2531 = vadd.f32 %v2403, %v2530
      %v2532 = vpop.f32.mrb[0].mxu0
      %2533 = vmatprep.mubr.f32.mxu0 0.0
      %v2534 = vand.u32 %v2024, 4294901760
      %v2535 = vsub.f32 %v2024, %v2534
      %v2536 = vand.u32 %v2535, 4294901760
      %2537 = vmatmul.mubr.f32.gmra.mrb[0].mxu0 %v2536
      %v2538 = vpop.f32.mrb[0].mxu0
      %v2539 = vadd.f32 %v2410, %v2538
      %v2540 = vpop.f32.mrb[0].mxu0
      %2541 = vmatprep.mubr.f32.mxu0 0.0
      %v2542 = vand.u32 %v2027, 4294901760
      %v2543 = vsub.f32 %v2027, %v2542
      %v2544 = vand.u32 %v2543, 4294901760
      %2545 = vmatmul.mubr.f32.gmra.mrb[0].mxu0 %v2544
      %v2546 = vpop.f32.mrb[0].mxu0
      %v2547 = vadd.f32 %v2417, %v2546
      %v2548 = vpop.f32.mrb[0].mxu0
      %2549 = vmatprep.mubr.f32.mxu0 0.0
      %v2550 = vand.u32 %v2030, 4294901760
      %v2551 = vsub.f32 %v2030, %v2550
      %v2552 = vand.u32 %v2551, 4294901760
      %2553 = vmatmul.mubr.f32.gmra.mrb[0].mxu0 %v2552
      %v2554 = vpop.f32.mrb[0].mxu0
      %v2555 = vadd.f32 %v2424, %v2554
      %v2556 = vpop.f32.mrb[0].mxu0
      %2557 = vdwg.mxu0
      %2558 = vmatprep.subr.mxu0 0.0
      %v2559 = vand.u32 %v1196, 4294901760
      %v2560 = vsub.f32 %v1196, %v2559
      %v2561 = vand.u32 %v2560, 4294901760
      %2562 = vmatpush1.msra.mxu0 %v2561
      %2563 = vmatprep.subr.mxu0 0.0
      %v2564 = vand.u32 %v1202, 4294901760
      %v2565 = vsub.f32 %v1202, %v2564
      %v2566 = vand.u32 %v2565, 4294901760
      %2567 = vmatpush1.msra.mxu0 %v2566
      %2568 = vmatprep.subr.mxu0 0.0
      %2569 = vmatpush1.msra.mxu0 0.0
      %2570 = vmatprep.subr.mxu0 0.0
      %2571 = vmatpush1.msra.mxu0 0.0
      %2572 = vmatprep.subr.mxu0 0.0
      %2573 = vmatpush1.msra.mxu0 0.0
      %2574 = vmatprep.subr.mxu0 0.0
      %2575 = vmatpush1.msra.mxu0 0.0
      %2576 = vmatprep.subr.mxu0 0.0
      %2577 = vmatpush1.msra.mxu0 0.0
      %2578 = vmatprep.subr.mxu0 0.0
      %2579 = vmatpush1.msra.mxu0 0.0
      %2580 = vmatprep.subr.mxu0 0.0
      %2581 = vmatpush1.msra.mxu0 0.0
      %2582 = vmatprep.subr.mxu0 0.0
      %2583 = vmatpush1.msra.mxu0 0.0
      %2584 = vmatprep.subr.mxu0 0.0
      %2585 = vmatpush1.msra.mxu0 0.0
      %2586 = vmatprep.subr.mxu0 0.0
      %2587 = vmatpush1.msra.mxu0 0.0
      %2588 = vmatprep.subr.mxu0 0.0
      %2589 = vmatpush1.msra.mxu0 0.0
      %2590 = vmatprep.subr.mxu0 0.0
      %2591 = vmatpush1.msra.mxu0 0.0
      %2592 = vmatprep.subr.mxu0 0.0
      %2593 = vmatpush1.msra.mxu0 0.0
      %2594 = vmatprep.subr.mxu0 0.0
      %2595 = vmatpush1.msra.mxu0 0.0
      %2596 = vmatprep.subr.mxu0 0.0
      %2597 = vmatpush1.msra.mxu0 0.0
      %2598 = vmatprep.subr.mxu0 0.0
      %2599 = vmatpush1.msra.mxu0 0.0
      %2600 = vmatprep.subr.mxu0 0.0
      %2601 = vmatpush1.msra.mxu0 0.0
      %2602 = vmatprep.subr.mxu0 0.0
      %2603 = vmatpush1.msra.mxu0 0.0
      %2604 = vmatprep.subr.mxu0 0.0
      %2605 = vmatpush1.msra.mxu0 0.0
      %2606 = vmatprep.subr.mxu0 0.0
      %2607 = vmatpush1.msra.mxu0 0.0
      %2608 = vmatprep.subr.mxu0 0.0
      %2609 = vmatpush1.msra.mxu0 0.0
      %2610 = vmatprep.subr.mxu0 0.0
      %2611 = vmatpush1.msra.mxu0 0.0
      %2612 = vmatprep.subr.mxu0 0.0
      %2613 = vmatpush1.msra.mxu0 0.0
      %2614 = vmatprep.subr.mxu0 0.0
      %2615 = vmatpush1.msra.mxu0 0.0
      %2616 = vmatprep.subr.mxu0 0.0
      %2617 = vmatpush1.msra.mxu0 0.0
      %2618 = vmatprep.subr.mxu0 0.0
      %2619 = vmatpush1.msra.mxu0 0.0
      %2620 = vmatprep.subr.mxu0 0.0
      %2621 = vmatpush1.msra.mxu0 0.0
      %2622 = vmatprep.subr.mxu0 0.0
      %2623 = vmatpush1.msra.mxu0 0.0
      %2624 = vmatprep.subr.mxu0 0.0
      %2625 = vmatpush1.msra.mxu0 0.0
      %2626 = vmatprep.subr.mxu0 0.0
      %2627 = vmatpush1.msra.mxu0 0.0
      %2628 = vmatprep.mubr.f32.mxu0 0.0
      %v2629 = vand.u32 %v2009, 4294901760
      %2630 = vmatmul.mubr.f32.gmra.mrb[0].mxu0 %v2629
      %v2631 = vpop.f32.mrb[0].mxu0
      %v2632 = vadd.f32 %v2499, %v2631
      %v2633 = vpop.f32.mrb[0].mxu0
      %2634 = vmatprep.mubr.f32.mxu0 0.0
      %v2635 = vand.u32 %v2012, 4294901760
      %2636 = vmatmul.mubr.f32.gmra.mrb[0].mxu0 %v2635
      %v2637 = vpop.f32.mrb[0].mxu0
      %v2638 = vadd.f32 %v2507, %v2637
      %v2639 = vpop.f32.mrb[0].mxu0
      %2640 = vmatprep.mubr.f32.mxu0 0.0
      %v2641 = vand.u32 %v2015, 4294901760
      %2642 = vmatmul.mubr.f32.gmra.mrb[0].mxu0 %v2641
      %v2643 = vpop.f32.mrb[0].mxu0
      %v2644 = vadd.f32 %v2515, %v2643
      %v2645 = vpop.f32.mrb[0].mxu0
      %2646 = vmatprep.mubr.f32.mxu0 0.0
      %v2647 = vand.u32 %v2018, 4294901760
      %2648 = vmatmul.mubr.f32.gmra.mrb[0].mxu0 %v2647
      %v2649 = vpop.f32.mrb[0].mxu0
      %v2650 = vadd.f32 %v2523, %v2649
      %v2651 = vpop.f32.mrb[0].mxu0
      %2652 = vmatprep.mubr.f32.mxu0 0.0
      %v2653 = vand.u32 %v2021, 4294901760
      %2654 = vmatmul.mubr.f32.gmra.mrb[0].mxu0 %v2653
      %v2655 = vpop.f32.mrb[0].mxu0
      %v2656 = vadd.f32 %v2531, %v2655
      %v2657 = vpop.f32.mrb[0].mxu0
      %2658 = vmatprep.mubr.f32.mxu0 0.0
      %v2659 = vand.u32 %v2024, 4294901760
      %2660 = vmatmul.mubr.f32.gmra.mrb[0].mxu0 %v2659
      %v2661 = vpop.f32.mrb[0].mxu0
      %v2662 = vadd.f32 %v2539, %v2661
      %v2663 = vpop.f32.mrb[0].mxu0
      %2664 = vmatprep.mubr.f32.mxu0 0.0
      %v2665 = vand.u32 %v2027, 4294901760
      %2666 = vmatmul.mubr.f32.gmra.mrb[0].mxu0 %v2665
      %v2667 = vpop.f32.mrb[0].mxu0
      %v2668 = vadd.f32 %v2547, %v2667
      %v2669 = vpop.f32.mrb[0].mxu0
      %2670 = vmatprep.mubr.f32.mxu0 0.0
      %v2671 = vand.u32 %v2030, 4294901760
      %2672 = vmatmul.mubr.f32.gmra.mrb[0].mxu0 %v2671
      %v2673 = vpop.f32.mrb[0].mxu0
      %v2674 = vadd.f32 %v2555, %v2673
      %v2675 = vpop.f32.mrb[0].mxu0
      %2676 = vdwg.mxu0
      %2677 = vmatprep.subr.mxu0 0.0
      %v2678 = vand.u32 %v1196, 4294901760
      %2679 = vmatpush1.msra.mxu0 %v2678
      %2680 = vmatprep.subr.mxu0 0.0
      %v2681 = vand.u32 %v1202, 4294901760
      %2682 = vmatpush1.msra.mxu0 %v2681
      %2683 = vmatprep.subr.mxu0 0.0
      %2684 = vmatpush1.msra.mxu0 0.0
      %2685 = vmatprep.subr.mxu0 0.0
      %2686 = vmatpush1.msra.mxu0 0.0
      %2687 = vmatprep.subr.mxu0 0.0
      %2688 = vmatpush1.msra.mxu0 0.0
      %2689 = vmatprep.subr.mxu0 0.0
      %2690 = vmatpush1.msra.mxu0 0.0
      %2691 = vmatprep.subr.mxu0 0.0
      %2692 = vmatpush1.msra.mxu0 0.0
      %2693 = vmatprep.subr.mxu0 0.0
      %2694 = vmatpush1.msra.mxu0 0.0
      %2695 = vmatprep.subr.mxu0 0.0
      %2696 = vmatpush1.msra.mxu0 0.0
      %2697 = vmatprep.subr.mxu0 0.0
      %2698 = vmatpush1.msra.mxu0 0.0
      %2699 = vmatprep.subr.mxu0 0.0
      %2700 = vmatpush1.msra.mxu0 0.0
      %2701 = vmatprep.subr.mxu0 0.0
      %2702 = vmatpush1.msra.mxu0 0.0
      %2703 = vmatprep.subr.mxu0 0.0
      %2704 = vmatpush1.msra.mxu0 0.0
      %2705 = vmatprep.subr.mxu0 0.0
      %2706 = vmatpush1.msra.mxu0 0.0
      %2707 = vmatprep.subr.mxu0 0.0
      %2708 = vmatpush1.msra.mxu0 0.0
      %2709 = vmatprep.subr.mxu0 0.0
      %2710 = vmatpush1.msra.mxu0 0.0
      %2711 = vmatprep.subr.mxu0 0.0
      %2712 = vmatpush1.msra.mxu0 0.0
      %2713 = vmatprep.subr.mxu0 0.0
      %2714 = vmatpush1.msra.mxu0 0.0
      %2715 = vmatprep.subr.mxu0 0.0
      %2716 = vmatpush1.msra.mxu0 0.0
      %2717 = vmatprep.subr.mxu0 0.0
      %2718 = vmatpush1.msra.mxu0 0.0
      %2719 = vmatprep.subr.mxu0 0.0
      %2720 = vmatpush1.msra.mxu0 0.0
      %2721 = vmatprep.subr.mxu0 0.0
      %2722 = vmatpush1.msra.mxu0 0.0
      %2723 = vmatprep.subr.mxu0 0.0
      %2724 = vmatpush1.msra.mxu0 0.0
      %2725 = vmatprep.subr.mxu0 0.0
      %2726 = vmatpush1.msra.mxu0 0.0
      %2727 = vmatprep.subr.mxu0 0.0
      %2728 = vmatpush1.msra.mxu0 0.0
      %2729 = vmatprep.subr.mxu0 0.0
      %2730 = vmatpush1.msra.mxu0 0.0
      %2731 = vmatprep.subr.mxu0 0.0
      %2732 = vmatpush1.msra.mxu0 0.0
      %2733 = vmatprep.subr.mxu0 0.0
      %2734 = vmatpush1.msra.mxu0 0.0
      %2735 = vmatprep.subr.mxu0 0.0
      %2736 = vmatpush1.msra.mxu0 0.0
      %2737 = vmatprep.subr.mxu0 0.0
      %2738 = vmatpush1.msra.mxu0 0.0
      %2739 = vmatprep.subr.mxu0 0.0
      %2740 = vmatpush1.msra.mxu0 0.0
      %2741 = vmatprep.subr.mxu0 0.0
      %2742 = vmatpush1.msra.mxu0 0.0
      %2743 = vmatprep.mubr.f32.mxu0 0.0
      %v2744 = vand.u32 %v2009, 4294901760
      %2745 = vmatmul.mubr.f32.gmra.mrb[0].mxu0 %v2744
      %v2746 = vpop.f32.mrb[0].mxu0
      %v2747 = vadd.f32 %v2632, %v2746
      %v2748 = vpop.f32.mrb[0].mxu0
      %2749 = vmatprep.mubr.f32.mxu0 0.0
      %v2750 = vand.u32 %v2012, 4294901760
      %2751 = vmatmul.mubr.f32.gmra.mrb[0].mxu0 %v2750
      %v2752 = vpop.f32.mrb[0].mxu0
      %v2753 = vadd.f32 %v2638, %v2752
      %v2754 = vpop.f32.mrb[0].mxu0
      %2755 = vmatprep.mubr.f32.mxu0 0.0
      %v2756 = vand.u32 %v2015, 4294901760
      %2757 = vmatmul.mubr.f32.gmra.mrb[0].mxu0 %v2756
      %v2758 = vpop.f32.mrb[0].mxu0
      %v2759 = vadd.f32 %v2644, %v2758
      %v2760 = vpop.f32.mrb[0].mxu0
      %2761 = vmatprep.mubr.f32.mxu0 0.0
      %v2762 = vand.u32 %v2018, 4294901760
      %2763 = vmatmul.mubr.f32.gmra.mrb[0].mxu0 %v2762
      %v2764 = vpop.f32.mrb[0].mxu0
      %v2765 = vadd.f32 %v2650, %v2764
      %v2766 = vpop.f32.mrb[0].mxu0
      %2767 = vmatprep.mubr.f32.mxu0 0.0
      %v2768 = vand.u32 %v2021, 4294901760
      %2769 = vmatmul.mubr.f32.gmra.mrb[0].mxu0 %v2768
      %v2770 = vpop.f32.mrb[0].mxu0
      %v2771 = vadd.f32 %v2656, %v2770
      %v2772 = vpop.f32.mrb[0].mxu0
      %2773 = vmatprep.mubr.f32.mxu0 0.0
      %v2774 = vand.u32 %v2024, 4294901760
      %2775 = vmatmul.mubr.f32.gmra.mrb[0].mxu0 %v2774
      %v2776 = vpop.f32.mrb[0].mxu0
      %v2777 = vadd.f32 %v2662, %v2776
      %v2778 = vpop.f32.mrb[0].mxu0
      %2779 = vmatprep.mubr.f32.mxu0 0.0
      %v2780 = vand.u32 %v2027, 4294901760
      %2781 = vmatmul.mubr.f32.gmra.mrb[0].mxu0 %v2780
      %v2782 = vpop.f32.mrb[0].mxu0
      %v2783 = vadd.f32 %v2668, %v2782
      %v2784 = vpop.f32.mrb[0].mxu0
      %2785 = vmatprep.mubr.f32.mxu0 0.0
      %v2786 = vand.u32 %v2030, 4294901760
      %2787 = vmatmul.mubr.f32.gmra.mrb[0].mxu0 %v2786
      %v2788 = vpop.f32.mrb[0].mxu0
      %v2789 = vadd.f32 %v2674, %v2788
      %v2790 = vpop.f32.mrb[0].mxu0
      %2791 = vdwg.mxu0
      %v2792 = vld [vmem:[%s439] sm:$0x3]
      %v2793 = vld [vmem:[%s443] sm:$0x3]
      %v2795 = vcombine.high %v1943, %v1943
      %v2797 = vunpack.c.l.s4 1983009808
      %v2798 = vunpack.c.0.s8 %v2797
      %v2799 = vlaneseq
      %v2800 = vshrl.u32 %v2799, 7
      %v2801 = vsub.s32 %v2798, %v2800
      %v2802 = vrot.slane %v1943, %v2801
      %v2804 = vunpack.c.l.s4 1983009808
      %v2805 = vunpack.c.0.s8 %v2804
      %v2806 = vlaneseq
      %v2807 = vshrl.u32 %v2806, 7
      %v2808 = vsub.s32 %v2805, %v2807
      %v2809 = vrot.slane %v2795, %v2808
      %v2810 = vcombine.high %v2802, %v2802
      %v2811 = vcombine.high %v2809, %v2809
      %v2817 = vcombine.high %v1949, %v1949
      %v2819 = vunpack.c.l.s4 1983009808
      %v2820 = vunpack.c.0.s8 %v2819
      %v2821 = vlaneseq
      %v2822 = vshrl.u32 %v2821, 7
      %v2823 = vsub.s32 %v2820, %v2822
      %v2824 = vrot.slane %v1949, %v2823
      %v2826 = vunpack.c.l.s4 1983009808
      %v2827 = vunpack.c.0.s8 %v2826
      %v2828 = vlaneseq
      %v2829 = vshrl.u32 %v2828, 7
      %v2830 = vsub.s32 %v2827, %v2829
      %v2831 = vrot.slane %v2817, %v2830
      %v2832 = vcombine.high %v2824, %v2824
      %v2833 = vcombine.high %v2831, %v2831
      %v2838 = vmul.f32 %v2802, %v2792
      %v2839 = vmul.f32 %v2810, %v2792
      %v2840 = vmul.f32 %v2809, %v2792
      %v2841 = vmul.f32 %v2811, %v2792
      %v2842 = vmul.f32 %v2824, %v2793
      %v2843 = vmul.f32 %v2832, %v2793
      %v2844 = vmul.f32 %v2831, %v2793
      %v2845 = vmul.f32 %v2833, %v2793
      %v2846 = vsub.f32 %v2838, %v2842
      %v2847 = vsub.f32 %v2839, %v2843
      %v2848 = vsub.f32 %v2840, %v2844
      %v2849 = vsub.f32 %v2841, %v2845
      %v2850 = vmul.f32 %v2824, %v2792
      %v2851 = vmul.f32 %v2832, %v2792
      %v2852 = vmul.f32 %v2831, %v2792
      %v2853 = vmul.f32 %v2833, %v2792
      %v2854 = vmul.f32 %v2802, %v2793
      %v2855 = vmul.f32 %v2810, %v2793
      %v2856 = vmul.f32 %v2809, %v2793
      %v2857 = vmul.f32 %v2811, %v2793
      %v2858 = vadd.f32 %v2850, %v2854
      %v2859 = vadd.f32 %v2851, %v2855
      %v2860 = vadd.f32 %v2852, %v2856
      %v2861 = vadd.f32 %v2853, %v2857
      %v2863 = vcombine.high %v1208, %v1208
      %v2865 = vunpack.c.l.s4 1983009808
      %v2866 = vunpack.c.0.s8 %v2865
      %v2867 = vlaneseq
      %v2868 = vshrl.u32 %v2867, 7
      %v2869 = vsub.s32 %v2866, %v2868
      %v2870 = vrot.slane %v1208, %v2869
      %v2872 = vunpack.c.l.s4 1983009808
      %v2873 = vunpack.c.0.s8 %v2872
      %v2874 = vlaneseq
      %v2875 = vshrl.u32 %v2874, 7
      %v2876 = vsub.s32 %v2873, %v2875
      %v2877 = vrot.slane %v2863, %v2876
      %v2878 = vcombine.high %v2870, %v2870
      %v2879 = vcombine.high %v2877, %v2877
      %v2885 = vcombine.high %v1214, %v1214
      %v2887 = vunpack.c.l.s4 1983009808
      %v2888 = vunpack.c.0.s8 %v2887
      %v2889 = vlaneseq
      %v2890 = vshrl.u32 %v2889, 7
      %v2891 = vsub.s32 %v2888, %v2890
      %v2892 = vrot.slane %v1214, %v2891
      %v2894 = vunpack.c.l.s4 1983009808
      %v2895 = vunpack.c.0.s8 %v2894
      %v2896 = vlaneseq
      %v2897 = vshrl.u32 %v2896, 7
      %v2898 = vsub.s32 %v2895, %v2897
      %v2899 = vrot.slane %v2885, %v2898
      %v2900 = vcombine.high %v2892, %v2892
      %v2901 = vcombine.high %v2899, %v2899
      %v2906 = vmul.f32 %v2870, %v2792
      %v2907 = vmul.f32 %v2878, %v2792
      %v2908 = vmul.f32 %v2877, %v2792
      %v2909 = vmul.f32 %v2879, %v2792
      %v2910 = vmul.f32 %v2892, %v2793
      %v2911 = vmul.f32 %v2900, %v2793
      %v2912 = vmul.f32 %v2899, %v2793
      %v2913 = vmul.f32 %v2901, %v2793
      %v2914 = vsub.f32 %v2906, %v2910
      %v2915 = vsub.f32 %v2907, %v2911
      %v2916 = vsub.f32 %v2908, %v2912
      %v2917 = vsub.f32 %v2909, %v2913
      %v2918 = vmul.f32 %v2892, %v2792
      %v2919 = vmul.f32 %v2900, %v2792
      %v2920 = vmul.f32 %v2899, %v2792
      %v2921 = vmul.f32 %v2901, %v2792
      %v2922 = vmul.f32 %v2870, %v2793
      %v2923 = vmul.f32 %v2878, %v2793
      %v2924 = vmul.f32 %v2877, %v2793
      %v2925 = vmul.f32 %v2879, %v2793
      %v2926 = vadd.f32 %v2918, %v2922
      %v2927 = vadd.f32 %v2919, %v2923
      %v2928 = vadd.f32 %v2920, %v2924
      %v2929 = vadd.f32 %v2921, %v2925
      %v2930 = vmul.f32 %v1919, %v2747
      %v2931 = vmul.f32 %v1925, %v2747
      %v2932 = vmul.f32 %v1931, %v2747
      %v2933 = vmul.f32 %v1937, %v2747
      %vm2934 = vcmask 64512
      %v2935 = vsel %vm2934, %v2930, 0.0
      %v2936 = vrot.slane %v2935, 4
      %v2937 = vadd.f32 %v2935, %v2936
      %v2938 = vrot.slane %v2937, 2
      %v2939 = vadd.f32 %v2937, %v2938
      %v2940 = vrot.slane %v2939, 1
      %v2941 = vadd.f32 %v2939, %v2940
      %v2942 = vsel %vm2934, %v2931, 0.0
      %v2943 = vrot.slane %v2942, 4
      %v2944 = vadd.f32 %v2942, %v2943
      %v2945 = vrot.slane %v2944, 2
      %v2946 = vadd.f32 %v2944, %v2945
      %v2947 = vrot.slane %v2946, 1
      %v2948 = vadd.f32 %v2946, %v2947
      %v2949 = vsel %vm2934, %v2932, 0.0
      %v2950 = vrot.slane %v2949, 4
      %v2951 = vadd.f32 %v2949, %v2950
      %v2952 = vrot.slane %v2951, 2
      %v2953 = vadd.f32 %v2951, %v2952
      %v2954 = vrot.slane %v2953, 1
      %v2955 = vadd.f32 %v2953, %v2954
      %v2956 = vsel %vm2934, %v2933, 0.0
      %v2957 = vrot.slane %v2956, 4
      %v2958 = vadd.f32 %v2956, %v2957
      %v2959 = vrot.slane %v2958, 2
      %v2960 = vadd.f32 %v2958, %v2959
      %v2961 = vrot.slane %v2960, 1
      %v2962 = vadd.f32 %v2960, %v2961
      %v2963 = vmul.f32 %v2846, %v2914
      %v2964 = vmul.f32 %v2847, %v2914
      %v2965 = vmul.f32 %v2848, %v2914
      %v2966 = vmul.f32 %v2849, %v2914
      %vm2967 = vcmask 58368
      %v2968 = vsel %vm2967, %v2963, 0.0
      %v2969 = vrot.slane %v2968, 4
      %v2970 = vadd.f32 %v2968, %v2969
      %v2971 = vrot.slane %v2970, 2
      %v2972 = vadd.f32 %v2970, %v2971
      %v2973 = vrot.slane %v2972, 1
      %v2974 = vadd.f32 %v2972, %v2973
      %v2975 = vsel %vm2967, %v2964, 0.0
      %v2976 = vrot.slane %v2975, 4
      %v2977 = vadd.f32 %v2975, %v2976
      %v2978 = vrot.slane %v2977, 2
      %v2979 = vadd.f32 %v2977, %v2978
      %v2980 = vrot.slane %v2979, 1
      %v2981 = vadd.f32 %v2979, %v2980
      %v2982 = vsel %vm2967, %v2965, 0.0
      %v2983 = vrot.slane %v2982, 4
      %v2984 = vadd.f32 %v2982, %v2983
      %v2985 = vrot.slane %v2984, 2
      %v2986 = vadd.f32 %v2984, %v2985
      %v2987 = vrot.slane %v2986, 1
      %v2988 = vadd.f32 %v2986, %v2987
      %v2989 = vsel %vm2967, %v2966, 0.0
      %v2990 = vrot.slane %v2989, 4
      %v2991 = vadd.f32 %v2989, %v2990
      %v2992 = vrot.slane %v2991, 2
      %v2993 = vadd.f32 %v2991, %v2992
      %v2994 = vrot.slane %v2993, 1
      %v2995 = vadd.f32 %v2993, %v2994
      %v2996 = vadd.f32 %v2941, %v2974
      %v2997 = vadd.f32 %v2948, %v2981
      %v2998 = vadd.f32 %v2955, %v2988
      %v2999 = vadd.f32 %v2962, %v2995
      %v3000 = vmul.f32 %v2858, %v2926
      %v3001 = vmul.f32 %v2859, %v2926
      %v3002 = vmul.f32 %v2860, %v2926
      %v3003 = vmul.f32 %v2861, %v2926
      %v3004 = vsel %vm2967, %v3000, 0.0
      %v3005 = vrot.slane %v3004, 4
      %v3006 = vadd.f32 %v3004, %v3005
      %v3007 = vrot.slane %v3006, 2
      %v3008 = vadd.f32 %v3006, %v3007
      %v3009 = vrot.slane %v3008, 1
      %v3010 = vadd.f32 %v3008, %v3009
      %v3011 = vsel %vm2967, %v3001, 0.0
      %v3012 = vrot.slane %v3011, 4
      %v3013 = vadd.f32 %v3011, %v3012
      %v3014 = vrot.slane %v3013, 2
      %v3015 = vadd.f32 %v3013, %v3014
      %v3016 = vrot.slane %v3015, 1
      %v3017 = vadd.f32 %v3015, %v3016
      %v3018 = vsel %vm2967, %v3002, 0.0
      %v3019 = vrot.slane %v3018, 4
      %v3020 = vadd.f32 %v3018, %v3019
      %v3021 = vrot.slane %v3020, 2
      %v3022 = vadd.f32 %v3020, %v3021
      %v3023 = vrot.slane %v3022, 1
      %v3024 = vadd.f32 %v3022, %v3023
      %v3025 = vsel %vm2967, %v3003, 0.0
      %v3026 = vrot.slane %v3025, 4
      %v3027 = vadd.f32 %v3025, %v3026
      %v3028 = vrot.slane %v3027, 2
      %v3029 = vadd.f32 %v3027, %v3028
      %v3030 = vrot.slane %v3029, 1
      %v3031 = vadd.f32 %v3029, %v3030
      %v3032 = vadd.f32 %v2996, %v3010
      %v3033 = vadd.f32 %v2997, %v3017
      %v3034 = vadd.f32 %v2998, %v3024
      %v3035 = vadd.f32 %v2999, %v3031
      %v3036 = vmul.f32 %v1919, %v2753
      %v3037 = vmul.f32 %v1925, %v2753
      %v3038 = vmul.f32 %v1931, %v2753
      %v3039 = vmul.f32 %v1937, %v2753
      %v3040 = vsel %vm2934, %v3036, 0.0
      %v3041 = vrot.slane %v3040, 4
      %v3042 = vadd.f32 %v3040, %v3041
      %v3043 = vrot.slane %v3042, 2
      %v3044 = vadd.f32 %v3042, %v3043
      %v3045 = vrot.slane %v3044, 1
      %v3046 = vadd.f32 %v3044, %v3045
      %v3047 = vsel %vm2934, %v3037, 0.0
      %v3048 = vrot.slane %v3047, 4
      %v3049 = vadd.f32 %v3047, %v3048
      %v3050 = vrot.slane %v3049, 2
      %v3051 = vadd.f32 %v3049, %v3050
      %v3052 = vrot.slane %v3051, 1
      %v3053 = vadd.f32 %v3051, %v3052
      %v3054 = vsel %vm2934, %v3038, 0.0
      %v3055 = vrot.slane %v3054, 4
      %v3056 = vadd.f32 %v3054, %v3055
      %v3057 = vrot.slane %v3056, 2
      %v3058 = vadd.f32 %v3056, %v3057
      %v3059 = vrot.slane %v3058, 1
      %v3060 = vadd.f32 %v3058, %v3059
      %v3061 = vsel %vm2934, %v3039, 0.0
      %v3062 = vrot.slane %v3061, 4
      %v3063 = vadd.f32 %v3061, %v3062
      %v3064 = vrot.slane %v3063, 2
      %v3065 = vadd.f32 %v3063, %v3064
      %v3066 = vrot.slane %v3065, 1
      %v3067 = vadd.f32 %v3065, %v3066
      %v3068 = vmul.f32 %v2846, %v2915
      %v3069 = vmul.f32 %v2847, %v2915
      %v3070 = vmul.f32 %v2848, %v2915
      %v3071 = vmul.f32 %v2849, %v2915
      %v3072 = vsel %vm2967, %v3068, 0.0
      %v3073 = vrot.slane %v3072, 4
      %v3074 = vadd.f32 %v3072, %v3073
      %v3075 = vrot.slane %v3074, 2
      %v3076 = vadd.f32 %v3074, %v3075
      %v3077 = vrot.slane %v3076, 1
      %v3078 = vadd.f32 %v3076, %v3077
      %v3079 = vsel %vm2967, %v3069, 0.0
      %v3080 = vrot.slane %v3079, 4
      %v3081 = vadd.f32 %v3079, %v3080
      %v3082 = vrot.slane %v3081, 2
      %v3083 = vadd.f32 %v3081, %v3082
      %v3084 = vrot.slane %v3083, 1
      %v3085 = vadd.f32 %v3083, %v3084
      %v3086 = vsel %vm2967, %v3070, 0.0
      %v3087 = vrot.slane %v3086, 4
      %v3088 = vadd.f32 %v3086, %v3087
      %v3089 = vrot.slane %v3088, 2
      %v3090 = vadd.f32 %v3088, %v3089
      %v3091 = vrot.slane %v3090, 1
      %v3092 = vadd.f32 %v3090, %v3091
      %v3093 = vsel %vm2967, %v3071, 0.0
      %v3094 = vrot.slane %v3093, 4
      %v3095 = vadd.f32 %v3093, %v3094
      %v3096 = vrot.slane %v3095, 2
      %v3097 = vadd.f32 %v3095, %v3096
      %v3098 = vrot.slane %v3097, 1
      %v3099 = vadd.f32 %v3097, %v3098
      %v3100 = vadd.f32 %v3046, %v3078
      %v3101 = vadd.f32 %v3053, %v3085
      %v3102 = vadd.f32 %v3060, %v3092
      %v3103 = vadd.f32 %v3067, %v3099
      %v3104 = vmul.f32 %v2858, %v2927
      %v3105 = vmul.f32 %v2859, %v2927
      %v3106 = vmul.f32 %v2860, %v2927
      %v3107 = vmul.f32 %v2861, %v2927
      %v3108 = vsel %vm2967, %v3104, 0.0
      %v3109 = vrot.slane %v3108, 4
      %v3110 = vadd.f32 %v3108, %v3109
      %v3111 = vrot.slane %v3110, 2
      %v3112 = vadd.f32 %v3110, %v3111
      %v3113 = vrot.slane %v3112, 1
      %v3114 = vadd.f32 %v3112, %v3113
      %v3115 = vsel %vm2967, %v3105, 0.0
      %v3116 = vrot.slane %v3115, 4
      %v3117 = vadd.f32 %v3115, %v3116
      %v3118 = vrot.slane %v3117, 2
      %v3119 = vadd.f32 %v3117, %v3118
      %v3120 = vrot.slane %v3119, 1
      %v3121 = vadd.f32 %v3119, %v3120
      %v3122 = vsel %vm2967, %v3106, 0.0
      %v3123 = vrot.slane %v3122, 4
      %v3124 = vadd.f32 %v3122, %v3123
      %v3125 = vrot.slane %v3124, 2
      %v3126 = vadd.f32 %v3124, %v3125
      %v3127 = vrot.slane %v3126, 1
      %v3128 = vadd.f32 %v3126, %v3127
      %v3129 = vsel %vm2967, %v3107, 0.0
      %v3130 = vrot.slane %v3129, 4
      %v3131 = vadd.f32 %v3129, %v3130
      %v3132 = vrot.slane %v3131, 2
      %v3133 = vadd.f32 %v3131, %v3132
      %v3134 = vrot.slane %v3133, 1
      %v3135 = vadd.f32 %v3133, %v3134
      %v3136 = vadd.f32 %v3100, %v3114
      %v3137 = vadd.f32 %v3101, %v3121
      %v3138 = vadd.f32 %v3102, %v3128
      %v3139 = vadd.f32 %v3103, %v3135
      %v3140 = vmul.f32 %v1919, %v2759
      %v3141 = vmul.f32 %v1925, %v2759
      %v3142 = vmul.f32 %v1931, %v2759
      %v3143 = vmul.f32 %v1937, %v2759
      %v3144 = vsel %vm2934, %v3140, 0.0
      %v3145 = vrot.slane %v3144, 4
      %v3146 = vadd.f32 %v3144, %v3145
      %v3147 = vrot.slane %v3146, 2
      %v3148 = vadd.f32 %v3146, %v3147
      %v3149 = vrot.slane %v3148, 1
      %v3150 = vadd.f32 %v3148, %v3149
      %v3151 = vsel %vm2934, %v3141, 0.0
      %v3152 = vrot.slane %v3151, 4
      %v3153 = vadd.f32 %v3151, %v3152
      %v3154 = vrot.slane %v3153, 2
      %v3155 = vadd.f32 %v3153, %v3154
      %v3156 = vrot.slane %v3155, 1
      %v3157 = vadd.f32 %v3155, %v3156
      %v3158 = vsel %vm2934, %v3142, 0.0
      %v3159 = vrot.slane %v3158, 4
      %v3160 = vadd.f32 %v3158, %v3159
      %v3161 = vrot.slane %v3160, 2
      %v3162 = vadd.f32 %v3160, %v3161
      %v3163 = vrot.slane %v3162, 1
      %v3164 = vadd.f32 %v3162, %v3163
      %v3165 = vsel %vm2934, %v3143, 0.0
      %v3166 = vrot.slane %v3165, 4
      %v3167 = vadd.f32 %v3165, %v3166
      %v3168 = vrot.slane %v3167, 2
      %v3169 = vadd.f32 %v3167, %v3168
      %v3170 = vrot.slane %v3169, 1
      %v3171 = vadd.f32 %v3169, %v3170
      %v3172 = vmul.f32 %v2846, %v2916
      %v3173 = vmul.f32 %v2847, %v2916
      %v3174 = vmul.f32 %v2848, %v2916
      %v3175 = vmul.f32 %v2849, %v2916
      %v3176 = vsel %vm2967, %v3172, 0.0
      %v3177 = vrot.slane %v3176, 4
      %v3178 = vadd.f32 %v3176, %v3177
      %v3179 = vrot.slane %v3178, 2
      %v3180 = vadd.f32 %v3178, %v3179
      %v3181 = vrot.slane %v3180, 1
      %v3182 = vadd.f32 %v3180, %v3181
      %v3183 = vsel %vm2967, %v3173, 0.0
      %v3184 = vrot.slane %v3183, 4
      %v3185 = vadd.f32 %v3183, %v3184
      %v3186 = vrot.slane %v3185, 2
      %v3187 = vadd.f32 %v3185, %v3186
      %v3188 = vrot.slane %v3187, 1
      %v3189 = vadd.f32 %v3187, %v3188
      %v3190 = vsel %vm2967, %v3174, 0.0
      %v3191 = vrot.slane %v3190, 4
      %v3192 = vadd.f32 %v3190, %v3191
      %v3193 = vrot.slane %v3192, 2
      %v3194 = vadd.f32 %v3192, %v3193
      %v3195 = vrot.slane %v3194, 1
      %v3196 = vadd.f32 %v3194, %v3195
      %v3197 = vsel %vm2967, %v3175, 0.0
      %v3198 = vrot.slane %v3197, 4
      %v3199 = vadd.f32 %v3197, %v3198
      %v3200 = vrot.slane %v3199, 2
      %v3201 = vadd.f32 %v3199, %v3200
      %v3202 = vrot.slane %v3201, 1
      %v3203 = vadd.f32 %v3201, %v3202
      %v3204 = vadd.f32 %v3150, %v3182
      %v3205 = vadd.f32 %v3157, %v3189
      %v3206 = vadd.f32 %v3164, %v3196
      %v3207 = vadd.f32 %v3171, %v3203
      %v3208 = vmul.f32 %v2858, %v2928
      %v3209 = vmul.f32 %v2859, %v2928
      %v3210 = vmul.f32 %v2860, %v2928
      %v3211 = vmul.f32 %v2861, %v2928
      %v3212 = vsel %vm2967, %v3208, 0.0
      %v3213 = vrot.slane %v3212, 4
      %v3214 = vadd.f32 %v3212, %v3213
      %v3215 = vrot.slane %v3214, 2
      %v3216 = vadd.f32 %v3214, %v3215
      %v3217 = vrot.slane %v3216, 1
      %v3218 = vadd.f32 %v3216, %v3217
      %v3219 = vsel %vm2967, %v3209, 0.0
      %v3220 = vrot.slane %v3219, 4
      %v3221 = vadd.f32 %v3219, %v3220
      %v3222 = vrot.slane %v3221, 2
      %v3223 = vadd.f32 %v3221, %v3222
      %v3224 = vrot.slane %v3223, 1
      %v3225 = vadd.f32 %v3223, %v3224
      %v3226 = vsel %vm2967, %v3210, 0.0
      %v3227 = vrot.slane %v3226, 4
      %v3228 = vadd.f32 %v3226, %v3227
      %v3229 = vrot.slane %v3228, 2
      %v3230 = vadd.f32 %v3228, %v3229
      %v3231 = vrot.slane %v3230, 1
      %v3232 = vadd.f32 %v3230, %v3231
      %v3233 = vsel %vm2967, %v3211, 0.0
      %v3234 = vrot.slane %v3233, 4
      %v3235 = vadd.f32 %v3233, %v3234
      %v3236 = vrot.slane %v3235, 2
      %v3237 = vadd.f32 %v3235, %v3236
      %v3238 = vrot.slane %v3237, 1
      %v3239 = vadd.f32 %v3237, %v3238
      %v3240 = vadd.f32 %v3204, %v3218
      %v3241 = vadd.f32 %v3205, %v3225
      %v3242 = vadd.f32 %v3206, %v3232
      %v3243 = vadd.f32 %v3207, %v3239
      %v3244 = vmul.f32 %v1919, %v2765
      %v3245 = vmul.f32 %v1925, %v2765
      %v3246 = vmul.f32 %v1931, %v2765
      %v3247 = vmul.f32 %v1937, %v2765
      %v3248 = vsel %vm2934, %v3244, 0.0
      %v3249 = vrot.slane %v3248, 4
      %v3250 = vadd.f32 %v3248, %v3249
      %v3251 = vrot.slane %v3250, 2
      %v3252 = vadd.f32 %v3250, %v3251
      %v3253 = vrot.slane %v3252, 1
      %v3254 = vadd.f32 %v3252, %v3253
      %v3255 = vsel %vm2934, %v3245, 0.0
      %v3256 = vrot.slane %v3255, 4
      %v3257 = vadd.f32 %v3255, %v3256
      %v3258 = vrot.slane %v3257, 2
      %v3259 = vadd.f32 %v3257, %v3258
      %v3260 = vrot.slane %v3259, 1
      %v3261 = vadd.f32 %v3259, %v3260
      %v3262 = vsel %vm2934, %v3246, 0.0
      %v3263 = vrot.slane %v3262, 4
      %v3264 = vadd.f32 %v3262, %v3263
      %v3265 = vrot.slane %v3264, 2
      %v3266 = vadd.f32 %v3264, %v3265
      %v3267 = vrot.slane %v3266, 1
      %v3268 = vadd.f32 %v3266, %v3267
      %v3269 = vsel %vm2934, %v3247, 0.0
      %v3270 = vrot.slane %v3269, 4
      %v3271 = vadd.f32 %v3269, %v3270
      %v3272 = vrot.slane %v3271, 2
      %v3273 = vadd.f32 %v3271, %v3272
      %v3274 = vrot.slane %v3273, 1
      %v3275 = vadd.f32 %v3273, %v3274
      %v3276 = vmul.f32 %v2846, %v2917
      %v3277 = vmul.f32 %v2847, %v2917
      %v3278 = vmul.f32 %v2848, %v2917
      %v3279 = vmul.f32 %v2849, %v2917
      %v3280 = vsel %vm2967, %v3276, 0.0
      %v3281 = vrot.slane %v3280, 4
      %v3282 = vadd.f32 %v3280, %v3281
      %v3283 = vrot.slane %v3282, 2
      %v3284 = vadd.f32 %v3282, %v3283
      %v3285 = vrot.slane %v3284, 1
      %v3286 = vadd.f32 %v3284, %v3285
      %v3287 = vsel %vm2967, %v3277, 0.0
      %v3288 = vrot.slane %v3287, 4
      %v3289 = vadd.f32 %v3287, %v3288
      %v3290 = vrot.slane %v3289, 2
      %v3291 = vadd.f32 %v3289, %v3290
      %v3292 = vrot.slane %v3291, 1
      %v3293 = vadd.f32 %v3291, %v3292
      %v3294 = vsel %vm2967, %v3278, 0.0
      %v3295 = vrot.slane %v3294, 4
      %v3296 = vadd.f32 %v3294, %v3295
      %v3297 = vrot.slane %v3296, 2
      %v3298 = vadd.f32 %v3296, %v3297
      %v3299 = vrot.slane %v3298, 1
      %v3300 = vadd.f32 %v3298, %v3299
      %v3301 = vsel %vm2967, %v3279, 0.0
      %v3302 = vrot.slane %v3301, 4
      %v3303 = vadd.f32 %v3301, %v3302
      %v3304 = vrot.slane %v3303, 2
      %v3305 = vadd.f32 %v3303, %v3304
      %v3306 = vrot.slane %v3305, 1
      %v3307 = vadd.f32 %v3305, %v3306
      %v3308 = vadd.f32 %v3254, %v3286
      %v3309 = vadd.f32 %v3261, %v3293
      %v3310 = vadd.f32 %v3268, %v3300
      %v3311 = vadd.f32 %v3275, %v3307
      %v3312 = vmul.f32 %v2858, %v2929
      %v3313 = vmul.f32 %v2859, %v2929
      %v3314 = vmul.f32 %v2860, %v2929
      %v3315 = vmul.f32 %v2861, %v2929
      %v3316 = vsel %vm2967, %v3312, 0.0
      %v3317 = vrot.slane %v3316, 4
      %v3318 = vadd.f32 %v3316, %v3317
      %v3319 = vrot.slane %v3318, 2
      %v3320 = vadd.f32 %v3318, %v3319
      %v3321 = vrot.slane %v3320, 1
      %v3322 = vadd.f32 %v3320, %v3321
      %v3323 = vsel %vm2967, %v3313, 0.0
      %v3324 = vrot.slane %v3323, 4
      %v3325 = vadd.f32 %v3323, %v3324
      %v3326 = vrot.slane %v3325, 2
      %v3327 = vadd.f32 %v3325, %v3326
      %v3328 = vrot.slane %v3327, 1
      %v3329 = vadd.f32 %v3327, %v3328
      %v3330 = vsel %vm2967, %v3314, 0.0
      %v3331 = vrot.slane %v3330, 4
      %v3332 = vadd.f32 %v3330, %v3331
      %v3333 = vrot.slane %v3332, 2
      %v3334 = vadd.f32 %v3332, %v3333
      %v3335 = vrot.slane %v3334, 1
      %v3336 = vadd.f32 %v3334, %v3335
      %v3337 = vsel %vm2967, %v3315, 0.0
      %v3338 = vrot.slane %v3337, 4
      %v3339 = vadd.f32 %v3337, %v3338
      %v3340 = vrot.slane %v3339, 2
      %v3341 = vadd.f32 %v3339, %v3340
      %v3342 = vrot.slane %v3341, 1
      %v3343 = vadd.f32 %v3341, %v3342
      %v3344 = vadd.f32 %v3308, %v3322
      %v3345 = vadd.f32 %v3309, %v3329
      %v3346 = vadd.f32 %v3310, %v3336
      %v3347 = vadd.f32 %v3311, %v3343
      %v3348 = vmax.f32 %v3032, %v3136
      %v3349 = vmax.f32 %v3033, %v3137
      %v3350 = vmax.f32 %v3034, %v3138
      %v3351 = vmax.f32 %v3035, %v3139
      %v3352 = vmax.f32 %v3348, %v3240
      %v3353 = vmax.f32 %v3349, %v3241
      %v3354 = vmax.f32 %v3350, %v3242
      %v3355 = vmax.f32 %v3351, %v3243
      %v3356 = vmax.f32 %v3352, %v3344
      %v3357 = vmax.f32 %v3353, %v3345
      %v3358 = vmax.f32 %v3354, %v3346
      %v3359 = vmax.f32 %v3355, %v3347
      %v3360 = vsub.f32 %v3032, %v3356
      %v3361 = vsub.f32 %v3033, %v3357
      %v3362 = vsub.f32 %v3034, %v3358
      %v3363 = vsub.f32 %v3035, %v3359
      %v3364 = vmul.f32 %v3360, 1.442695
      %v3365 = vpow.pop %v3364
      %v3366 = vmul.f32 %v3361, 1.442695
      %v3367 = vpow.pop %v3366
      %v3368 = vmul.f32 %v3362, 1.442695
      %v3369 = vpow.pop %v3368
      %v3370 = vmul.f32 %v3363, 1.442695
      %v3371 = vpow.pop %v3370
      %v3372 = vsub.f32 %v3136, %v3356
      %v3373 = vsub.f32 %v3137, %v3357
      %v3374 = vsub.f32 %v3138, %v3358
      %v3375 = vsub.f32 %v3139, %v3359
      %v3376 = vmul.f32 %v3372, 1.442695
      %v3377 = vpow.pop %v3376
      %v3378 = vmul.f32 %v3373, 1.442695
      %v3379 = vpow.pop %v3378
      %v3380 = vmul.f32 %v3374, 1.442695
      %v3381 = vpow.pop %v3380
      %v3382 = vmul.f32 %v3375, 1.442695
      %v3383 = vpow.pop %v3382
      %v3384 = vsub.f32 %v3240, %v3356
      %v3385 = vsub.f32 %v3241, %v3357
      %v3386 = vsub.f32 %v3242, %v3358
      %v3387 = vsub.f32 %v3243, %v3359
      %v3388 = vmul.f32 %v3384, 1.442695
      %v3389 = vpow.pop %v3388
      %v3390 = vmul.f32 %v3385, 1.442695
      %v3391 = vpow.pop %v3390
      %v3392 = vmul.f32 %v3386, 1.442695
      %v3393 = vpow.pop %v3392
      %v3394 = vmul.f32 %v3387, 1.442695
      %v3395 = vpow.pop %v3394
      %v3396 = vsub.f32 %v3344, %v3356
      %v3397 = vsub.f32 %v3345, %v3357
      %v3398 = vsub.f32 %v3346, %v3358
      %v3399 = vsub.f32 %v3347, %v3359
      %v3400 = vmul.f32 %v3396, 1.442695
      %v3401 = vpow.pop %v3400
      %v3402 = vmul.f32 %v3397, 1.442695
      %v3403 = vpow.pop %v3402
      %v3404 = vmul.f32 %v3398, 1.442695
      %v3405 = vpow.pop %v3404
      %v3406 = vmul.f32 %v3399, 1.442695
      %v3407 = vpow.pop %v3406
      %v3408 = vadd.f32 %v3365, %v3377
      %v3409 = vadd.f32 %v3367, %v3379
      %v3410 = vadd.f32 %v3369, %v3381
      %v3411 = vadd.f32 %v3371, %v3383
      %v3412 = vadd.f32 %v3408, %v3389
      %v3413 = vadd.f32 %v3409, %v3391
      %v3414 = vadd.f32 %v3410, %v3393
      %v3415 = vadd.f32 %v3411, %v3395
      %v3416 = vadd.f32 %v3412, %v3401
      %v3417 = vadd.f32 %v3413, %v3403
      %v3418 = vadd.f32 %v3414, %v3405
      %v3419 = vadd.f32 %v3415, %v3407
      %v3420 = vrcp.pop %v3416
      %v3421 = vmul.f32 1.0, %v3420
      %v3422 = vrcp.pop %v3417
      %v3423 = vmul.f32 1.0, %v3422
      %v3424 = vrcp.pop %v3418
      %v3425 = vmul.f32 1.0, %v3424
      %v3426 = vrcp.pop %v3419
      %v3427 = vmul.f32 1.0, %v3426
      %v3428 = vmul.f32 %v3365, %v3421
      %v3429 = vmul.f32 %v3367, %v3423
      %v3430 = vmul.f32 %v3369, %v3425
      %v3431 = vmul.f32 %v3371, %v3427
      %v3432 = vmul.f32 %v3428, %v2771
      %v3433 = vmul.f32 %v3429, %v2771
      %v3434 = vmul.f32 %v3430, %v2771
      %v3435 = vmul.f32 %v3431, %v2771
      %v3436 = vadd.f32 %v3432, 0.0
      %v3437 = vadd.f32 %v3433, 0.0
      %v3438 = vadd.f32 %v3434, 0.0
      %v3439 = vadd.f32 %v3435, 0.0
      %v3440 = vmul.f32 %v3377, %v3421
      %v3441 = vmul.f32 %v3379, %v3423
      %v3442 = vmul.f32 %v3381, %v3425
      %v3443 = vmul.f32 %v3383, %v3427
      %v3444 = vmul.f32 %v3440, %v2777
      %v3445 = vmul.f32 %v3441, %v2777
      %v3446 = vmul.f32 %v3442, %v2777
      %v3447 = vmul.f32 %v3443, %v2777
      %v3448 = vadd.f32 %v3436, %v3444
      %v3449 = vadd.f32 %v3437, %v3445
      %v3450 = vadd.f32 %v3438, %v3446
      %v3451 = vadd.f32 %v3439, %v3447
      %v3452 = vmul.f32 %v3389, %v3421
      %v3453 = vmul.f32 %v3391, %v3423
      %v3454 = vmul.f32 %v3393, %v3425
      %v3455 = vmul.f32 %v3395, %v3427
      %v3456 = vmul.f32 %v3452, %v2783
      %v3457 = vmul.f32 %v3453, %v2783
      %v3458 = vmul.f32 %v3454, %v2783
      %v3459 = vmul.f32 %v3455, %v2783
      %v3460 = vadd.f32 %v3448, %v3456
      %v3461 = vadd.f32 %v3449, %v3457
      %v3462 = vadd.f32 %v3450, %v3458
      %v3463 = vadd.f32 %v3451, %v3459
      %v3464 = vmul.f32 %v3401, %v3421
      %v3465 = vmul.f32 %v3403, %v3423
      %v3466 = vmul.f32 %v3405, %v3425
      %v3467 = vmul.f32 %v3407, %v3427
      %v3468 = vmul.f32 %v3464, %v2789
      %v3469 = vmul.f32 %v3465, %v2789
      %v3470 = vmul.f32 %v3466, %v2789
      %v3471 = vmul.f32 %v3467, %v2789
      %v3472 = vadd.f32 %v3460, %v3468
      %v3473 = vadd.f32 %v3461, %v3469
      %v3474 = vadd.f32 %v3462, %v3470
      %v3475 = vadd.f32 %v3463, %v3471
      %v3476 = vld [vmem:[%s9] sm:$0xff]
      %v3477 = vld [vmem:[%s9 + $0x8] sm:$0xff]
      %v3478 = vld [vmem:[%s9 + $0x10] sm:$0xff]
      %v3479 = vld [vmem:[%s9 + $0x18] sm:$0xff]
      %v3480 = vld [vmem:[%s10] sm:$0xff]
      %v3481 = vld [vmem:[%s10 + $0x8] sm:$0xff]
      %v3482 = vld [vmem:[%s10 + $0x10] sm:$0xff]
      %v3483 = vld [vmem:[%s10 + $0x18] sm:$0xff]
      %3485 = vset.pattern.permute.xlu0 0
      %3486 = vperm.xlu0 %3485, %v3480
      %v3487 = vpop.permute.xlu0 %3486
      %3490 = vset.pattern.permute.xlu0 0
      %3491 = vperm.xlu0 %3490, %v3481
      %v3492 = vpop.permute.xlu0 %3491
      %3495 = vset.pattern.permute.xlu0 0
      %3496 = vperm.xlu0 %3495, %v3482
      %v3497 = vpop.permute.xlu0 %3496
      %3500 = vset.pattern.permute.xlu0 0
      %3501 = vperm.xlu0 %3500, %v3483
      %v3502 = vpop.permute.xlu0 %3501
      %v3505 = vsel %vm498, %v3476, 0
      %v3508 = vsel %vm498, %v3477, 0
      %v3511 = vsel %vm498, %v3478, 0
      %v3514 = vsel %vm498, %v3479, 0
      %3516 = vmatprep.subr.mxu0 0.0
      %v3517 = vand.u32 %v3472, 4294901760
      %3518 = vmatpush1.msra.mxu0 %v3517
      %3519 = vmatprep.subr.mxu0 0.0
      %v3520 = vand.u32 %v3473, 4294901760
      %3521 = vmatpush1.msra.mxu0 %v3520
      %3522 = vmatprep.subr.mxu0 0.0
      %v3523 = vand.u32 %v3474, 4294901760
      %3524 = vmatpush1.msra.mxu0 %v3523
      %3525 = vmatprep.subr.mxu0 0.0
      %v3526 = vand.u32 %v3475, 4294901760
      %3527 = vmatpush1.msra.mxu0 %v3526
      %3528 = vmatprep.subr.mxu0 0.0
      %3529 = vmatpush1.msra.mxu0 0.0
      %3530 = vmatprep.subr.mxu0 0.0
      %3531 = vmatpush1.msra.mxu0 0.0
      %3532 = vmatprep.subr.mxu0 0.0
      %3533 = vmatpush1.msra.mxu0 0.0
      %3534 = vmatprep.subr.mxu0 0.0
      %3535 = vmatpush1.msra.mxu0 0.0
      %3536 = vmatprep.subr.mxu0 0.0
      %3537 = vmatpush1.msra.mxu0 0.0
      %3538 = vmatprep.subr.mxu0 0.0
      %3539 = vmatpush1.msra.mxu0 0.0
      %3540 = vmatprep.subr.mxu0 0.0
      %3541 = vmatpush1.msra.mxu0 0.0
      %3542 = vmatprep.subr.mxu0 0.0
      %3543 = vmatpush1.msra.mxu0 0.0
      %3544 = vmatprep.subr.mxu0 0.0
      %3545 = vmatpush1.msra.mxu0 0.0
      %3546 = vmatprep.subr.mxu0 0.0
      %3547 = vmatpush1.msra.mxu0 0.0
      %3548 = vmatprep.subr.mxu0 0.0
      %3549 = vmatpush1.msra.mxu0 0.0
      %3550 = vmatprep.subr.mxu0 0.0
      %3551 = vmatpush1.msra.mxu0 0.0
      %3552 = vmatprep.subr.mxu0 0.0
      %3553 = vmatpush1.msra.mxu0 0.0
      %3554 = vmatprep.subr.mxu0 0.0
      %3555 = vmatpush1.msra.mxu0 0.0
      %3556 = vmatprep.subr.mxu0 0.0
      %3557 = vmatpush1.msra.mxu0 0.0
      %3558 = vmatprep.subr.mxu0 0.0
      %3559 = vmatpush1.msra.mxu0 0.0
      %3560 = vmatprep.subr.mxu0 0.0
      %3561 = vmatpush1.msra.mxu0 0.0
      %3562 = vmatprep.subr.mxu0 0.0
      %3563 = vmatpush1.msra.mxu0 0.0
      %3564 = vmatprep.subr.mxu0 0.0
      %3565 = vmatpush1.msra.mxu0 0.0
      %3566 = vmatprep.subr.mxu0 0.0
      %3567 = vmatpush1.msra.mxu0 0.0
      %3568 = vmatprep.subr.mxu0 0.0
      %3569 = vmatpush1.msra.mxu0 0.0
      %3570 = vmatprep.subr.mxu0 0.0
      %3571 = vmatpush1.msra.mxu0 0.0
      %3572 = vmatprep.subr.mxu0 0.0
      %3573 = vmatpush1.msra.mxu0 0.0
      %3574 = vmatprep.subr.mxu0 0.0
      %3575 = vmatpush1.msra.mxu0 0.0
      %3576 = vmatprep.subr.mxu0 0.0
      %3577 = vmatpush1.msra.mxu0 0.0
      %3578 = vmatprep.subr.mxu0 0.0
      %3579 = vmatpush1.msra.mxu0 0.0
      %3580 = vmatprep.subr.mxu0 0.0
      %3581 = vmatpush1.msra.mxu0 0.0
      %3582 = vmatprep.subr.mxu0 0.0
      %3583 = vmatpush1.msra.mxu0 0.0
      %3584 = vmatprep.mubr.f32.mxu0 0.0
      %v3585 = vand.u32 %v3505, 4294901760
      %v3586 = vsub.f32 %v3505, %v3585
      %v3587 = vand.u32 %v3586, 4294901760
      %v3588 = vsub.f32 %v3586, %v3587
      %v3589 = vand.u32 %v3588, 4294901760
      %3590 = vmatmul.mubr.f32.gmra.mrb[0].mxu0 %v3589
      %v3591 = vpop.f32.mrb[0].mxu0
      %v3592 = vadd.f32 %v3487, %v3591
      %v3593 = vpop.f32.mrb[0].mxu0
      %3594 = vmatprep.mubr.f32.mxu0 0.0
      %v3595 = vand.u32 %v3508, 4294901760
      %v3596 = vsub.f32 %v3508, %v3595
      %v3597 = vand.u32 %v3596, 4294901760
      %v3598 = vsub.f32 %v3596, %v3597
      %v3599 = vand.u32 %v3598, 4294901760
      %3600 = vmatmul.mubr.f32.gmra.mrb[0].mxu0 %v3599
      %v3601 = vpop.f32.mrb[0].mxu0
      %v3602 = vadd.f32 %v3492, %v3601
      %v3603 = vpop.f32.mrb[0].mxu0
      %3604 = vmatprep.mubr.f32.mxu0 0.0
      %v3605 = vand.u32 %v3511, 4294901760
      %v3606 = vsub.f32 %v3511, %v3605
      %v3607 = vand.u32 %v3606, 4294901760
      %v3608 = vsub.f32 %v3606, %v3607
      %v3609 = vand.u32 %v3608, 4294901760
      %3610 = vmatmul.mubr.f32.gmra.mrb[0].mxu0 %v3609
      %v3611 = vpop.f32.mrb[0].mxu0
      %v3612 = vadd.f32 %v3497, %v3611
      %v3613 = vpop.f32.mrb[0].mxu0
      %3614 = vmatprep.mubr.f32.mxu0 0.0
      %v3615 = vand.u32 %v3514, 4294901760
      %v3616 = vsub.f32 %v3514, %v3615
      %v3617 = vand.u32 %v3616, 4294901760
      %v3618 = vsub.f32 %v3616, %v3617
      %v3619 = vand.u32 %v3618, 4294901760
      %3620 = vmatmul.mubr.f32.gmra.mrb[0].mxu0 %v3619
      %v3621 = vpop.f32.mrb[0].mxu0
      %v3622 = vadd.f32 %v3502, %v3621
      %v3623 = vpop.f32.mrb[0].mxu0
      %3624 = vdwg.mxu0
      %3625 = vmatprep.subr.mxu0 0.0
      %v3626 = vand.u32 %v3472, 4294901760
      %v3627 = vsub.f32 %v3472, %v3626
      %v3628 = vand.u32 %v3627, 4294901760
      %v3629 = vsub.f32 %v3627, %v3628
      %v3630 = vand.u32 %v3629, 4294901760
      %3631 = vmatpush1.msra.mxu0 %v3630
      %3632 = vmatprep.subr.mxu0 0.0
      %v3633 = vand.u32 %v3473, 4294901760
      %v3634 = vsub.f32 %v3473, %v3633
      %v3635 = vand.u32 %v3634, 4294901760
      %v3636 = vsub.f32 %v3634, %v3635
      %v3637 = vand.u32 %v3636, 4294901760
      %3638 = vmatpush1.msra.mxu0 %v3637
      %3639 = vmatprep.subr.mxu0 0.0
      %v3640 = vand.u32 %v3474, 4294901760
      %v3641 = vsub.f32 %v3474, %v3640
      %v3642 = vand.u32 %v3641, 4294901760
      %v3643 = vsub.f32 %v3641, %v3642
      %v3644 = vand.u32 %v3643, 4294901760
      %3645 = vmatpush1.msra.mxu0 %v3644
      %3646 = vmatprep.subr.mxu0 0.0
      %v3647 = vand.u32 %v3475, 4294901760
      %v3648 = vsub.f32 %v3475, %v3647
      %v3649 = vand.u32 %v3648, 4294901760
      %v3650 = vsub.f32 %v3648, %v3649
      %v3651 = vand.u32 %v3650, 4294901760
      %3652 = vmatpush1.msra.mxu0 %v3651
      %3653 = vmatprep.subr.mxu0 0.0
      %3654 = vmatpush1.msra.mxu0 0.0
      %3655 = vmatprep.subr.mxu0 0.0
      %3656 = vmatpush1.msra.mxu0 0.0
      %3657 = vmatprep.subr.mxu0 0.0
      %3658 = vmatpush1.msra.mxu0 0.0
      %3659 = vmatprep.subr.mxu0 0.0
      %3660 = vmatpush1.msra.mxu0 0.0
      %3661 = vmatprep.subr.mxu0 0.0
      %3662 = vmatpush1.msra.mxu0 0.0
      %3663 = vmatprep.subr.mxu0 0.0
      %3664 = vmatpush1.msra.mxu0 0.0
      %3665 = vmatprep.subr.mxu0 0.0
      %3666 = vmatpush1.msra.mxu0 0.0
      %3667 = vmatprep.subr.mxu0 0.0
      %3668 = vmatpush1.msra.mxu0 0.0
      %3669 = vmatprep.subr.mxu0 0.0
      %3670 = vmatpush1.msra.mxu0 0.0
      %3671 = vmatprep.subr.mxu0 0.0
      %3672 = vmatpush1.msra.mxu0 0.0
      %3673 = vmatprep.subr.mxu0 0.0
      %3674 = vmatpush1.msra.mxu0 0.0
      %3675 = vmatprep.subr.mxu0 0.0
      %3676 = vmatpush1.msra.mxu0 0.0
      %3677 = vmatprep.subr.mxu0 0.0
      %3678 = vmatpush1.msra.mxu0 0.0
      %3679 = vmatprep.subr.mxu0 0.0
      %3680 = vmatpush1.msra.mxu0 0.0
      %3681 = vmatprep.subr.mxu0 0.0
      %3682 = vmatpush1.msra.mxu0 0.0
      %3683 = vmatprep.subr.mxu0 0.0
      %3684 = vmatpush1.msra.mxu0 0.0
      %3685 = vmatprep.subr.mxu0 0.0
      %3686 = vmatpush1.msra.mxu0 0.0
      %3687 = vmatprep.subr.mxu0 0.0
      %3688 = vmatpush1.msra.mxu0 0.0
      %3689 = vmatprep.subr.mxu0 0.0
      %3690 = vmatpush1.msra.mxu0 0.0
      %3691 = vmatprep.subr.mxu0 0.0
      %3692 = vmatpush1.msra.mxu0 0.0
      %3693 = vmatprep.subr.mxu0 0.0
      %3694 = vmatpush1.msra.mxu0 0.0
      %3695 = vmatprep.subr.mxu0 0.0
      %3696 = vmatpush1.msra.mxu0 0.0
      %3697 = vmatprep.subr.mxu0 0.0
      %3698 = vmatpush1.msra.mxu0 0.0
      %3699 = vmatprep.subr.mxu0 0.0
      %3700 = vmatpush1.msra.mxu0 0.0
      %3701 = vmatprep.subr.mxu0 0.0
      %3702 = vmatpush1.msra.mxu0 0.0
      %3703 = vmatprep.subr.mxu0 0.0
      %3704 = vmatpush1.msra.mxu0 0.0
      %3705 = vmatprep.subr.mxu0 0.0
      %3706 = vmatpush1.msra.mxu0 0.0
      %3707 = vmatprep.subr.mxu0 0.0
      %3708 = vmatpush1.msra.mxu0 0.0
      %3709 = vmatprep.mubr.f32.mxu0 0.0
      %v3710 = vand.u32 %v3505, 4294901760
      %3711 = vmatmul.mubr.f32.gmra.mrb[0].mxu0 %v3710
      %v3712 = vpop.f32.mrb[0].mxu0
      %v3713 = vadd.f32 %v3592, %v3712
      %v3714 = vpop.f32.mrb[0].mxu0
      %3715 = vmatprep.mubr.f32.mxu0 0.0
      %v3716 = vand.u32 %v3508, 4294901760
      %3717 = vmatmul.mubr.f32.gmra.mrb[0].mxu0 %v3716
      %v3718 = vpop.f32.mrb[0].mxu0
      %v3719 = vadd.f32 %v3602, %v3718
      %v3720 = vpop.f32.mrb[0].mxu0
      %3721 = vmatprep.mubr.f32.mxu0 0.0
      %v3722 = vand.u32 %v3511, 4294901760
      %3723 = vmatmul.mubr.f32.gmra.mrb[0].mxu0 %v3722
      %v3724 = vpop.f32.mrb[0].mxu0
      %v3725 = vadd.f32 %v3612, %v3724
      %v3726 = vpop.f32.mrb[0].mxu0
      %3727 = vmatprep.mubr.f32.mxu0 0.0
      %v3728 = vand.u32 %v3514, 4294901760
      %3729 = vmatmul.mubr.f32.gmra.mrb[0].mxu0 %v3728
      %v3730 = vpop.f32.mrb[0].mxu0
      %v3731 = vadd.f32 %v3622, %v3730
      %v3732 = vpop.f32.mrb[0].mxu0
      %3733 = vdwg.mxu0
      %3734 = vmatprep.subr.mxu0 0.0
      %v3735 = vand.u32 %v3472, 4294901760
      %v3736 = vsub.f32 %v3472, %v3735
      %3737 = vmatpush1.msra.mxu0 %v3736
      %3738 = vmatprep.subr.mxu0 0.0
      %v3739 = vand.u32 %v3473, 4294901760
      %v3740 = vsub.f32 %v3473, %v3739
      %3741 = vmatpush1.msra.mxu0 %v3740
      %3742 = vmatprep.subr.mxu0 0.0
      %v3743 = vand.u32 %v3474, 4294901760
      %v3744 = vsub.f32 %v3474, %v3743
      %3745 = vmatpush1.msra.mxu0 %v3744
      %3746 = vmatprep.subr.mxu0 0.0
      %v3747 = vand.u32 %v3475, 4294901760
      %v3748 = vsub.f32 %v3475, %v3747
      %3749 = vmatpush1.msra.mxu0 %v3748
      %3750 = vmatprep.subr.mxu0 0.0
      %3751 = vmatpush1.msra.mxu0 0.0
      %3752 = vmatprep.subr.mxu0 0.0
      %3753 = vmatpush1.msra.mxu0 0.0
      %3754 = vmatprep.subr.mxu0 0.0
      %3755 = vmatpush1.msra.mxu0 0.0
      %3756 = vmatprep.subr.mxu0 0.0
      %3757 = vmatpush1.msra.mxu0 0.0
      %3758 = vmatprep.subr.mxu0 0.0
      %3759 = vmatpush1.msra.mxu0 0.0
      %3760 = vmatprep.subr.mxu0 0.0
      %3761 = vmatpush1.msra.mxu0 0.0
      %3762 = vmatprep.subr.mxu0 0.0
      %3763 = vmatpush1.msra.mxu0 0.0
      %3764 = vmatprep.subr.mxu0 0.0
      %3765 = vmatpush1.msra.mxu0 0.0
      %3766 = vmatprep.subr.mxu0 0.0
      %3767 = vmatpush1.msra.mxu0 0.0
      %3768 = vmatprep.subr.mxu0 0.0
      %3769 = vmatpush1.msra.mxu0 0.0
      %3770 = vmatprep.subr.mxu0 0.0
      %3771 = vmatpush1.msra.mxu0 0.0
      %3772 = vmatprep.subr.mxu0 0.0
      %3773 = vmatpush1.msra.mxu0 0.0
      %3774 = vmatprep.subr.mxu0 0.0
      %3775 = vmatpush1.msra.mxu0 0.0
      %3776 = vmatprep.subr.mxu0 0.0
      %3777 = vmatpush1.msra.mxu0 0.0
      %3778 = vmatprep.subr.mxu0 0.0
      %3779 = vmatpush1.msra.mxu0 0.0
      %3780 = vmatprep.subr.mxu0 0.0
      %3781 = vmatpush1.msra.mxu0 0.0
      %3782 = vmatprep.subr.mxu0 0.0
      %3783 = vmatpush1.msra.mxu0 0.0
      %3784 = vmatprep.subr.mxu0 0.0
      %3785 = vmatpush1.msra.mxu0 0.0
      %3786 = vmatprep.subr.mxu0 0.0
      %3787 = vmatpush1.msra.mxu0 0.0
      %3788 = vmatprep.subr.mxu0 0.0
      %3789 = vmatpush1.msra.mxu0 0.0
      %3790 = vmatprep.subr.mxu0 0.0
      %3791 = vmatpush1.msra.mxu0 0.0
      %3792 = vmatprep.subr.mxu0 0.0
      %3793 = vmatpush1.msra.mxu0 0.0
      %3794 = vmatprep.subr.mxu0 0.0
      %3795 = vmatpush1.msra.mxu0 0.0
      %3796 = vmatprep.subr.mxu0 0.0
      %3797 = vmatpush1.msra.mxu0 0.0
      %3798 = vmatprep.subr.mxu0 0.0
      %3799 = vmatpush1.msra.mxu0 0.0
      %3800 = vmatprep.subr.mxu0 0.0
      %3801 = vmatpush1.msra.mxu0 0.0
      %3802 = vmatprep.subr.mxu0 0.0
      %3803 = vmatpush1.msra.mxu0 0.0
      %3804 = vmatprep.subr.mxu0 0.0
      %3805 = vmatpush1.msra.mxu0 0.0
      %3806 = vmatprep.mubr.f32.mxu0 0.0
      %v3807 = vand.u32 %v3505, 4294901760
      %v3808 = vsub.f32 %v3505, %v3807
      %3809 = vmatmul.mubr.f32.gmra.mrb[0].mxu0 %v3808
      %v3810 = vpop.f32.mrb[0].mxu0
      %v3811 = vadd.f32 %v3713, %v3810
      %v3812 = vpop.f32.mrb[0].mxu0
      %3813 = vmatprep.mubr.f32.mxu0 0.0
      %v3814 = vand.u32 %v3508, 4294901760
      %v3815 = vsub.f32 %v3508, %v3814
      %3816 = vmatmul.mubr.f32.gmra.mrb[0].mxu0 %v3815
      %v3817 = vpop.f32.mrb[0].mxu0
      %v3818 = vadd.f32 %v3719, %v3817
      %v3819 = vpop.f32.mrb[0].mxu0
      %3820 = vmatprep.mubr.f32.mxu0 0.0
      %v3821 = vand.u32 %v3511, 4294901760
      %v3822 = vsub.f32 %v3511, %v3821
      %3823 = vmatmul.mubr.f32.gmra.mrb[0].mxu0 %v3822
      %v3824 = vpop.f32.mrb[0].mxu0
      %v3825 = vadd.f32 %v3725, %v3824
      %v3826 = vpop.f32.mrb[0].mxu0
      %3827 = vmatprep.mubr.f32.mxu0 0.0
      %v3828 = vand.u32 %v3514, 4294901760
      %v3829 = vsub.f32 %v3514, %v3828
      %3830 = vmatmul.mubr.f32.gmra.mrb[0].mxu0 %v3829
      %v3831 = vpop.f32.mrb[0].mxu0
      %v3832 = vadd.f32 %v3731, %v3831
      %v3833 = vpop.f32.mrb[0].mxu0
      %3834 = vdwg.mxu0
      %3835 = vmatprep.subr.mxu0 0.0
      %v3836 = vand.u32 %v3472, 4294901760
      %3837 = vmatpush1.msra.mxu0 %v3836
      %3838 = vmatprep.subr.mxu0 0.0
      %v3839 = vand.u32 %v3473, 4294901760
      %3840 = vmatpush1.msra.mxu0 %v3839
      %3841 = vmatprep.subr.mxu0 0.0
      %v3842 = vand.u32 %v3474, 4294901760
      %3843 = vmatpush1.msra.mxu0 %v3842
      %3844 = vmatprep.subr.mxu0 0.0
      %v3845 = vand.u32 %v3475, 4294901760
      %3846 = vmatpush1.msra.mxu0 %v3845
      %3847 = vmatprep.subr.mxu0 0.0
      %3848 = vmatpush1.msra.mxu0 0.0
      %3849 = vmatprep.subr.mxu0 0.0
      %3850 = vmatpush1.msra.mxu0 0.0
      %3851 = vmatprep.subr.mxu0 0.0
      %3852 = vmatpush1.msra.mxu0 0.0
      %3853 = vmatprep.subr.mxu0 0.0
      %3854 = vmatpush1.msra.mxu0 0.0
      %3855 = vmatprep.subr.mxu0 0.0
      %3856 = vmatpush1.msra.mxu0 0.0
      %3857 = vmatprep.subr.mxu0 0.0
      %3858 = vmatpush1.msra.mxu0 0.0
      %3859 = vmatprep.subr.mxu0 0.0
      %3860 = vmatpush1.msra.mxu0 0.0
      %3861 = vmatprep.subr.mxu0 0.0
      %3862 = vmatpush1.msra.mxu0 0.0
      %3863 = vmatprep.subr.mxu0 0.0
      %3864 = vmatpush1.msra.mxu0 0.0
      %3865 = vmatprep.subr.mxu0 0.0
      %3866 = vmatpush1.msra.mxu0 0.0
      %3867 = vmatprep.subr.mxu0 0.0
      %3868 = vmatpush1.msra.mxu0 0.0
      %3869 = vmatprep.subr.mxu0 0.0
      %3870 = vmatpush1.msra.mxu0 0.0
      %3871 = vmatprep.subr.mxu0 0.0
      %3872 = vmatpush1.msra.mxu0 0.0
      %3873 = vmatprep.subr.mxu0 0.0
      %3874 = vmatpush1.msra.mxu0 0.0
      %3875 = vmatprep.subr.mxu0 0.0
      %3876 = vmatpush1.msra.mxu0 0.0
      %3877 = vmatprep.subr.mxu0 0.0
      %3878 = vmatpush1.msra.mxu0 0.0
      %3879 = vmatprep.subr.mxu0 0.0
      %3880 = vmatpush1.msra.mxu0 0.0
      %3881 = vmatprep.subr.mxu0 0.0
      %3882 = vmatpush1.msra.mxu0 0.0
      %3883 = vmatprep.subr.mxu0 0.0
      %3884 = vmatpush1.msra.mxu0 0.0
      %3885 = vmatprep.subr.mxu0 0.0
      %3886 = vmatpush1.msra.mxu0 0.0
      %3887 = vmatprep.subr.mxu0 0.0
      %3888 = vmatpush1.msra.mxu0 0.0
      %3889 = vmatprep.subr.mxu0 0.0
      %3890 = vmatpush1.msra.mxu0 0.0
      %3891 = vmatprep.subr.mxu0 0.0
      %3892 = vmatpush1.msra.mxu0 0.0
      %3893 = vmatprep.subr.mxu0 0.0
      %3894 = vmatpush1.msra.mxu0 0.0
      %3895 = vmatprep.subr.mxu0 0.0
      %3896 = vmatpush1.msra.mxu0 0.0
      %3897 = vmatprep.subr.mxu0 0.0
      %3898 = vmatpush1.msra.mxu0 0.0
      %3899 = vmatprep.subr.mxu0 0.0
      %3900 = vmatpush1.msra.mxu0 0.0
      %3901 = vmatprep.subr.mxu0 0.0
      %3902 = vmatpush1.msra.mxu0 0.0
      %3903 = vmatprep.mubr.f32.mxu0 0.0
      %v3904 = vand.u32 %v3505, 4294901760
      %v3905 = vsub.f32 %v3505, %v3904
      %v3906 = vand.u32 %v3905, 4294901760
      %3907 = vmatmul.mubr.f32.gmra.mrb[0].mxu0 %v3906
      %v3908 = vpop.f32.mrb[0].mxu0
      %v3909 = vadd.f32 %v3811, %v3908
      %v3910 = vpop.f32.mrb[0].mxu0
      %3911 = vmatprep.mubr.f32.mxu0 0.0
      %v3912 = vand.u32 %v3508, 4294901760
      %v3913 = vsub.f32 %v3508, %v3912
      %v3914 = vand.u32 %v3913, 4294901760
      %3915 = vmatmul.mubr.f32.gmra.mrb[0].mxu0 %v3914
      %v3916 = vpop.f32.mrb[0].mxu0
      %v3917 = vadd.f32 %v3818, %v3916
      %v3918 = vpop.f32.mrb[0].mxu0
      %3919 = vmatprep.mubr.f32.mxu0 0.0
      %v3920 = vand.u32 %v3511, 4294901760
      %v3921 = vsub.f32 %v3511, %v3920
      %v3922 = vand.u32 %v3921, 4294901760
      %3923 = vmatmul.mubr.f32.gmra.mrb[0].mxu0 %v3922
      %v3924 = vpop.f32.mrb[0].mxu0
      %v3925 = vadd.f32 %v3825, %v3924
      %v3926 = vpop.f32.mrb[0].mxu0
      %3927 = vmatprep.mubr.f32.mxu0 0.0
      %v3928 = vand.u32 %v3514, 4294901760
      %v3929 = vsub.f32 %v3514, %v3928
      %v3930 = vand.u32 %v3929, 4294901760
      %3931 = vmatmul.mubr.f32.gmra.mrb[0].mxu0 %v3930
      %v3932 = vpop.f32.mrb[0].mxu0
      %v3933 = vadd.f32 %v3832, %v3932
      %v3934 = vpop.f32.mrb[0].mxu0
      %3935 = vdwg.mxu0
      %3936 = vmatprep.subr.mxu0 0.0
      %v3937 = vand.u32 %v3472, 4294901760
      %v3938 = vsub.f32 %v3472, %v3937
      %v3939 = vand.u32 %v3938, 4294901760
      %3940 = vmatpush1.msra.mxu0 %v3939
      %3941 = vmatprep.subr.mxu0 0.0
      %v3942 = vand.u32 %v3473, 4294901760
      %v3943 = vsub.f32 %v3473, %v3942
      %v3944 = vand.u32 %v3943, 4294901760
      %3945 = vmatpush1.msra.mxu0 %v3944
      %3946 = vmatprep.subr.mxu0 0.0
      %v3947 = vand.u32 %v3474, 4294901760
      %v3948 = vsub.f32 %v3474, %v3947
      %v3949 = vand.u32 %v3948, 4294901760
      %3950 = vmatpush1.msra.mxu0 %v3949
      %3951 = vmatprep.subr.mxu0 0.0
      %v3952 = vand.u32 %v3475, 4294901760
      %v3953 = vsub.f32 %v3475, %v3952
      %v3954 = vand.u32 %v3953, 4294901760
      %3955 = vmatpush1.msra.mxu0 %v3954
      %3956 = vmatprep.subr.mxu0 0.0
      %3957 = vmatpush1.msra.mxu0 0.0
      %3958 = vmatprep.subr.mxu0 0.0
      %3959 = vmatpush1.msra.mxu0 0.0
      %3960 = vmatprep.subr.mxu0 0.0
      %3961 = vmatpush1.msra.mxu0 0.0
      %3962 = vmatprep.subr.mxu0 0.0
      %3963 = vmatpush1.msra.mxu0 0.0
      %3964 = vmatprep.subr.mxu0 0.0
      %3965 = vmatpush1.msra.mxu0 0.0
      %3966 = vmatprep.subr.mxu0 0.0
      %3967 = vmatpush1.msra.mxu0 0.0
      %3968 = vmatprep.subr.mxu0 0.0
      %3969 = vmatpush1.msra.mxu0 0.0
      %3970 = vmatprep.subr.mxu0 0.0
      %3971 = vmatpush1.msra.mxu0 0.0
      %3972 = vmatprep.subr.mxu0 0.0
      %3973 = vmatpush1.msra.mxu0 0.0
      %3974 = vmatprep.subr.mxu0 0.0
      %3975 = vmatpush1.msra.mxu0 0.0
      %3976 = vmatprep.subr.mxu0 0.0
      %3977 = vmatpush1.msra.mxu0 0.0
      %3978 = vmatprep.subr.mxu0 0.0
      %3979 = vmatpush1.msra.mxu0 0.0
      %3980 = vmatprep.subr.mxu0 0.0
      %3981 = vmatpush1.msra.mxu0 0.0
      %3982 = vmatprep.subr.mxu0 0.0
      %3983 = vmatpush1.msra.mxu0 0.0
      %3984 = vmatprep.subr.mxu0 0.0
      %3985 = vmatpush1.msra.mxu0 0.0
      %3986 = vmatprep.subr.mxu0 0.0
      %3987 = vmatpush1.msra.mxu0 0.0
      %3988 = vmatprep.subr.mxu0 0.0
      %3989 = vmatpush1.msra.mxu0 0.0
      %3990 = vmatprep.subr.mxu0 0.0
      %3991 = vmatpush1.msra.mxu0 0.0
      %3992 = vmatprep.subr.mxu0 0.0
      %3993 = vmatpush1.msra.mxu0 0.0
      %3994 = vmatprep.subr.mxu0 0.0
      %3995 = vmatpush1.msra.mxu0 0.0
      %3996 = vmatprep.subr.mxu0 0.0
      %3997 = vmatpush1.msra.mxu0 0.0
      %3998 = vmatprep.subr.mxu0 0.0
      %3999 = vmatpush1.msra.mxu0 0.0
      %4000 = vmatprep.subr.mxu0 0.0
      %4001 = vmatpush1.msra.mxu0 0.0
      %4002 = vmatprep.subr.mxu0 0.0
      %4003 = vmatpush1.msra.mxu0 0.0
      %4004 = vmatprep.subr.mxu0 0.0
      %4005 = vmatpush1.msra.mxu0 0.0
      %4006 = vmatprep.subr.mxu0 0.0
      %4007 = vmatpush1.msra.mxu0 0.0
      %4008 = vmatprep.subr.mxu0 0.0
      %4009 = vmatpush1.msra.mxu0 0.0
      %4010 = vmatprep.subr.mxu0 0.0
      %4011 = vmatpush1.msra.mxu0 0.0
      %4012 = vmatprep.mubr.f32.mxu0 0.0
      %v4013 = vand.u32 %v3505, 4294901760
      %4014 = vmatmul.mubr.f32.gmra.mrb[0].mxu0 %v4013
      %v4015 = vpop.f32.mrb[0].mxu0
      %v4016 = vadd.f32 %v3909, %v4015
      %v4017 = vpop.f32.mrb[0].mxu0
      %4018 = vmatprep.mubr.f32.mxu0 0.0
      %v4019 = vand.u32 %v3508, 4294901760
      %4020 = vmatmul.mubr.f32.gmra.mrb[0].mxu0 %v4019
      %v4021 = vpop.f32.mrb[0].mxu0
      %v4022 = vadd.f32 %v3917, %v4021
      %v4023 = vpop.f32.mrb[0].mxu0
      %4024 = vmatprep.mubr.f32.mxu0 0.0
      %v4025 = vand.u32 %v3511, 4294901760
      %4026 = vmatmul.mubr.f32.gmra.mrb[0].mxu0 %v4025
      %v4027 = vpop.f32.mrb[0].mxu0
      %v4028 = vadd.f32 %v3925, %v4027
      %v4029 = vpop.f32.mrb[0].mxu0
      %4030 = vmatprep.mubr.f32.mxu0 0.0
      %v4031 = vand.u32 %v3514, 4294901760
      %4032 = vmatmul.mubr.f32.gmra.mrb[0].mxu0 %v4031
      %v4033 = vpop.f32.mrb[0].mxu0
      %v4034 = vadd.f32 %v3933, %v4033
      %v4035 = vpop.f32.mrb[0].mxu0
      %4036 = vdwg.mxu0
      %4037 = vmatprep.subr.mxu0 0.0
      %v4038 = vand.u32 %v3472, 4294901760
      %4039 = vmatpush1.msra.mxu0 %v4038
      %4040 = vmatprep.subr.mxu0 0.0
      %v4041 = vand.u32 %v3473, 4294901760
      %4042 = vmatpush1.msra.mxu0 %v4041
      %4043 = vmatprep.subr.mxu0 0.0
      %v4044 = vand.u32 %v3474, 4294901760
      %4045 = vmatpush1.msra.mxu0 %v4044
      %4046 = vmatprep.subr.mxu0 0.0
      %v4047 = vand.u32 %v3475, 4294901760
      %4048 = vmatpush1.msra.mxu0 %v4047
      %4049 = vmatprep.subr.mxu0 0.0
      %4050 = vmatpush1.msra.mxu0 0.0
      %4051 = vmatprep.subr.mxu0 0.0
      %4052 = vmatpush1.msra.mxu0 0.0
      %4053 = vmatprep.subr.mxu0 0.0
      %4054 = vmatpush1.msra.mxu0 0.0
      %4055 = vmatprep.subr.mxu0 0.0
      %4056 = vmatpush1.msra.mxu0 0.0
      %4057 = vmatprep.subr.mxu0 0.0
      %4058 = vmatpush1.msra.mxu0 0.0
      %4059 = vmatprep.subr.mxu0 0.0
      %4060 = vmatpush1.msra.mxu0 0.0
      %4061 = vmatprep.subr.mxu0 0.0
      %4062 = vmatpush1.msra.mxu0 0.0
      %4063 = vmatprep.subr.mxu0 0.0
      %4064 = vmatpush1.msra.mxu0 0.0
      %4065 = vmatprep.subr.mxu0 0.0
      %4066 = vmatpush1.msra.mxu0 0.0
      %4067 = vmatprep.subr.mxu0 0.0
      %4068 = vmatpush1.msra.mxu0 0.0
      %4069 = vmatprep.subr.mxu0 0.0
      %4070 = vmatpush1.msra.mxu0 0.0
      %4071 = vmatprep.subr.mxu0 0.0
      %4072 = vmatpush1.msra.mxu0 0.0
      %4073 = vmatprep.subr.mxu0 0.0
      %4074 = vmatpush1.msra.mxu0 0.0
      %4075 = vmatprep.subr.mxu0 0.0
      %4076 = vmatpush1.msra.mxu0 0.0
      %4077 = vmatprep.subr.mxu0 0.0
      %4078 = vmatpush1.msra.mxu0 0.0
      %4079 = vmatprep.subr.mxu0 0.0
      %4080 = vmatpush1.msra.mxu0 0.0
      %4081 = vmatprep.subr.mxu0 0.0
      %4082 = vmatpush1.msra.mxu0 0.0
      %4083 = vmatprep.subr.mxu0 0.0
      %4084 = vmatpush1.msra.mxu0 0.0
      %4085 = vmatprep.subr.mxu0 0.0
      %4086 = vmatpush1.msra.mxu0 0.0
      %4087 = vmatprep.subr.mxu0 0.0
      %4088 = vmatpush1.msra.mxu0 0.0
      %4089 = vmatprep.subr.mxu0 0.0
      %4090 = vmatpush1.msra.mxu0 0.0
      %4091 = vmatprep.subr.mxu0 0.0
      %4092 = vmatpush1.msra.mxu0 0.0
      %4093 = vmatprep.subr.mxu0 0.0
      %4094 = vmatpush1.msra.mxu0 0.0
      %4095 = vmatprep.subr.mxu0 0.0
      %4096 = vmatpush1.msra.mxu0 0.0
      %4097 = vmatprep.subr.mxu0 0.0
      %4098 = vmatpush1.msra.mxu0 0.0
      %4099 = vmatprep.subr.mxu0 0.0
      %4100 = vmatpush1.msra.mxu0 0.0
      %4101 = vmatprep.subr.mxu0 0.0
      %4102 = vmatpush1.msra.mxu0 0.0
      %4103 = vmatprep.subr.mxu0 0.0
      %4104 = vmatpush1.msra.mxu0 0.0
      %4105 = vmatprep.mubr.f32.mxu0 0.0
      %v4106 = vand.u32 %v3505, 4294901760
      %4107 = vmatmul.mubr.f32.gmra.mrb[0].mxu0 %v4106
      %v4108 = vpop.f32.mrb[0].mxu0
      %v4109 = vadd.f32 %v4016, %v4108
      %v4110 = vpop.f32.mrb[0].mxu0
      %4111 = vmatprep.mubr.f32.mxu0 0.0
      %v4112 = vand.u32 %v3508, 4294901760
      %4113 = vmatmul.mubr.f32.gmra.mrb[0].mxu0 %v4112
      %v4114 = vpop.f32.mrb[0].mxu0
      %v4115 = vadd.f32 %v4022, %v4114
      %v4116 = vpop.f32.mrb[0].mxu0
      %4117 = vmatprep.mubr.f32.mxu0 0.0
      %v4118 = vand.u32 %v3511, 4294901760
      %4119 = vmatmul.mubr.f32.gmra.mrb[0].mxu0 %v4118
      %v4120 = vpop.f32.mrb[0].mxu0
      %v4121 = vadd.f32 %v4028, %v4120
      %v4122 = vpop.f32.mrb[0].mxu0
      %4123 = vmatprep.mubr.f32.mxu0 0.0
      %v4124 = vand.u32 %v3514, 4294901760
      %4125 = vmatmul.mubr.f32.gmra.mrb[0].mxu0 %v4124
      %v4126 = vpop.f32.mrb[0].mxu0
      %v4127 = vadd.f32 %v4034, %v4126
      %v4128 = vpop.f32.mrb[0].mxu0
      %4129 = vdwg.mxu0
      %4130 = vst.msk [vmem:[%s451] sm:$0xff] %vm2934, %v4109
      %4131 = vst.msk [vmem:[%s451 + $0x8] sm:$0xff] %vm2934, %v4115
      %4132 = vst.msk [vmem:[%s451 + $0x10] sm:$0xff] %vm2934, %v4121
      %4133 = vst.msk [vmem:[%s451 + $0x18] sm:$0xff] %vm2934, %v4127
      %p4134 = scmp.lt.s32.totalorder %s26, 1
      %s4135 = scalar_select %p4134, %s26, 1
      %p4136 = scmp.lt.s32.totalorder %s27, 0
      %s4137 = scalar_select %p4136, %s27, 0
      %s4138 = smul.addr %s4135, 4
      %s4139 = sadd.s32 %s4137, %s4138
      %s4140 = smul.addr %s4139, 8
      %s4141 = scalar_lea.vmem %s11, %s4140
      // Predicated region
      $region65: #{tpu_custom_call.1} parent=63 // pred_check
        %p4142 = pneg %p302
      $region66: #{tpu_custom_call.1} parent=63 // pred_check_branch
        %4144 = sbr.rel (%p4142) target = $region68
      $region67: #{tpu_custom_call.1} parent=63 // pred_region
        _
      $region68: #{tpu_custom_call.1} parent=63 // pred_fallthru
        _
    $region64: #{tpu_custom_call.1} parent=5 // pred_fallthru
      _
    %p4145 = scmp.le.s32.totalorder 2, %s17
    // Predicated region
    $region69: #{tpu_custom_call.1} parent=5 // pred_check
      %p4146 = pneg %p4145
    $region70: #{tpu_custom_call.1} parent=5 // pred_check_branch
      %4148 = sbr.rel (%p4146) target = $region72
    $region71: #{tpu_custom_call.1} parent=5 // pred_region
      %s4149 = ssub.s32 %s17, 2
      // Predicated region
      $region73: #{tpu_custom_call.1} parent=71 // pred_check
        %p4150 = pneg %p308
      $region74: #{tpu_custom_call.1} parent=71 // pred_check_branch
        %4152 = sbr.rel (%p4150) target = $region76
      $region75: #{tpu_custom_call.1} parent=71 // pred_region
        %p4153 = scmp.lt.s32.totalorder %s28, 1
        %s4154 = scalar_select %p4153, %s28, 1
        %p4155 = scmp.lt.s32.totalorder %s29, 0
        %s4156 = scalar_select %p4155, %s29, 0
        %s4157 = smul.addr %s4154, 4
        %s4158 = sadd.s32 %s4156, %s4157
        %s4159 = smul.addr %s4158, 8
        %s4160 = scalar_lea.vmem %s11, %s4159
      $region76: #{tpu_custom_call.1} parent=71 // pred_fallthru
        _
    $region72: #{tpu_custom_call.1} parent=5 // pred_fallthru
      _
  $region6: #{tpu_custom_call.1} parent=0 // loop_footer
    %s21 = sadd.s32 1, %s17
  $region7: #{tpu_custom_call.1} parent=0 // loop_footer_branch
    %16 = sbr.rel target = $region3
  $region8: #{tpu_custom_call.1} parent=0 // loop_exit
    _

</llo_original>
